<compile_context>
chip_gen: v7x
topology: tpu7x:2x2x1
jax: 0.10.0
libtpu: 0.0.40
codegen_flags: <defaults>
</compile_context>

<pallas_src>
import functools

import jax
import jax.numpy as jnp
import numpy as np
from jax.experimental import pallas as pl
from jax.experimental.pallas import tpu as pltpu


_OFFSETS_3X3 = tuple((dy, dx) for dy in (-1, 0, 1) for dx in (-1, 0, 1))

# Phase-selection matrices that fold the nearest-x2 upsample into the 3x3 upconv:
# _S_PHASE[pr][dy+1, ky] == 1 iff output rows of parity pr read feat-row offset dy
# through original kernel row ky (same matrices apply to columns).
_S_PHASE = (
    np.array([[1., 0., 0.], [0., 1., 1.], [0., 0., 0.]], np.float32),  # parity 0
    np.array([[0., 0., 0.], [1., 1., 0.], [0., 0., 1.]], np.float32),  # parity 1
)


# ----------------------------------------------------------------------------
# Trace-time constant builders
# ----------------------------------------------------------------------------
def _conv_masks(h, w, offsets):
    """(len(offsets), h*w) f32 validity masks for shifted taps on an (h, w) grid."""
    hh = np.arange(h)[:, None]
    ww = np.arange(w)[None, :]
    rows = []
    for dy, dx in offsets:
        ok = (hh + dy >= 0) & (hh + dy < h) & (ww + dx >= 0) & (ww + dx < w)
        rows.append(ok.reshape(-1))
    return np.stack(rows).astype(np.float32)


def _group_reduce_mats(hd, wd):
    """Factored LayerNorm statistics: red (m_d, hd) computes per-row means,
    bcast (hd, m_d) broadcasts them back over the wd lanes of each row."""
    m = hd * wd
    red = np.zeros((m, hd), np.float32)
    bcast = np.zeros((hd, m), np.float32)
    for h in range(hd):
        red[h * wd:(h + 1) * wd, h] = 1.0 / wd
        bcast[h, h * wd:(h + 1) * wd] = 1.0
    return jnp.asarray(red), jnp.asarray(bcast)


def _flatten_conv3x3(w):
    """(cout, cin, 3, 3) -> (cout, 9*cin) bf16, tap-major (k = (dy+1)*3 + (dx+1))."""
    cout, cin = w.shape[0], w.shape[1]
    return jnp.transpose(w, (0, 2, 3, 1)).reshape(cout, 9 * cin).astype(jnp.bfloat16)


def _pack_upconv_phases(w_up):
    """Fold nearest-x2 upsample + 3x3 conv into 4 parity-phase effective 3x3
    kernels, flattened and stacked: (4*cout, 9*cin2) bf16, rows grouped by
    phase index 2*pr + pc."""
    cout, cin2 = w_up.shape[0], w_up.shape[1]
    rows = []
    for pr in (0, 1):
        for pc in (0, 1):
            eff = jnp.einsum('ak,bl,oikl->oabi',
                             jnp.asarray(_S_PHASE[pr]), jnp.asarray(_S_PHASE[pc]),
                             w_up)
            rows.append(eff.reshape(cout, 9 * cin2))
    return jnp.concatenate(rows, axis=0).astype(jnp.bfloat16)


# ----------------------------------------------------------------------------
# The fused Pallas kernel (one grid step == one batch sample)
# ----------------------------------------------------------------------------
def _res_unet_kernel(xp_ref, w_down_ref, rb_w1_ref, rb_w2_ref, rb_w3_ref,
                     rb_wo_ref, rb_se1_ref, rb_se2_ref, rb_lng_ref, rb_lnb_ref,
                     sub_w_ref, w_up_ref, mask_down_ref, mask3_c_ref,
                     mask3_2c_ref, red_ref, bcast_ref, out_ref,
                     *, c, wd, m_d, n_res, eps):
    f32 = jnp.float32
    bf16 = jnp.bfloat16

    red = red_ref[...]           # (m_d, hd) f32  per-row mean reduce
    bcast = bcast_ref[...]       # (hd, m_d) f32  per-row broadcast
    mask3_c = mask3_c_ref[...]   # (9*c, m_d) f32 stride-1 masks, repeated per Cin

    def relu(v):
        return jnp.maximum(v, 0.0)

    def im2col(x, mask_rep):
        # 9 shifted copies stacked along the contraction axis; wrapped /
        # out-of-image lanes zeroed by ONE mask multiply; single bf16 cast.
        parts = []
        for dy, dx in _OFFSETS_3X3:
            d = dy * wd + dx
            parts.append(x if d == 0 else pltpu.roll(x, shift=(-d) % m_d, axis=1))
        return (jnp.concatenate(parts, axis=0) * mask_rep).astype(bf16)

    def conv3x3(x, w_flat, mask_rep):
        # 3x3 stride-1 pad-1 bias-free conv as ONE K=9*Cin MXU matmul.
        return jnp.dot(w_flat, im2col(x, mask_rep), preferred_element_type=f32)

    def layer_norm(y, gamma, beta):
        # nn.LayerNorm over the W axis (wd-lane groups): factored reduce +
        # broadcast.  [y; y*y] statistics in one small f32 matmul,
        # var = E[y^2] - mu^2, rsqrt at (c, hd) size, then broadcast via 0/1 mats.
        yy = jnp.concatenate([y, y * y], axis=0)                    # (2c, m_d)
        stats = jnp.dot(yy, red, preferred_element_type=f32)        # (2c, hd)
        mu = stats[:c]
        rstd = jax.lax.rsqrt(jnp.maximum(stats[c:] - mu * mu, 0.0) + eps)
        mu_b = jnp.dot(mu, bcast, preferred_element_type=f32)       # (c, m_d)
        rstd_b = jnp.dot(rstd, bcast, preferred_element_type=f32)   # (c, m_d)
        return (y - mu_b) * rstd_b * gamma + beta

    # --- down: 3x3 stride-2 pad-1 conv (parity decomposition) + ReLU -----------
    # All 9 taps stacked into one K = 9*Cin matmul.
    xp = xp_ref[0]                                  # (4, cin, m_d) parity slabs
    parts = []
    for ky in range(3):
        a, p = (-1, 1) if ky == 0 else (0, ky - 1)
        for kx in range(3):
            b, q = (-1, 1) if kx == 0 else (0, kx - 1)
            d = a * wd + b
            xs = xp[2 * p + q]
            if d != 0:
                xs = pltpu.roll(xs, shift=(-d) % m_d, axis=1)
            parts.append(xs)
    down_cols = (jnp.concatenate(parts, axis=0) * mask_down_ref[...]).astype(bf16)
    y = relu(jnp.dot(w_down_ref[...], down_cols, preferred_element_type=f32))

    # --- two fused ResidualBlocks ----------------------------------------------
    for i in range(n_res):
        lng = rb_lng_ref[i]                         # (3, m_d) tiled gammas
        lnb = rb_lnb_ref[i]                         # (3, m_d) tiled betas
        out1 = relu(layer_norm(conv3x3(y, rb_w1_ref[i], mask3_c),
                               lng[0:1], lnb[0:1]))
        out2 = relu(layer_norm(conv3x3(out1, rb_w2_ref[i], mask3_c),
                               lng[1:2], lnb[1:2]))
        out3 = layer_norm(
            jnp.dot(rb_w3_ref[i], out2.astype(bf16), preferred_element_type=f32),
            lng[2:3], lnb[2:3])

        # conv_out over cat([x, out1, out2, out3], 1): one K=4C matmul on the
        # materialized (4C, m_d) sublane concat.
        cat = jnp.concatenate([y, out1, out2, out3], axis=0).astype(bf16)
        out = jnp.dot(rb_wo_ref[i], cat, preferred_element_type=f32)

        # SE block (spatial mean + two tiny FCs + sigmoid), residual add, ReLU.
        pooled = jnp.mean(out, axis=-1, keepdims=True)                       # (c, 1)
        hidden = relu(jnp.dot(rb_se1_ref[i], pooled, preferred_element_type=f32))
        s = jax.nn.sigmoid(jnp.dot(rb_se2_ref[i], hidden, preferred_element_type=f32))
        y = relu(out * s + y)

    # --- stand-in submodule: 1x1 conv + ReLU, channel concat (doubles C) --------
    z = relu(jnp.dot(sub_w_ref[...], y.astype(bf16), preferred_element_type=f32))
    feat = jnp.concatenate([y, z], axis=0)                                   # (2c, m_d)

    # --- nearest-x2 upsample + 3x3 pad-1 upconv, as 4 fused parity phases -------
    # One matmul against the combined phase weights; no upsampled slab and no
    # O((H*W)^2) upsample matrix are ever materialized.
    up_cols = im2col(feat, mask3_2c_ref[...])                                # (18c, m_d)
    res = jnp.dot(w_up_ref[...], up_cols, preferred_element_type=f32)        # (4*cout, m_d)
    out_ref[0] = res.astype(out_ref.dtype)


# ----------------------------------------------------------------------------
# Wrapper: pack params into MXU-friendly slabs and launch the fused kernel
# ----------------------------------------------------------------------------
def res_unet_block_outermost(x, params):
    n, cin, hi, wi = x.shape
    c = params["downconv_w"].shape[0]            # inner_nc
    outer_nc = params["upconv_w"].shape[0]
    assert hi % 2 == 0 and wi % 2 == 0
    hd, wd = hi // 2, wi // 2
    m_d = hd * wd
    assert wd == c, "nn.LayerNorm(inner_nc) requires post-downconv width == inner_nc"

    # 4 stride-2 parity slabs per image (cheap strided views; heavy work in-kernel).
    xp = jnp.stack(
        [x[:, :, p::2, q::2].reshape(n, cin, m_d) for p in (0, 1) for q in (0, 1)],
        axis=1)                                                   # (N, 4, Cin, m_d)

    # im2col-flattened weights (bf16 operands, f32 accumulation in-kernel).
    w_down = _flatten_conv3x3(params["downconv_w"])               # (C, 9*Cin)
    w_up = _pack_upconv_phases(params["upconv_w"])                # (4*outer, 9*2C)
    sub_w = params["sub_w"].reshape(c, c).astype(jnp.bfloat16)

    rbs = [params["res_down1"], params["res_down2"]]
    rb_w1 = jnp.stack([_flatten_conv3x3(p["conv1_w"]) for p in rbs])   # (2, C, 9C)
    rb_w2 = jnp.stack([_flatten_conv3x3(p["conv2_w"]) for p in rbs])
    rb_w3 = jnp.stack([p["conv3_w"].reshape(c, c).astype(jnp.bfloat16) for p in rbs])
    rb_wo = jnp.stack([p["conv_out_w"].reshape(c, 4 * c).astype(jnp.bfloat16)
                       for p in rbs])                                  # (2, C, 4C)
    rb_se1 = jnp.stack([p["se_w1"] for p in rbs])                      # (2, r, C) f32
    rb_se2 = jnp.stack([p["se_w2"] for p in rbs])                      # (2, C, r) f32
    rb_lng = jnp.stack([
        jnp.stack([jnp.tile(p["ln1_g"], hd), jnp.tile(p["ln2_g"], hd),
                   jnp.tile(p["ln3_g"], hd)]) for p in rbs])           # (2, 3, m_d)
    rb_lnb = jnp.stack([
        jnp.stack([jnp.tile(p["ln1_b"], hd), jnp.tile(p["ln2_b"], hd),
                   jnp.tile(p["ln3_b"], hd)]) for p in rbs])           # (2, 3, m_d)

    # Lane-dense boundary masks, repeated per input channel so they apply once to
    # each stacked im2col operand; factored LayerNorm reduce/broadcast matrices.
    masks3 = _conv_masks(hd, wd, _OFFSETS_3X3)                         # (9, m_d)
    s2_offsets = [(-1 if ky == 0 else 0, -1 if kx == 0 else 0)
                  for ky in range(3) for kx in range(3)]
    masks_s2 = _conv_masks(hd, wd, s2_offsets)                         # (9, m_d)
    mask_down = jnp.asarray(np.repeat(masks_s2, cin, axis=0))          # (9*Cin, m_d)
    mask3_c = jnp.asarray(np.repeat(masks3, c, axis=0))                # (9*C, m_d)
    mask3_2c = jnp.asarray(np.repeat(masks3, 2 * c, axis=0))           # (18*C, m_d)
    red, bcast = _group_reduce_mats(hd, wd)

    const_inputs = [w_down, rb_w1, rb_w2, rb_w3, rb_wo, rb_se1, rb_se2,
                    rb_lng, rb_lnb, sub_w, w_up,
                    mask_down, mask3_c, mask3_2c, red, bcast]

    def _const_spec(a):
        nd = a.ndim
        return pl.BlockSpec(a.shape, lambda i, _nd=nd: (0,) * _nd)

    kernel = functools.partial(_res_unet_kernel, c=c, wd=wd, m_d=m_d,
                               n_res=len(rbs), eps=1e-5)

    out = pl.pallas_call(
        kernel,
        out_shape=jax.ShapeDtypeStruct((n, 4 * outer_nc, m_d), jnp.float32),
        grid=(n,),
        in_specs=[pl.BlockSpec((1, 4, cin, m_d), lambda i: (i, 0, 0, 0))]
                 + [_const_spec(a) for a in const_inputs],
        out_specs=pl.BlockSpec((1, 4 * outer_nc, m_d), lambda i: (i, 0, 0)),
        compiler_params=pltpu.CompilerParams(
            dimension_semantics=("parallel",)),
    )(xp, *const_inputs)

    # De-interleave the 4 output parity phases back to (N, Cout, H, W):
    # out[n, pr, pc, co, i, j] -> final[n, co, 2i+pr, 2j+pc].
    out = out.reshape(n, 2, 2, outer_nc, hd, wd)
    out = jnp.transpose(out, (0, 3, 4, 1, 5, 2)).reshape(n, outer_nc, hi, wi)
    return out


# ----------------------------------------------------------------------------
# Deterministic parameter initialization (bias-free, as in the PyTorch module)
# ----------------------------------------------------------------------------
def _residual_block_params(key, c):
    ks = jax.random.split(key, 10)
    r = max(c // 16, 1)
    return {
        "conv1_w": 0.1 * jax.random.normal(ks[0], (c, c, 3, 3), jnp.float32),
        "conv2_w": 0.1 * jax.random.normal(ks[1], (c, c, 3, 3), jnp.float32),
        "conv3_w": 0.1 * jax.random.normal(ks[2], (c, c, 1, 1), jnp.float32),
        "ln1_g": 1.0 + 0.1 * jax.random.normal(ks[3], (c,), jnp.float32),
        "ln1_b": 0.1 * jax.random.normal(ks[4], (c,), jnp.float32),
        "ln2_g": 1.0 + 0.1 * jax.random.normal(ks[5], (c,), jnp.float32),
        "ln2_b": 0.1 * jax.random.normal(ks[6], (c,), jnp.float32),
        "ln3_g": jnp.ones((c,), jnp.float32),
        "ln3_b": jnp.zeros((c,), jnp.float32),
        "conv_out_w": 0.1 * jax.random.normal(ks[7], (c, 4 * c, 1, 1), jnp.float32),
        "se_w1": 0.1 * jax.random.normal(ks[8], (r, c), jnp.float32),  # Linear(c->r).weight
        "se_w2": 0.1 * jax.random.normal(ks[9], (c, r), jnp.float32),  # Linear(r->c).weight
    }


def init_params(key, input_nc, inner_nc, outer_nc):
    ks = jax.random.split(key, 5)
    return {
        "downconv_w": 0.1 * jax.random.normal(ks[0], (inner_nc, input_nc, 3, 3), jnp.float32),
        "res_down1": _residual_block_params(ks[1], inner_nc),
        "res_down2": _residual_block_params(ks[2], inner_nc),
        "sub_w": 0.1 * jax.random.normal(ks[3], (inner_nc, inner_nc, 1, 1), jnp.float32),
        "upconv_w": 0.1 * jax.random.normal(ks[4], (outer_nc, 2 * inner_nc, 3, 3), jnp.float32),
    }


if __name__ == "__main__":
    outer_nc, inner_nc = 8, 16        # input_nc defaults to outer_nc
    batch, spatial = 2, 32            # post-downconv spatial == inner_nc (LayerNorm req.)

    key = jax.random.PRNGKey(0)
    k_x, k_p = jax.random.split(key)
    x = jax.random.normal(k_x, (batch, outer_nc, spatial, spatial), jnp.float32)
    params = init_params(k_p, input_nc=outer_nc, inner_nc=inner_nc, outer_nc=outer_nc)

    fwd = jax.jit(res_unet_block_outermost)
    out = jax.block_until_ready(fwd(x, params))

    assert out.shape == (batch, outer_nc, spatial, spatial), out.shape
    assert bool(jnp.all(jnp.isfinite(out)))
    print("KERNEL_OK")
</pallas_src>

<mosaic_0001>
module attributes {stable_mosaic.version = 11 : i64} {
  func.func @_res_unet_kernel(%arg0: i32, %arg1: memref<1x4x8x256xf32, #tpu.memory_space<vmem>>, %arg2: memref<16x72xbf16, #tpu.memory_space<vmem>>, %arg3: memref<2x16x144xbf16, #tpu.memory_space<vmem>>, %arg4: memref<2x16x144xbf16, #tpu.memory_space<vmem>>, %arg5: memref<2x16x16xbf16, #tpu.memory_space<vmem>>, %arg6: memref<2x16x64xbf16, #tpu.memory_space<vmem>>, %arg7: memref<2x1x16xf32, #tpu.memory_space<vmem>>, %arg8: memref<2x16x1xf32, #tpu.memory_space<vmem>>, %arg9: memref<2x3x256xf32, #tpu.memory_space<vmem>>, %arg10: memref<2x3x256xf32, #tpu.memory_space<vmem>>, %arg11: memref<16x16xbf16, #tpu.memory_space<vmem>>, %arg12: memref<32x288xbf16, #tpu.memory_space<vmem>>, %arg13: memref<72x256xf32, #tpu.memory_space<vmem>>, %arg14: memref<144x256xf32, #tpu.memory_space<vmem>>, %arg15: memref<288x256xf32, #tpu.memory_space<vmem>>, %arg16: memref<256x16xf32, #tpu.memory_space<vmem>>, %arg17: memref<16x256xf32, #tpu.memory_space<vmem>>, %arg18: memref<1x32x256xf32, #tpu.memory_space<vmem>>) attributes {dimension_semantics = [#tpu.dimension_semantics<parallel>], iteration_bounds = array<i64: 2>, scalar_prefetch = 0 : i64, scratch_operands = 0 : i64, tpu.core_type = #tpu.core_type<tc>, window_params = [{transform_indices = @transform_0, window_bounds = array<i64: 1, 4, 8, 256>}, {pipeline_mode = #tpu.pipeline_mode<synchronous>, transform_indices = @transform_1, window_bounds = array<i64: 16, 72>}, {pipeline_mode = #tpu.pipeline_mode<synchronous>, transform_indices = @transform_2, window_bounds = array<i64: 2, 16, 144>}, {pipeline_mode = #tpu.pipeline_mode<synchronous>, transform_indices = @transform_3, window_bounds = array<i64: 2, 16, 144>}, {pipeline_mode = #tpu.pipeline_mode<synchronous>, transform_indices = @transform_4, window_bounds = array<i64: 2, 16, 16>}, {pipeline_mode = #tpu.pipeline_mode<synchronous>, transform_indices = @transform_5, window_bounds = array<i64: 2, 16, 64>}, {pipeline_mode = #tpu.pipeline_mode<synchronous>, transform_indices = @transform_6, window_bounds = array<i64: 2, 1, 16>}, {pipeline_mode = #tpu.pipeline_mode<synchronous>, transform_indices = @transform_7, window_bounds = array<i64: 2, 16, 1>}, {pipeline_mode = #tpu.pipeline_mode<synchronous>, transform_indices = @transform_8, window_bounds = array<i64: 2, 3, 256>}, {pipeline_mode = #tpu.pipeline_mode<synchronous>, transform_indices = @transform_9, window_bounds = array<i64: 2, 3, 256>}, {pipeline_mode = #tpu.pipeline_mode<synchronous>, transform_indices = @transform_10, window_bounds = array<i64: 16, 16>}, {pipeline_mode = #tpu.pipeline_mode<synchronous>, transform_indices = @transform_11, window_bounds = array<i64: 32, 288>}, {pipeline_mode = #tpu.pipeline_mode<synchronous>, transform_indices = @transform_12, window_bounds = array<i64: 72, 256>}, {pipeline_mode = #tpu.pipeline_mode<synchronous>, transform_indices = @transform_13, window_bounds = array<i64: 144, 256>}, {pipeline_mode = #tpu.pipeline_mode<synchronous>, transform_indices = @transform_14, window_bounds = array<i64: 288, 256>}, {pipeline_mode = #tpu.pipeline_mode<synchronous>, transform_indices = @transform_15, window_bounds = array<i64: 256, 16>}, {pipeline_mode = #tpu.pipeline_mode<synchronous>, transform_indices = @transform_16, window_bounds = array<i64: 16, 256>}, {transform_indices = @transform_17, window_bounds = array<i64: 1, 32, 256>}]} {
    %c0 = arith.constant 0 : index
    %c0_0 = arith.constant 0 : index
    %0 = vector.load %arg16[%c0, %c0_0] : memref<256x16xf32, #tpu.memory_space<vmem>>, vector<256x16xf32>
    %c0_1 = arith.constant 0 : index
    %c0_2 = arith.constant 0 : index
    %1 = vector.load %arg17[%c0_1, %c0_2] : memref<16x256xf32, #tpu.memory_space<vmem>>, vector<16x256xf32>
    %c0_3 = arith.constant 0 : index
    %c0_4 = arith.constant 0 : index
    %2 = vector.load %arg14[%c0_3, %c0_4] : memref<144x256xf32, #tpu.memory_space<vmem>>, vector<144x256xf32>
    %c0_5 = arith.constant 0 : index
    %c0_6 = arith.constant 0 : index
    %c0_7 = arith.constant 0 : index
    %c0_8 = arith.constant 0 : index
    %3 = vector.load %arg1[%c0_5, %c0_6, %c0_7, %c0_8] : memref<1x4x8x256xf32, #tpu.memory_space<vmem>>, vector<1x4x8x256xf32>
    %4 = vector.shape_cast %3 : vector<1x4x8x256xf32> to vector<4x8x256xf32>
    %5 = vector.extract_strided_slice %4 {offsets = [3, 0, 0], sizes = [1, 8, 256], strides = [1, 1, 1]} : vector<4x8x256xf32> to vector<1x8x256xf32>
    %6 = vector.shape_cast %5 : vector<1x8x256xf32> to vector<8x256xf32>
    %c17_i32 = arith.constant 17 : i32
    %7 = tpu.dynamic_rotate %6 by %c17_i32 dim 1 : vector<8x256xf32>, i32 -> vector<8x256xf32>
    %8 = vector.extract_strided_slice %4 {offsets = [2, 0, 0], sizes = [1, 8, 256], strides = [1, 1, 1]} : vector<4x8x256xf32> to vector<1x8x256xf32>
    %9 = vector.shape_cast %8 : vector<1x8x256xf32> to vector<8x256xf32>
    %c16_i32 = arith.constant 16 : i32
    %10 = tpu.dynamic_rotate %9 by %c16_i32 dim 1 : vector<8x256xf32>, i32 -> vector<8x256xf32>
    %11 = vector.extract_strided_slice %4 {offsets = [3, 0, 0], sizes = [1, 8, 256], strides = [1, 1, 1]} : vector<4x8x256xf32> to vector<1x8x256xf32>
    %12 = vector.shape_cast %11 : vector<1x8x256xf32> to vector<8x256xf32>
    %c16_i32_9 = arith.constant 16 : i32
    %13 = tpu.dynamic_rotate %12 by %c16_i32_9 dim 1 : vector<8x256xf32>, i32 -> vector<8x256xf32>
    %14 = vector.extract_strided_slice %4 {offsets = [1, 0, 0], sizes = [1, 8, 256], strides = [1, 1, 1]} : vector<4x8x256xf32> to vector<1x8x256xf32>
    %15 = vector.shape_cast %14 : vector<1x8x256xf32> to vector<8x256xf32>
    %c1_i32 = arith.constant 1 : i32
    %16 = tpu.dynamic_rotate %15 by %c1_i32 dim 1 : vector<8x256xf32>, i32 -> vector<8x256xf32>
    %17 = vector.extract_strided_slice %4 {offsets = [0, 0, 0], sizes = [1, 8, 256], strides = [1, 1, 1]} : vector<4x8x256xf32> to vector<1x8x256xf32>
    %18 = vector.shape_cast %17 : vector<1x8x256xf32> to vector<8x256xf32>
    %19 = vector.extract_strided_slice %4 {offsets = [1, 0, 0], sizes = [1, 8, 256], strides = [1, 1, 1]} : vector<4x8x256xf32> to vector<1x8x256xf32>
    %20 = vector.shape_cast %19 : vector<1x8x256xf32> to vector<8x256xf32>
    %21 = vector.extract_strided_slice %4 {offsets = [3, 0, 0], sizes = [1, 8, 256], strides = [1, 1, 1]} : vector<4x8x256xf32> to vector<1x8x256xf32>
    %22 = vector.shape_cast %21 : vector<1x8x256xf32> to vector<8x256xf32>
    %c1_i32_10 = arith.constant 1 : i32
    %23 = tpu.dynamic_rotate %22 by %c1_i32_10 dim 1 : vector<8x256xf32>, i32 -> vector<8x256xf32>
    %24 = vector.extract_strided_slice %4 {offsets = [2, 0, 0], sizes = [1, 8, 256], strides = [1, 1, 1]} : vector<4x8x256xf32> to vector<1x8x256xf32>
    %25 = vector.shape_cast %24 : vector<1x8x256xf32> to vector<8x256xf32>
    %26 = vector.extract_strided_slice %4 {offsets = [3, 0, 0], sizes = [1, 8, 256], strides = [1, 1, 1]} : vector<4x8x256xf32> to vector<1x8x256xf32>
    %27 = vector.shape_cast %26 : vector<1x8x256xf32> to vector<8x256xf32>
    %28 = tpu.concatenate %7, %10, %13, %16, %18, %20, %23, %25, %27 in 0 : vector<8x256xf32>, vector<8x256xf32>, vector<8x256xf32>, vector<8x256xf32>, vector<8x256xf32>, vector<8x256xf32>, vector<8x256xf32>, vector<8x256xf32>, vector<8x256xf32> -> vector<72x256xf32>
    %c0_11 = arith.constant 0 : index
    %c0_12 = arith.constant 0 : index
    %29 = vector.load %arg13[%c0_11, %c0_12] : memref<72x256xf32, #tpu.memory_space<vmem>>, vector<72x256xf32>
    %30 = arith.mulf %28, %29 : vector<72x256xf32>
    %31 = arith.truncf %30 : vector<72x256xf32> to vector<72x256xbf16>
    %c0_13 = arith.constant 0 : index
    %c0_14 = arith.constant 0 : index
    %32 = vector.load %arg2[%c0_13, %c0_14] : memref<16x72xbf16, #tpu.memory_space<vmem>>, vector<16x72xbf16>
    %cst = arith.constant dense<0.000000e+00> : vector<16x256xf32>
    %33 = tpu.matmul %32, %31, %cst {dimension_numbers = #tpu.dot_dimension_numbers<[1], [0], [0], [1], [0, 0, 1, 1], [], []>} : vector<16x72xbf16>, vector<72x256xbf16>, vector<16x256xf32> -> vector<16x256xf32>
    %cst_15 = arith.constant 0.000000e+00 : f32
    %34 = vector.broadcast %cst_15 : f32 to vector<16x256xf32>
    %35 = arith.maximumf %33, %34 : vector<16x256xf32>
    %c0_16 = arith.constant 0 : index
    %c0_17 = arith.constant 0 : index
    %c0_18 = arith.constant 0 : index
    %36 = vector.load %arg9[%c0_16, %c0_17, %c0_18] : memref<2x3x256xf32, #tpu.memory_space<vmem>>, vector<1x3x256xf32>
    %37 = vector.shape_cast %36 : vector<1x3x256xf32> to vector<3x256xf32>
    %c0_19 = arith.constant 0 : index
    %c0_20 = arith.constant 0 : index
    %c0_21 = arith.constant 0 : index
    %38 = vector.load %arg10[%c0_19, %c0_20, %c0_21] : memref<2x3x256xf32, #tpu.memory_space<vmem>>, vector<1x3x256xf32>
    %39 = vector.shape_cast %38 : vector<1x3x256xf32> to vector<3x256xf32>
    %c0_22 = arith.constant 0 : index
    %c0_23 = arith.constant 0 : index
    %c0_24 = arith.constant 0 : index
    %40 = vector.load %arg3[%c0_22, %c0_23, %c0_24] : memref<2x16x144xbf16, #tpu.memory_space<vmem>>, vector<1x16x144xbf16>
    %41 = vector.shape_cast %40 : vector<1x16x144xbf16> to vector<16x144xbf16>
    %c17_i32_25 = arith.constant 17 : i32
    %42 = tpu.dynamic_rotate %35 by %c17_i32_25 dim 1 : vector<16x256xf32>, i32 -> vector<16x256xf32>
    %c16_i32_26 = arith.constant 16 : i32
    %43 = tpu.dynamic_rotate %35 by %c16_i32_26 dim 1 : vector<16x256xf32>, i32 -> vector<16x256xf32>
    %c15_i32 = arith.constant 15 : i32
    %44 = tpu.dynamic_rotate %35 by %c15_i32 dim 1 : vector<16x256xf32>, i32 -> vector<16x256xf32>
    %c1_i32_27 = arith.constant 1 : i32
    %45 = tpu.dynamic_rotate %35 by %c1_i32_27 dim 1 : vector<16x256xf32>, i32 -> vector<16x256xf32>
    %c255_i32 = arith.constant 255 : i32
    %46 = tpu.dynamic_rotate %35 by %c255_i32 dim 1 : vector<16x256xf32>, i32 -> vector<16x256xf32>
    %c241_i32 = arith.constant 241 : i32
    %47 = tpu.dynamic_rotate %35 by %c241_i32 dim 1 : vector<16x256xf32>, i32 -> vector<16x256xf32>
    %c240_i32 = arith.constant 240 : i32
    %48 = tpu.dynamic_rotate %35 by %c240_i32 dim 1 : vector<16x256xf32>, i32 -> vector<16x256xf32>
    %c239_i32 = arith.constant 239 : i32
    %49 = tpu.dynamic_rotate %35 by %c239_i32 dim 1 : vector<16x256xf32>, i32 -> vector<16x256xf32>
    %50 = tpu.concatenate %42, %43, %44, %45, %35, %46, %47, %48, %49 in 0 : vector<16x256xf32>, vector<16x256xf32>, vector<16x256xf32>, vector<16x256xf32>, vector<16x256xf32>, vector<16x256xf32>, vector<16x256xf32>, vector<16x256xf32>, vector<16x256xf32> -> vector<144x256xf32>
    %51 = arith.mulf %50, %2 : vector<144x256xf32>
    %52 = arith.truncf %51 : vector<144x256xf32> to vector<144x256xbf16>
    %cst_28 = arith.constant dense<0.000000e+00> : vector<16x256xf32>
    %53 = tpu.matmul %41, %52, %cst_28 {dimension_numbers = #tpu.dot_dimension_numbers<[1], [0], [0], [1], [0, 0, 1, 1], [], []>} : vector<16x144xbf16>, vector<144x256xbf16>, vector<16x256xf32> -> vector<16x256xf32>
    %54 = vector.extract_strided_slice %37 {offsets = [0, 0], sizes = [1, 256], strides = [1, 1]} : vector<3x256xf32> to vector<1x256xf32>
    %55 = vector.extract_strided_slice %39 {offsets = [0, 0], sizes = [1, 256], strides = [1, 1]} : vector<3x256xf32> to vector<1x256xf32>
    %56 = arith.mulf %53, %53 : vector<16x256xf32>
    %57 = tpu.concatenate %53, %56 in 0 : vector<16x256xf32>, vector<16x256xf32> -> vector<32x256xf32>
    %cst_29 = arith.constant dense<0.000000e+00> : vector<32x16xf32>
    %58 = tpu.matmul %57, %0, %cst_29 {dimension_numbers = #tpu.dot_dimension_numbers<[1], [0], [0], [1], [0, 0, 1, 1], [], []>} : vector<32x256xf32>, vector<256x16xf32>, vector<32x16xf32> -> vector<32x16xf32>
    %59 = vector.extract_strided_slice %58 {offsets = [0, 0], sizes = [16, 16], strides = [1, 1]} : vector<32x16xf32> to vector<16x16xf32>
    %60 = vector.extract_strided_slice %58 {offsets = [16, 0], sizes = [16, 16], strides = [1, 1]} : vector<32x16xf32> to vector<16x16xf32>
    %61 = arith.mulf %59, %59 : vector<16x16xf32>
    %62 = arith.subf %60, %61 : vector<16x16xf32>
    %cst_30 = arith.constant 0.000000e+00 : f32
    %63 = vector.broadcast %cst_30 : f32 to vector<16x16xf32>
    %64 = arith.maximumf %62, %63 : vector<16x16xf32>
    %cst_31 = arith.constant 9.99999974E-6 : f32
    %65 = vector.broadcast %cst_31 : f32 to vector<16x16xf32>
    %66 = arith.addf %64, %65 : vector<16x16xf32>
    %67 = math.rsqrt %66 : vector<16x16xf32>
    %cst_32 = arith.constant dense<0.000000e+00> : vector<16x256xf32>
    %68 = tpu.matmul %59, %1, %cst_32 {dimension_numbers = #tpu.dot_dimension_numbers<[1], [0], [0], [1], [0, 0, 1, 1], [], []>} : vector<16x16xf32>, vector<16x256xf32>, vector<16x256xf32> -> vector<16x256xf32>
    %cst_33 = arith.constant dense<0.000000e+00> : vector<16x256xf32>
    %69 = tpu.matmul %67, %1, %cst_33 {dimension_numbers = #tpu.dot_dimension_numbers<[1], [0], [0], [1], [0, 0, 1, 1], [], []>} : vector<16x16xf32>, vector<16x256xf32>, vector<16x256xf32> -> vector<16x256xf32>
    %70 = arith.subf %53, %68 : vector<16x256xf32>
    %71 = arith.mulf %70, %69 : vector<16x256xf32>
    %72 = vector.broadcast %54 : vector<1x256xf32> to vector<16x256xf32>
    %73 = arith.mulf %71, %72 : vector<16x256xf32>
    %74 = vector.broadcast %55 : vector<1x256xf32> to vector<16x256xf32>
    %75 = arith.addf %73, %74 : vector<16x256xf32>
    %cst_34 = arith.constant 0.000000e+00 : f32
    %76 = vector.broadcast %cst_34 : f32 to vector<16x256xf32>
    %77 = arith.maximumf %75, %76 : vector<16x256xf32>
    %c0_35 = arith.constant 0 : index
    %c0_36 = arith.constant 0 : index
    %c0_37 = arith.constant 0 : index
    %78 = vector.load %arg4[%c0_35, %c0_36, %c0_37] : memref<2x16x144xbf16, #tpu.memory_space<vmem>>, vector<1x16x144xbf16>
    %79 = vector.shape_cast %78 : vector<1x16x144xbf16> to vector<16x144xbf16>
    %c17_i32_38 = arith.constant 17 : i32
    %80 = tpu.dynamic_rotate %77 by %c17_i32_38 dim 1 : vector<16x256xf32>, i32 -> vector<16x256xf32>
    %c16_i32_39 = arith.constant 16 : i32
    %81 = tpu.dynamic_rotate %77 by %c16_i32_39 dim 1 : vector<16x256xf32>, i32 -> vector<16x256xf32>
    %c15_i32_40 = arith.constant 15 : i32
    %82 = tpu.dynamic_rotate %77 by %c15_i32_40 dim 1 : vector<16x256xf32>, i32 -> vector<16x256xf32>
    %c1_i32_41 = arith.constant 1 : i32
    %83 = tpu.dynamic_rotate %77 by %c1_i32_41 dim 1 : vector<16x256xf32>, i32 -> vector<16x256xf32>
    %c255_i32_42 = arith.constant 255 : i32
    %84 = tpu.dynamic_rotate %77 by %c255_i32_42 dim 1 : vector<16x256xf32>, i32 -> vector<16x256xf32>
    %c241_i32_43 = arith.constant 241 : i32
    %85 = tpu.dynamic_rotate %77 by %c241_i32_43 dim 1 : vector<16x256xf32>, i32 -> vector<16x256xf32>
    %c240_i32_44 = arith.constant 240 : i32
    %86 = tpu.dynamic_rotate %77 by %c240_i32_44 dim 1 : vector<16x256xf32>, i32 -> vector<16x256xf32>
    %c239_i32_45 = arith.constant 239 : i32
    %87 = tpu.dynamic_rotate %77 by %c239_i32_45 dim 1 : vector<16x256xf32>, i32 -> vector<16x256xf32>
    %88 = tpu.concatenate %80, %81, %82, %83, %77, %84, %85, %86, %87 in 0 : vector<16x256xf32>, vector<16x256xf32>, vector<16x256xf32>, vector<16x256xf32>, vector<16x256xf32>, vector<16x256xf32>, vector<16x256xf32>, vector<16x256xf32>, vector<16x256xf32> -> vector<144x256xf32>
    %89 = arith.mulf %88, %2 : vector<144x256xf32>
    %90 = arith.truncf %89 : vector<144x256xf32> to vector<144x256xbf16>
    %cst_46 = arith.constant dense<0.000000e+00> : vector<16x256xf32>
    %91 = tpu.matmul %79, %90, %cst_46 {dimension_numbers = #tpu.dot_dimension_numbers<[1], [0], [0], [1], [0, 0, 1, 1], [], []>} : vector<16x144xbf16>, vector<144x256xbf16>, vector<16x256xf32> -> vector<16x256xf32>
    %92 = vector.extract_strided_slice %37 {offsets = [1, 0], sizes = [1, 256], strides = [1, 1]} : vector<3x256xf32> to vector<1x256xf32>
    %93 = vector.extract_strided_slice %39 {offsets = [1, 0], sizes = [1, 256], strides = [1, 1]} : vector<3x256xf32> to vector<1x256xf32>
    %94 = arith.mulf %91, %91 : vector<16x256xf32>
    %95 = tpu.concatenate %91, %94 in 0 : vector<16x256xf32>, vector<16x256xf32> -> vector<32x256xf32>
    %cst_47 = arith.constant dense<0.000000e+00> : vector<32x16xf32>
    %96 = tpu.matmul %95, %0, %cst_47 {dimension_numbers = #tpu.dot_dimension_numbers<[1], [0], [0], [1], [0, 0, 1, 1], [], []>} : vector<32x256xf32>, vector<256x16xf32>, vector<32x16xf32> -> vector<32x16xf32>
    %97 = vector.extract_strided_slice %96 {offsets = [0, 0], sizes = [16, 16], strides = [1, 1]} : vector<32x16xf32> to vector<16x16xf32>
    %98 = vector.extract_strided_slice %96 {offsets = [16, 0], sizes = [16, 16], strides = [1, 1]} : vector<32x16xf32> to vector<16x16xf32>
    %99 = arith.mulf %97, %97 : vector<16x16xf32>
    %100 = arith.subf %98, %99 : vector<16x16xf32>
    %cst_48 = arith.constant 0.000000e+00 : f32
    %101 = vector.broadcast %cst_48 : f32 to vector<16x16xf32>
    %102 = arith.maximumf %100, %101 : vector<16x16xf32>
    %cst_49 = arith.constant 9.99999974E-6 : f32
    %103 = vector.broadcast %cst_49 : f32 to vector<16x16xf32>
    %104 = arith.addf %102, %103 : vector<16x16xf32>
    %105 = math.rsqrt %104 : vector<16x16xf32>
    %cst_50 = arith.constant dense<0.000000e+00> : vector<16x256xf32>
    %106 = tpu.matmul %97, %1, %cst_50 {dimension_numbers = #tpu.dot_dimension_numbers<[1], [0], [0], [1], [0, 0, 1, 1], [], []>} : vector<16x16xf32>, vector<16x256xf32>, vector<16x256xf32> -> vector<16x256xf32>
    %cst_51 = arith.constant dense<0.000000e+00> : vector<16x256xf32>
    %107 = tpu.matmul %105, %1, %cst_51 {dimension_numbers = #tpu.dot_dimension_numbers<[1], [0], [0], [1], [0, 0, 1, 1], [], []>} : vector<16x16xf32>, vector<16x256xf32>, vector<16x256xf32> -> vector<16x256xf32>
    %108 = arith.subf %91, %106 : vector<16x256xf32>
    %109 = arith.mulf %108, %107 : vector<16x256xf32>
    %110 = vector.broadcast %92 : vector<1x256xf32> to vector<16x256xf32>
    %111 = arith.mulf %109, %110 : vector<16x256xf32>
    %112 = vector.broadcast %93 : vector<1x256xf32> to vector<16x256xf32>
    %113 = arith.addf %111, %112 : vector<16x256xf32>
    %cst_52 = arith.constant 0.000000e+00 : f32
    %114 = vector.broadcast %cst_52 : f32 to vector<16x256xf32>
    %115 = arith.maximumf %113, %114 : vector<16x256xf32>
    %c0_53 = arith.constant 0 : index
    %c0_54 = arith.constant 0 : index
    %c0_55 = arith.constant 0 : index
    %116 = vector.load %arg5[%c0_53, %c0_54, %c0_55] : memref<2x16x16xbf16, #tpu.memory_space<vmem>>, vector<1x16x16xbf16>
    %117 = vector.shape_cast %116 : vector<1x16x16xbf16> to vector<16x16xbf16>
    %118 = arith.truncf %115 : vector<16x256xf32> to vector<16x256xbf16>
    %cst_56 = arith.constant dense<0.000000e+00> : vector<16x256xf32>
    %119 = tpu.matmul %117, %118, %cst_56 {dimension_numbers = #tpu.dot_dimension_numbers<[1], [0], [0], [1], [0, 0, 1, 1], [], []>} : vector<16x16xbf16>, vector<16x256xbf16>, vector<16x256xf32> -> vector<16x256xf32>
    %120 = vector.extract_strided_slice %37 {offsets = [2, 0], sizes = [1, 256], strides = [1, 1]} : vector<3x256xf32> to vector<1x256xf32>
    %121 = vector.extract_strided_slice %39 {offsets = [2, 0], sizes = [1, 256], strides = [1, 1]} : vector<3x256xf32> to vector<1x256xf32>
    %122 = arith.mulf %119, %119 : vector<16x256xf32>
    %123 = tpu.concatenate %119, %122 in 0 : vector<16x256xf32>, vector<16x256xf32> -> vector<32x256xf32>
    %cst_57 = arith.constant dense<0.000000e+00> : vector<32x16xf32>
    %124 = tpu.matmul %123, %0, %cst_57 {dimension_numbers = #tpu.dot_dimension_numbers<[1], [0], [0], [1], [0, 0, 1, 1], [], []>} : vector<32x256xf32>, vector<256x16xf32>, vector<32x16xf32> -> vector<32x16xf32>
    %125 = vector.extract_strided_slice %124 {offsets = [0, 0], sizes = [16, 16], strides = [1, 1]} : vector<32x16xf32> to vector<16x16xf32>
    %126 = vector.extract_strided_slice %124 {offsets = [16, 0], sizes = [16, 16], strides = [1, 1]} : vector<32x16xf32> to vector<16x16xf32>
    %127 = arith.mulf %125, %125 : vector<16x16xf32>
    %128 = arith.subf %126, %127 : vector<16x16xf32>
    %cst_58 = arith.constant 0.000000e+00 : f32
    %129 = vector.broadcast %cst_58 : f32 to vector<16x16xf32>
    %130 = arith.maximumf %128, %129 : vector<16x16xf32>
    %cst_59 = arith.constant 9.99999974E-6 : f32
    %131 = vector.broadcast %cst_59 : f32 to vector<16x16xf32>
    %132 = arith.addf %130, %131 : vector<16x16xf32>
    %133 = math.rsqrt %132 : vector<16x16xf32>
    %cst_60 = arith.constant dense<0.000000e+00> : vector<16x256xf32>
    %134 = tpu.matmul %125, %1, %cst_60 {dimension_numbers = #tpu.dot_dimension_numbers<[1], [0], [0], [1], [0, 0, 1, 1], [], []>} : vector<16x16xf32>, vector<16x256xf32>, vector<16x256xf32> -> vector<16x256xf32>
    %cst_61 = arith.constant dense<0.000000e+00> : vector<16x256xf32>
    %135 = tpu.matmul %133, %1, %cst_61 {dimension_numbers = #tpu.dot_dimension_numbers<[1], [0], [0], [1], [0, 0, 1, 1], [], []>} : vector<16x16xf32>, vector<16x256xf32>, vector<16x256xf32> -> vector<16x256xf32>
    %136 = arith.subf %119, %134 : vector<16x256xf32>
    %137 = arith.mulf %136, %135 : vector<16x256xf32>
    %138 = vector.broadcast %120 : vector<1x256xf32> to vector<16x256xf32>
    %139 = arith.mulf %137, %138 : vector<16x256xf32>
    %140 = vector.broadcast %121 : vector<1x256xf32> to vector<16x256xf32>
    %141 = arith.addf %139, %140 : vector<16x256xf32>
    %142 = tpu.concatenate %35, %77, %115, %141 in 0 : vector<16x256xf32>, vector<16x256xf32>, vector<16x256xf32>, vector<16x256xf32> -> vector<64x256xf32>
    %143 = arith.truncf %142 : vector<64x256xf32> to vector<64x256xbf16>
    %c0_62 = arith.constant 0 : index
    %c0_63 = arith.constant 0 : index
    %c0_64 = arith.constant 0 : index
    %144 = vector.load %arg6[%c0_62, %c0_63, %c0_64] : memref<2x16x64xbf16, #tpu.memory_space<vmem>>, vector<1x16x64xbf16>
    %145 = vector.shape_cast %144 : vector<1x16x64xbf16> to vector<16x64xbf16>
    %cst_65 = arith.constant dense<0.000000e+00> : vector<16x256xf32>
    %146 = tpu.matmul %145, %143, %cst_65 {dimension_numbers = #tpu.dot_dimension_numbers<[1], [0], [0], [1], [0, 0, 1, 1], [], []>} : vector<16x64xbf16>, vector<64x256xbf16>, vector<16x256xf32> -> vector<16x256xf32>
    %cst_66 = arith.constant dense<0.000000e+00> : vector<16xf32>
    %147 = vector.multi_reduction <add>, %146, %cst_66 [1] : vector<16x256xf32> to vector<16xf32>
    %148 = vector.shape_cast %147 : vector<16xf32> to vector<16x1xf32>
    %cst_67 = arith.constant 2.560000e+02 : f32
    %149 = vector.broadcast %cst_67 : f32 to vector<16x1xf32>
    %150 = arith.divf %148, %149 : vector<16x1xf32>
    %c0_68 = arith.constant 0 : index
    %c0_69 = arith.constant 0 : index
    %c0_70 = arith.constant 0 : index
    %151 = vector.load %arg7[%c0_68, %c0_69, %c0_70] : memref<2x1x16xf32, #tpu.memory_space<vmem>>, vector<1x1x16xf32>
    %152 = vector.shape_cast %151 : vector<1x1x16xf32> to vector<1x16xf32>
    %cst_71 = arith.constant dense<0.000000e+00> : vector<1x1xf32>
    %153 = tpu.matmul %152, %150, %cst_71 {dimension_numbers = #tpu.dot_dimension_numbers<[1], [0], [0], [1], [0, 0, 1, 1], [], []>} : vector<1x16xf32>, vector<16x1xf32>, vector<1x1xf32> -> vector<1x1xf32>
    %cst_72 = arith.constant 0.000000e+00 : f32
    %154 = vector.broadcast %cst_72 : f32 to vector<1x1xf32>
    %155 = arith.maximumf %153, %154 : vector<1x1xf32>
    %c0_73 = arith.constant 0 : index
    %c0_74 = arith.constant 0 : index
    %c0_75 = arith.constant 0 : index
    %156 = vector.load %arg8[%c0_73, %c0_74, %c0_75] : memref<2x16x1xf32, #tpu.memory_space<vmem>>, vector<1x16x1xf32>
    %157 = vector.shape_cast %156 : vector<1x16x1xf32> to vector<16x1xf32>
    %cst_76 = arith.constant dense<0.000000e+00> : vector<16x1xf32>
    %158 = tpu.matmul %157, %155, %cst_76 {dimension_numbers = #tpu.dot_dimension_numbers<[1], [0], [0], [1], [0, 0, 1, 1], [], []>} : vector<16x1xf32>, vector<1x1xf32>, vector<16x1xf32> -> vector<16x1xf32>
    %159 = arith.negf %158 : vector<16x1xf32>
    %160 = math.exp %159 : vector<16x1xf32>
    %cst_77 = arith.constant 1.000000e+00 : f32
    %161 = vector.broadcast %cst_77 : f32 to vector<16x1xf32>
    %162 = arith.addf %161, %160 : vector<16x1xf32>
    %163 = arith.divf %161, %162 : vector<16x1xf32>
    %164 = vector.broadcast %163 : vector<16x1xf32> to vector<16x256xf32>
    %165 = arith.mulf %146, %164 : vector<16x256xf32>
    %166 = arith.addf %165, %35 : vector<16x256xf32>
    %cst_78 = arith.constant 0.000000e+00 : f32
    %167 = vector.broadcast %cst_78 : f32 to vector<16x256xf32>
    %168 = arith.maximumf %166, %167 : vector<16x256xf32>
    %c1 = arith.constant 1 : index
    %c0_79 = arith.constant 0 : index
    %c0_80 = arith.constant 0 : index
    %169 = vector.load %arg9[%c1, %c0_79, %c0_80] : memref<2x3x256xf32, #tpu.memory_space<vmem>>, vector<1x3x256xf32>
    %170 = vector.shape_cast %169 : vector<1x3x256xf32> to vector<3x256xf32>
    %c1_81 = arith.constant 1 : index
    %c0_82 = arith.constant 0 : index
    %c0_83 = arith.constant 0 : index
    %171 = vector.load %arg10[%c1_81, %c0_82, %c0_83] : memref<2x3x256xf32, #tpu.memory_space<vmem>>, vector<1x3x256xf32>
    %172 = vector.shape_cast %171 : vector<1x3x256xf32> to vector<3x256xf32>
    %c1_84 = arith.constant 1 : index
    %c0_85 = arith.constant 0 : index
    %c0_86 = arith.constant 0 : index
    %173 = vector.load %arg3[%c1_84, %c0_85, %c0_86] : memref<2x16x144xbf16, #tpu.memory_space<vmem>>, vector<1x16x144xbf16>
    %174 = vector.shape_cast %173 : vector<1x16x144xbf16> to vector<16x144xbf16>
    %c17_i32_87 = arith.constant 17 : i32
    %175 = tpu.dynamic_rotate %168 by %c17_i32_87 dim 1 : vector<16x256xf32>, i32 -> vector<16x256xf32>
    %c16_i32_88 = arith.constant 16 : i32
    %176 = tpu.dynamic_rotate %168 by %c16_i32_88 dim 1 : vector<16x256xf32>, i32 -> vector<16x256xf32>
    %c15_i32_89 = arith.constant 15 : i32
    %177 = tpu.dynamic_rotate %168 by %c15_i32_89 dim 1 : vector<16x256xf32>, i32 -> vector<16x256xf32>
    %c1_i32_90 = arith.constant 1 : i32
    %178 = tpu.dynamic_rotate %168 by %c1_i32_90 dim 1 : vector<16x256xf32>, i32 -> vector<16x256xf32>
    %c255_i32_91 = arith.constant 255 : i32
    %179 = tpu.dynamic_rotate %168 by %c255_i32_91 dim 1 : vector<16x256xf32>, i32 -> vector<16x256xf32>
    %c241_i32_92 = arith.constant 241 : i32
    %180 = tpu.dynamic_rotate %168 by %c241_i32_92 dim 1 : vector<16x256xf32>, i32 -> vector<16x256xf32>
    %c240_i32_93 = arith.constant 240 : i32
    %181 = tpu.dynamic_rotate %168 by %c240_i32_93 dim 1 : vector<16x256xf32>, i32 -> vector<16x256xf32>
    %c239_i32_94 = arith.constant 239 : i32
    %182 = tpu.dynamic_rotate %168 by %c239_i32_94 dim 1 : vector<16x256xf32>, i32 -> vector<16x256xf32>
    %183 = tpu.concatenate %175, %176, %177, %178, %168, %179, %180, %181, %182 in 0 : vector<16x256xf32>, vector<16x256xf32>, vector<16x256xf32>, vector<16x256xf32>, vector<16x256xf32>, vector<16x256xf32>, vector<16x256xf32>, vector<16x256xf32>, vector<16x256xf32> -> vector<144x256xf32>
    %184 = arith.mulf %183, %2 : vector<144x256xf32>
    %185 = arith.truncf %184 : vector<144x256xf32> to vector<144x256xbf16>
    %cst_95 = arith.constant dense<0.000000e+00> : vector<16x256xf32>
    %186 = tpu.matmul %174, %185, %cst_95 {dimension_numbers = #tpu.dot_dimension_numbers<[1], [0], [0], [1], [0, 0, 1, 1], [], []>} : vector<16x144xbf16>, vector<144x256xbf16>, vector<16x256xf32> -> vector<16x256xf32>
    %187 = vector.extract_strided_slice %170 {offsets = [0, 0], sizes = [1, 256], strides = [1, 1]} : vector<3x256xf32> to vector<1x256xf32>
    %188 = vector.extract_strided_slice %172 {offsets = [0, 0], sizes = [1, 256], strides = [1, 1]} : vector<3x256xf32> to vector<1x256xf32>
    %189 = arith.mulf %186, %186 : vector<16x256xf32>
    %190 = tpu.concatenate %186, %189 in 0 : vector<16x256xf32>, vector<16x256xf32> -> vector<32x256xf32>
    %cst_96 = arith.constant dense<0.000000e+00> : vector<32x16xf32>
    %191 = tpu.matmul %190, %0, %cst_96 {dimension_numbers = #tpu.dot_dimension_numbers<[1], [0], [0], [1], [0, 0, 1, 1], [], []>} : vector<32x256xf32>, vector<256x16xf32>, vector<32x16xf32> -> vector<32x16xf32>
    %192 = vector.extract_strided_slice %191 {offsets = [0, 0], sizes = [16, 16], strides = [1, 1]} : vector<32x16xf32> to vector<16x16xf32>
    %193 = vector.extract_strided_slice %191 {offsets = [16, 0], sizes = [16, 16], strides = [1, 1]} : vector<32x16xf32> to vector<16x16xf32>
    %194 = arith.mulf %192, %192 : vector<16x16xf32>
    %195 = arith.subf %193, %194 : vector<16x16xf32>
    %cst_97 = arith.constant 0.000000e+00 : f32
    %196 = vector.broadcast %cst_97 : f32 to vector<16x16xf32>
    %197 = arith.maximumf %195, %196 : vector<16x16xf32>
    %cst_98 = arith.constant 9.99999974E-6 : f32
    %198 = vector.broadcast %cst_98 : f32 to vector<16x16xf32>
    %199 = arith.addf %197, %198 : vector<16x16xf32>
    %200 = math.rsqrt %199 : vector<16x16xf32>
    %cst_99 = arith.constant dense<0.000000e+00> : vector<16x256xf32>
    %201 = tpu.matmul %192, %1, %cst_99 {dimension_numbers = #tpu.dot_dimension_numbers<[1], [0], [0], [1], [0, 0, 1, 1], [], []>} : vector<16x16xf32>, vector<16x256xf32>, vector<16x256xf32> -> vector<16x256xf32>
    %cst_100 = arith.constant dense<0.000000e+00> : vector<16x256xf32>
    %202 = tpu.matmul %200, %1, %cst_100 {dimension_numbers = #tpu.dot_dimension_numbers<[1], [0], [0], [1], [0, 0, 1, 1], [], []>} : vector<16x16xf32>, vector<16x256xf32>, vector<16x256xf32> -> vector<16x256xf32>
    %203 = arith.subf %186, %201 : vector<16x256xf32>
    %204 = arith.mulf %203, %202 : vector<16x256xf32>
    %205 = vector.broadcast %187 : vector<1x256xf32> to vector<16x256xf32>
    %206 = arith.mulf %204, %205 : vector<16x256xf32>
    %207 = vector.broadcast %188 : vector<1x256xf32> to vector<16x256xf32>
    %208 = arith.addf %206, %207 : vector<16x256xf32>
    %cst_101 = arith.constant 0.000000e+00 : f32
    %209 = vector.broadcast %cst_101 : f32 to vector<16x256xf32>
    %210 = arith.maximumf %208, %209 : vector<16x256xf32>
    %c1_102 = arith.constant 1 : index
    %c0_103 = arith.constant 0 : index
    %c0_104 = arith.constant 0 : index
    %211 = vector.load %arg4[%c1_102, %c0_103, %c0_104] : memref<2x16x144xbf16, #tpu.memory_space<vmem>>, vector<1x16x144xbf16>
    %212 = vector.shape_cast %211 : vector<1x16x144xbf16> to vector<16x144xbf16>
    %c17_i32_105 = arith.constant 17 : i32
    %213 = tpu.dynamic_rotate %210 by %c17_i32_105 dim 1 : vector<16x256xf32>, i32 -> vector<16x256xf32>
    %c16_i32_106 = arith.constant 16 : i32
    %214 = tpu.dynamic_rotate %210 by %c16_i32_106 dim 1 : vector<16x256xf32>, i32 -> vector<16x256xf32>
    %c15_i32_107 = arith.constant 15 : i32
    %215 = tpu.dynamic_rotate %210 by %c15_i32_107 dim 1 : vector<16x256xf32>, i32 -> vector<16x256xf32>
    %c1_i32_108 = arith.constant 1 : i32
    %216 = tpu.dynamic_rotate %210 by %c1_i32_108 dim 1 : vector<16x256xf32>, i32 -> vector<16x256xf32>
    %c255_i32_109 = arith.constant 255 : i32
    %217 = tpu.dynamic_rotate %210 by %c255_i32_109 dim 1 : vector<16x256xf32>, i32 -> vector<16x256xf32>
    %c241_i32_110 = arith.constant 241 : i32
    %218 = tpu.dynamic_rotate %210 by %c241_i32_110 dim 1 : vector<16x256xf32>, i32 -> vector<16x256xf32>
    %c240_i32_111 = arith.constant 240 : i32
    %219 = tpu.dynamic_rotate %210 by %c240_i32_111 dim 1 : vector<16x256xf32>, i32 -> vector<16x256xf32>
    %c239_i32_112 = arith.constant 239 : i32
    %220 = tpu.dynamic_rotate %210 by %c239_i32_112 dim 1 : vector<16x256xf32>, i32 -> vector<16x256xf32>
    %221 = tpu.concatenate %213, %214, %215, %216, %210, %217, %218, %219, %220 in 0 : vector<16x256xf32>, vector<16x256xf32>, vector<16x256xf32>, vector<16x256xf32>, vector<16x256xf32>, vector<16x256xf32>, vector<16x256xf32>, vector<16x256xf32>, vector<16x256xf32> -> vector<144x256xf32>
    %222 = arith.mulf %221, %2 : vector<144x256xf32>
    %223 = arith.truncf %222 : vector<144x256xf32> to vector<144x256xbf16>
    %cst_113 = arith.constant dense<0.000000e+00> : vector<16x256xf32>
    %224 = tpu.matmul %212, %223, %cst_113 {dimension_numbers = #tpu.dot_dimension_numbers<[1], [0], [0], [1], [0, 0, 1, 1], [], []>} : vector<16x144xbf16>, vector<144x256xbf16>, vector<16x256xf32> -> vector<16x256xf32>
    %225 = vector.extract_strided_slice %170 {offsets = [1, 0], sizes = [1, 256], strides = [1, 1]} : vector<3x256xf32> to vector<1x256xf32>
    %226 = vector.extract_strided_slice %172 {offsets = [1, 0], sizes = [1, 256], strides = [1, 1]} : vector<3x256xf32> to vector<1x256xf32>
    %227 = arith.mulf %224, %224 : vector<16x256xf32>
    %228 = tpu.concatenate %224, %227 in 0 : vector<16x256xf32>, vector<16x256xf32> -> vector<32x256xf32>
    %cst_114 = arith.constant dense<0.000000e+00> : vector<32x16xf32>
    %229 = tpu.matmul %228, %0, %cst_114 {dimension_numbers = #tpu.dot_dimension_numbers<[1], [0], [0], [1], [0, 0, 1, 1], [], []>} : vector<32x256xf32>, vector<256x16xf32>, vector<32x16xf32> -> vector<32x16xf32>
    %230 = vector.extract_strided_slice %229 {offsets = [0, 0], sizes = [16, 16], strides = [1, 1]} : vector<32x16xf32> to vector<16x16xf32>
    %231 = vector.extract_strided_slice %229 {offsets = [16, 0], sizes = [16, 16], strides = [1, 1]} : vector<32x16xf32> to vector<16x16xf32>
    %232 = arith.mulf %230, %230 : vector<16x16xf32>
    %233 = arith.subf %231, %232 : vector<16x16xf32>
    %cst_115 = arith.constant 0.000000e+00 : f32
    %234 = vector.broadcast %cst_115 : f32 to vector<16x16xf32>
    %235 = arith.maximumf %233, %234 : vector<16x16xf32>
    %cst_116 = arith.constant 9.99999974E-6 : f32
    %236 = vector.broadcast %cst_116 : f32 to vector<16x16xf32>
    %237 = arith.addf %235, %236 : vector<16x16xf32>
    %238 = math.rsqrt %237 : vector<16x16xf32>
    %cst_117 = arith.constant dense<0.000000e+00> : vector<16x256xf32>
    %239 = tpu.matmul %230, %1, %cst_117 {dimension_numbers = #tpu.dot_dimension_numbers<[1], [0], [0], [1], [0, 0, 1, 1], [], []>} : vector<16x16xf32>, vector<16x256xf32>, vector<16x256xf32> -> vector<16x256xf32>
    %cst_118 = arith.constant dense<0.000000e+00> : vector<16x256xf32>
    %240 = tpu.matmul %238, %1, %cst_118 {dimension_numbers = #tpu.dot_dimension_numbers<[1], [0], [0], [1], [0, 0, 1, 1], [], []>} : vector<16x16xf32>, vector<16x256xf32>, vector<16x256xf32> -> vector<16x256xf32>
    %241 = arith.subf %224, %239 : vector<16x256xf32>
    %242 = arith.mulf %241, %240 : vector<16x256xf32>
    %243 = vector.broadcast %225 : vector<1x256xf32> to vector<16x256xf32>
    %244 = arith.mulf %242, %243 : vector<16x256xf32>
    %245 = vector.broadcast %226 : vector<1x256xf32> to vector<16x256xf32>
    %246 = arith.addf %244, %245 : vector<16x256xf32>
    %cst_119 = arith.constant 0.000000e+00 : f32
    %247 = vector.broadcast %cst_119 : f32 to vector<16x256xf32>
    %248 = arith.maximumf %246, %247 : vector<16x256xf32>
    %c1_120 = arith.constant 1 : index
    %c0_121 = arith.constant 0 : index
    %c0_122 = arith.constant 0 : index
    %249 = vector.load %arg5[%c1_120, %c0_121, %c0_122] : memref<2x16x16xbf16, #tpu.memory_space<vmem>>, vector<1x16x16xbf16>
    %250 = vector.shape_cast %249 : vector<1x16x16xbf16> to vector<16x16xbf16>
    %251 = arith.truncf %248 : vector<16x256xf32> to vector<16x256xbf16>
    %cst_123 = arith.constant dense<0.000000e+00> : vector<16x256xf32>
    %252 = tpu.matmul %250, %251, %cst_123 {dimension_numbers = #tpu.dot_dimension_numbers<[1], [0], [0], [1], [0, 0, 1, 1], [], []>} : vector<16x16xbf16>, vector<16x256xbf16>, vector<16x256xf32> -> vector<16x256xf32>
    %253 = vector.extract_strided_slice %170 {offsets = [2, 0], sizes = [1, 256], strides = [1, 1]} : vector<3x256xf32> to vector<1x256xf32>
    %254 = vector.extract_strided_slice %172 {offsets = [2, 0], sizes = [1, 256], strides = [1, 1]} : vector<3x256xf32> to vector<1x256xf32>
    %255 = arith.mulf %252, %252 : vector<16x256xf32>
    %256 = tpu.concatenate %252, %255 in 0 : vector<16x256xf32>, vector<16x256xf32> -> vector<32x256xf32>
    %cst_124 = arith.constant dense<0.000000e+00> : vector<32x16xf32>
    %257 = tpu.matmul %256, %0, %cst_124 {dimension_numbers = #tpu.dot_dimension_numbers<[1], [0], [0], [1], [0, 0, 1, 1], [], []>} : vector<32x256xf32>, vector<256x16xf32>, vector<32x16xf32> -> vector<32x16xf32>
    %258 = vector.extract_strided_slice %257 {offsets = [0, 0], sizes = [16, 16], strides = [1, 1]} : vector<32x16xf32> to vector<16x16xf32>
    %259 = vector.extract_strided_slice %257 {offsets = [16, 0], sizes = [16, 16], strides = [1, 1]} : vector<32x16xf32> to vector<16x16xf32>
    %260 = arith.mulf %258, %258 : vector<16x16xf32>
    %261 = arith.subf %259, %260 : vector<16x16xf32>
    %cst_125 = arith.constant 0.000000e+00 : f32
    %262 = vector.broadcast %cst_125 : f32 to vector<16x16xf32>
    %263 = arith.maximumf %261, %262 : vector<16x16xf32>
    %cst_126 = arith.constant 9.99999974E-6 : f32
    %264 = vector.broadcast %cst_126 : f32 to vector<16x16xf32>
    %265 = arith.addf %263, %264 : vector<16x16xf32>
    %266 = math.rsqrt %265 : vector<16x16xf32>
    %cst_127 = arith.constant dense<0.000000e+00> : vector<16x256xf32>
    %267 = tpu.matmul %258, %1, %cst_127 {dimension_numbers = #tpu.dot_dimension_numbers<[1], [0], [0], [1], [0, 0, 1, 1], [], []>} : vector<16x16xf32>, vector<16x256xf32>, vector<16x256xf32> -> vector<16x256xf32>
    %cst_128 = arith.constant dense<0.000000e+00> : vector<16x256xf32>
    %268 = tpu.matmul %266, %1, %cst_128 {dimension_numbers = #tpu.dot_dimension_numbers<[1], [0], [0], [1], [0, 0, 1, 1], [], []>} : vector<16x16xf32>, vector<16x256xf32>, vector<16x256xf32> -> vector<16x256xf32>
    %269 = arith.subf %252, %267 : vector<16x256xf32>
    %270 = arith.mulf %269, %268 : vector<16x256xf32>
    %271 = vector.broadcast %253 : vector<1x256xf32> to vector<16x256xf32>
    %272 = arith.mulf %270, %271 : vector<16x256xf32>
    %273 = vector.broadcast %254 : vector<1x256xf32> to vector<16x256xf32>
    %274 = arith.addf %272, %273 : vector<16x256xf32>
    %275 = tpu.concatenate %168, %210, %248, %274 in 0 : vector<16x256xf32>, vector<16x256xf32>, vector<16x256xf32>, vector<16x256xf32> -> vector<64x256xf32>
    %276 = arith.truncf %275 : vector<64x256xf32> to vector<64x256xbf16>
    %c1_129 = arith.constant 1 : index
    %c0_130 = arith.constant 0 : index
    %c0_131 = arith.constant 0 : index
    %277 = vector.load %arg6[%c1_129, %c0_130, %c0_131] : memref<2x16x64xbf16, #tpu.memory_space<vmem>>, vector<1x16x64xbf16>
    %278 = vector.shape_cast %277 : vector<1x16x64xbf16> to vector<16x64xbf16>
    %cst_132 = arith.constant dense<0.000000e+00> : vector<16x256xf32>
    %279 = tpu.matmul %278, %276, %cst_132 {dimension_numbers = #tpu.dot_dimension_numbers<[1], [0], [0], [1], [0, 0, 1, 1], [], []>} : vector<16x64xbf16>, vector<64x256xbf16>, vector<16x256xf32> -> vector<16x256xf32>
    %cst_133 = arith.constant dense<0.000000e+00> : vector<16xf32>
    %280 = vector.multi_reduction <add>, %279, %cst_133 [1] : vector<16x256xf32> to vector<16xf32>
    %281 = vector.shape_cast %280 : vector<16xf32> to vector<16x1xf32>
    %cst_134 = arith.constant 2.560000e+02 : f32
    %282 = vector.broadcast %cst_134 : f32 to vector<16x1xf32>
    %283 = arith.divf %281, %282 : vector<16x1xf32>
    %c1_135 = arith.constant 1 : index
    %c0_136 = arith.constant 0 : index
    %c0_137 = arith.constant 0 : index
    %284 = vector.load %arg7[%c1_135, %c0_136, %c0_137] : memref<2x1x16xf32, #tpu.memory_space<vmem>>, vector<1x1x16xf32>
    %285 = vector.shape_cast %284 : vector<1x1x16xf32> to vector<1x16xf32>
    %cst_138 = arith.constant dense<0.000000e+00> : vector<1x1xf32>
    %286 = tpu.matmul %285, %283, %cst_138 {dimension_numbers = #tpu.dot_dimension_numbers<[1], [0], [0], [1], [0, 0, 1, 1], [], []>} : vector<1x16xf32>, vector<16x1xf32>, vector<1x1xf32> -> vector<1x1xf32>
    %cst_139 = arith.constant 0.000000e+00 : f32
    %287 = vector.broadcast %cst_139 : f32 to vector<1x1xf32>
    %288 = arith.maximumf %286, %287 : vector<1x1xf32>
    %c1_140 = arith.constant 1 : index
    %c0_141 = arith.constant 0 : index
    %c0_142 = arith.constant 0 : index
    %289 = vector.load %arg8[%c1_140, %c0_141, %c0_142] : memref<2x16x1xf32, #tpu.memory_space<vmem>>, vector<1x16x1xf32>
    %290 = vector.shape_cast %289 : vector<1x16x1xf32> to vector<16x1xf32>
    %cst_143 = arith.constant dense<0.000000e+00> : vector<16x1xf32>
    %291 = tpu.matmul %290, %288, %cst_143 {dimension_numbers = #tpu.dot_dimension_numbers<[1], [0], [0], [1], [0, 0, 1, 1], [], []>} : vector<16x1xf32>, vector<1x1xf32>, vector<16x1xf32> -> vector<16x1xf32>
    %292 = arith.negf %291 : vector<16x1xf32>
    %293 = math.exp %292 : vector<16x1xf32>
    %cst_144 = arith.constant 1.000000e+00 : f32
    %294 = vector.broadcast %cst_144 : f32 to vector<16x1xf32>
    %295 = arith.addf %294, %293 : vector<16x1xf32>
    %296 = arith.divf %294, %295 : vector<16x1xf32>
    %297 = vector.broadcast %296 : vector<16x1xf32> to vector<16x256xf32>
    %298 = arith.mulf %279, %297 : vector<16x256xf32>
    %299 = arith.addf %298, %168 : vector<16x256xf32>
    %cst_145 = arith.constant 0.000000e+00 : f32
    %300 = vector.broadcast %cst_145 : f32 to vector<16x256xf32>
    %301 = arith.maximumf %299, %300 : vector<16x256xf32>
    %c0_146 = arith.constant 0 : index
    %c0_147 = arith.constant 0 : index
    %302 = vector.load %arg11[%c0_146, %c0_147] : memref<16x16xbf16, #tpu.memory_space<vmem>>, vector<16x16xbf16>
    %303 = arith.truncf %301 : vector<16x256xf32> to vector<16x256xbf16>
    %cst_148 = arith.constant dense<0.000000e+00> : vector<16x256xf32>
    %304 = tpu.matmul %302, %303, %cst_148 {dimension_numbers = #tpu.dot_dimension_numbers<[1], [0], [0], [1], [0, 0, 1, 1], [], []>} : vector<16x16xbf16>, vector<16x256xbf16>, vector<16x256xf32> -> vector<16x256xf32>
    %cst_149 = arith.constant 0.000000e+00 : f32
    %305 = vector.broadcast %cst_149 : f32 to vector<16x256xf32>
    %306 = arith.maximumf %304, %305 : vector<16x256xf32>
    %307 = tpu.concatenate %301, %306 in 0 : vector<16x256xf32>, vector<16x256xf32> -> vector<32x256xf32>
    %c0_150 = arith.constant 0 : index
    %c0_151 = arith.constant 0 : index
    %308 = vector.load %arg15[%c0_150, %c0_151] : memref<288x256xf32, #tpu.memory_space<vmem>>, vector<288x256xf32>
    %c17_i32_152 = arith.constant 17 : i32
    %309 = tpu.dynamic_rotate %307 by %c17_i32_152 dim 1 : vector<32x256xf32>, i32 -> vector<32x256xf32>
    %c16_i32_153 = arith.constant 16 : i32
    %310 = tpu.dynamic_rotate %307 by %c16_i32_153 dim 1 : vector<32x256xf32>, i32 -> vector<32x256xf32>
    %c15_i32_154 = arith.constant 15 : i32
    %311 = tpu.dynamic_rotate %307 by %c15_i32_154 dim 1 : vector<32x256xf32>, i32 -> vector<32x256xf32>
    %c1_i32_155 = arith.constant 1 : i32
    %312 = tpu.dynamic_rotate %307 by %c1_i32_155 dim 1 : vector<32x256xf32>, i32 -> vector<32x256xf32>
    %c255_i32_156 = arith.constant 255 : i32
    %313 = tpu.dynamic_rotate %307 by %c255_i32_156 dim 1 : vector<32x256xf32>, i32 -> vector<32x256xf32>
    %c241_i32_157 = arith.constant 241 : i32
    %314 = tpu.dynamic_rotate %307 by %c241_i32_157 dim 1 : vector<32x256xf32>, i32 -> vector<32x256xf32>
    %c240_i32_158 = arith.constant 240 : i32
    %315 = tpu.dynamic_rotate %307 by %c240_i32_158 dim 1 : vector<32x256xf32>, i32 -> vector<32x256xf32>
    %c239_i32_159 = arith.constant 239 : i32
    %316 = tpu.dynamic_rotate %307 by %c239_i32_159 dim 1 : vector<32x256xf32>, i32 -> vector<32x256xf32>
    %317 = tpu.concatenate %309, %310, %311, %312, %307, %313, %314, %315, %316 in 0 : vector<32x256xf32>, vector<32x256xf32>, vector<32x256xf32>, vector<32x256xf32>, vector<32x256xf32>, vector<32x256xf32>, vector<32x256xf32>, vector<32x256xf32>, vector<32x256xf32> -> vector<288x256xf32>
    %318 = arith.mulf %317, %308 : vector<288x256xf32>
    %319 = arith.truncf %318 : vector<288x256xf32> to vector<288x256xbf16>
    %c0_160 = arith.constant 0 : index
    %c0_161 = arith.constant 0 : index
    %320 = vector.load %arg12[%c0_160, %c0_161] : memref<32x288xbf16, #tpu.memory_space<vmem>>, vector<32x288xbf16>
    %cst_162 = arith.constant dense<0.000000e+00> : vector<32x256xf32>
    %321 = tpu.matmul %320, %319, %cst_162 {dimension_numbers = #tpu.dot_dimension_numbers<[1], [0], [0], [1], [0, 0, 1, 1], [], []>} : vector<32x288xbf16>, vector<288x256xbf16>, vector<32x256xf32> -> vector<32x256xf32>
    %c0_163 = arith.constant 0 : index
    %c0_164 = arith.constant 0 : index
    %c0_165 = arith.constant 0 : index
    %322 = vector.load %arg18[%c0_163, %c0_164, %c0_165] : memref<1x32x256xf32, #tpu.memory_space<vmem>>, vector<1x32x256xf32>
    %323 = vector.shape_cast %322 : vector<1x32x256xf32> to vector<32x256xf32>
    %324 = vector.shape_cast %321 : vector<32x256xf32> to vector<1x32x256xf32>
    tpu.vector_store %arg18[%c0_163, %c0_164, %c0_165], %324 {strides = array<i32>} : memref<1x32x256xf32, #tpu.memory_space<vmem>>, vector<1x32x256xf32>,
    return
  }
  func.func @transform_0(%arg0: i32) -> (i32, i32, i32, i32) {
    %c0_i32 = arith.constant 0 : i32
    %c0_i32_0 = arith.constant 0 : i32
    %c0_i32_1 = arith.constant 0 : i32
    %c0_i32_2 = arith.constant 0 : i32
    return %arg0, %c0_i32, %c0_i32_0, %c0_i32_1 : i32, i32, i32, i32
  }
  func.func @transform_1(%arg0: i32) -> (i32, i32) {
    %c0_i32 = arith.constant 0 : i32
    %c0_i32_0 = arith.constant 0 : i32
    %c0_i32_1 = arith.constant 0 : i32
    return %c0_i32, %c0_i32_0 : i32, i32
  }
  func.func @transform_2(%arg0: i32) -> (i32, i32, i32) {
    %c0_i32 = arith.constant 0 : i32
    %c0_i32_0 = arith.constant 0 : i32
    %c0_i32_1 = arith.constant 0 : i32
    %c0_i32_2 = arith.constant 0 : i32
    return %c0_i32, %c0_i32_0, %c0_i32_1 : i32, i32, i32
  }
  func.func @transform_3(%arg0: i32) -> (i32, i32, i32) {
    %c0_i32 = arith.constant 0 : i32
    %c0_i32_0 = arith.constant 0 : i32
    %c0_i32_1 = arith.constant 0 : i32
    %c0_i32_2 = arith.constant 0 : i32
    return %c0_i32, %c0_i32_0, %c0_i32_1 : i32, i32, i32
  }
  func.func @transform_4(%arg0: i32) -> (i32, i32, i32) {
    %c0_i32 = arith.constant 0 : i32
    %c0_i32_0 = arith.constant 0 : i32
    %c0_i32_1 = arith.constant 0 : i32
    %c0_i32_2 = arith.constant 0 : i32
    return %c0_i32, %c0_i32_0, %c0_i32_1 : i32, i32, i32
  }
  func.func @transform_5(%arg0: i32) -> (i32, i32, i32) {
    %c0_i32 = arith.constant 0 : i32
    %c0_i32_0 = arith.constant 0 : i32
    %c0_i32_1 = arith.constant 0 : i32
    %c0_i32_2 = arith.constant 0 : i32
    return %c0_i32, %c0_i32_0, %c0_i32_1 : i32, i32, i32
  }
  func.func @transform_6(%arg0: i32) -> (i32, i32, i32) {
    %c0_i32 = arith.constant 0 : i32
    %c0_i32_0 = arith.constant 0 : i32
    %c0_i32_1 = arith.constant 0 : i32
    %c0_i32_2 = arith.constant 0 : i32
    return %c0_i32, %c0_i32_0, %c0_i32_1 : i32, i32, i32
  }
  func.func @transform_7(%arg0: i32) -> (i32, i32, i32) {
    %c0_i32 = arith.constant 0 : i32
    %c0_i32_0 = arith.constant 0 : i32
    %c0_i32_1 = arith.constant 0 : i32
    %c0_i32_2 = arith.constant 0 : i32
    return %c0_i32, %c0_i32_0, %c0_i32_1 : i32, i32, i32
  }
  func.func @transform_8(%arg0: i32) -> (i32, i32, i32) {
    %c0_i32 = arith.constant 0 : i32
    %c0_i32_0 = arith.constant 0 : i32
    %c0_i32_1 = arith.constant 0 : i32
    %c0_i32_2 = arith.constant 0 : i32
    return %c0_i32, %c0_i32_0, %c0_i32_1 : i32, i32, i32
  }
  func.func @transform_9(%arg0: i32) -> (i32, i32, i32) {
    %c0_i32 = arith.constant 0 : i32
    %c0_i32_0 = arith.constant 0 : i32
    %c0_i32_1 = arith.constant 0 : i32
    %c0_i32_2 = arith.constant 0 : i32
    return %c0_i32, %c0_i32_0, %c0_i32_1 : i32, i32, i32
  }
  func.func @transform_10(%arg0: i32) -> (i32, i32) {
    %c0_i32 = arith.constant 0 : i32
    %c0_i32_0 = arith.constant 0 : i32
    %c0_i32_1 = arith.constant 0 : i32
    return %c0_i32, %c0_i32_0 : i32, i32
  }
  func.func @transform_11(%arg0: i32) -> (i32, i32) {
    %c0_i32 = arith.constant 0 : i32
    %c0_i32_0 = arith.constant 0 : i32
    %c0_i32_1 = arith.constant 0 : i32
    return %c0_i32, %c0_i32_0 : i32, i32
  }
  func.func @transform_12(%arg0: i32) -> (i32, i32) {
    %c0_i32 = arith.constant 0 : i32
    %c0_i32_0 = arith.constant 0 : i32
    %c0_i32_1 = arith.constant 0 : i32
    return %c0_i32, %c0_i32_0 : i32, i32
  }
  func.func @transform_13(%arg0: i32) -> (i32, i32) {
    %c0_i32 = arith.constant 0 : i32
    %c0_i32_0 = arith.constant 0 : i32
    %c0_i32_1 = arith.constant 0 : i32
    return %c0_i32, %c0_i32_0 : i32, i32
  }
  func.func @transform_14(%arg0: i32) -> (i32, i32) {
    %c0_i32 = arith.constant 0 : i32
    %c0_i32_0 = arith.constant 0 : i32
    %c0_i32_1 = arith.constant 0 : i32
    return %c0_i32, %c0_i32_0 : i32, i32
  }
  func.func @transform_15(%arg0: i32) -> (i32, i32) {
    %c0_i32 = arith.constant 0 : i32
    %c0_i32_0 = arith.constant 0 : i32
    %c0_i32_1 = arith.constant 0 : i32
    return %c0_i32, %c0_i32_0 : i32, i32
  }
  func.func @transform_16(%arg0: i32) -> (i32, i32) {
    %c0_i32 = arith.constant 0 : i32
    %c0_i32_0 = arith.constant 0 : i32
    %c0_i32_1 = arith.constant 0 : i32
    return %c0_i32, %c0_i32_0 : i32, i32
  }
  func.func @transform_17(%arg0: i32) -> (i32, i32, i32) {
    %c0_i32 = arith.constant 0 : i32
    %c0_i32_0 = arith.constant 0 : i32
    %c0_i32_1 = arith.constant 0 : i32
    return %arg0, %c0_i32, %c0_i32_0 : i32, i32, i32
  }
}

</mosaic_0001>

<llo_original>
// kernel: tile.93
$region0: #{tile.93}
  #allocation0 [shape = 's32[1]{0}', space=sflag, size = 0x4, scoped, tag = 'scoped memory for tile.93']
  %s0 = inlined_call_operand.vmem [shape: f32[16], index: 0, kind: input, shape index: {}]
  %s1 = inlined_call_operand.vmem [shape: f32[16,16], index: 1, kind: output, shape index: {}]
  // Predicated region
  $region2: #{tile.93} parent=0 // pred_check
    _
  $region3: #{tile.93} parent=0 // pred_check_branch
    %3 = sbr.rel (0) target = $region5
  $region4: #{tile.93} parent=0 // pred_region
    _
  $region5: #{tile.93} parent=0 // pred_fallthru
    _
  %v4 = vld [vmem:[%s0] ss:$0 sm:$0xff]
  %5 = vst [vmem:[%s1] sm:$0xff] %v4
  %s6 = scalar_lea.vmem %s1, 8
  %7 = vst [vmem:[%s6] sm:$0xff] %v4

// kernel: tile.102
$region0: #{tile.102}
  %s0 = inlined_call_operand.vmem [shape: f32[16,16], index: 0, kind: input, shape index: {}]
  %s1 = inlined_call_operand.vmem [shape: f32[1,256], index: 1, kind: output, shape index: {}]
  $region1: #{tile.102} parent=0
    #allocation0 [shape = 'u8[8192]{0}', space=vmem, size = 0x2000, scoped, tag = 'scoped mem for output reshape']
    %s2 = smov 3
    %v3 = vld [vmem:[%s0] ss:$8 sm:%s2]
    %vm4 = vcmask 130048
    %5 = vst.msk [vmem:[#allocation0] ss:$8 sm:$0x3] %vm4, %v3
    %s6 = scalar_lea.vmem %s0, 7
    %s7 = smov 3
    %v8 = vld [vmem:[%s6] ss:$8 sm:%s7]
    %9 = vrot.lane.b32.xlu0 %v8, 112
    %v10 = vpop.permute.xlu0 %9
    %vm11 = vcmask 1048448
    %12 = vst.msk [vmem:[#allocation0] ss:$8 sm:$0x3] %vm11, %v10
    %s13 = scalar_lea.vmem %s0, 6
    %s14 = smov 3
    %v15 = vld [vmem:[%s13] ss:$8 sm:%s14]
    %16 = vrot.lane.b32.xlu0 %v15, 96
    %v17 = vpop.permute.xlu0 %16
    %vm18 = vcmask 917248
    %19 = vst.msk [vmem:[#allocation0] ss:$8 sm:$0x3] %vm18, %v17
    %s20 = scalar_lea.vmem %s0, 5
    %s21 = smov 3
    %v22 = vld [vmem:[%s20] ss:$8 sm:%s21]
    %23 = vrot.lane.b32.xlu0 %v22, 80
    %v24 = vpop.permute.xlu0 %23
    %vm25 = vcmask 786048
    %26 = vst.msk [vmem:[#allocation0] ss:$8 sm:$0x3] %vm25, %v24
    %s27 = scalar_lea.vmem %s0, 4
    %s28 = smov 3
    %v29 = vld [vmem:[%s27] ss:$8 sm:%s28]
    %30 = vrot.lane.b32.xlu0 %v29, 64
    %v31 = vpop.permute.xlu0 %30
    %vm32 = vcmask 654848
    %33 = vst.msk [vmem:[#allocation0] ss:$8 sm:$0x3] %vm32, %v31
    %s34 = scalar_lea.vmem %s0, 3
    %s35 = smov 3
    %v36 = vld [vmem:[%s34] ss:$8 sm:%s35]
    %37 = vrot.lane.b32.xlu0 %v36, 48
    %v38 = vpop.permute.xlu0 %37
    %vm39 = vcmask 523648
    %40 = vst.msk [vmem:[#allocation0] ss:$8 sm:$0x3] %vm39, %v38
    %s41 = scalar_lea.vmem %s0, 2
    %s42 = smov 3
    %v43 = vld [vmem:[%s41] ss:$8 sm:%s42]
    %44 = vrot.lane.b32.xlu0 %v43, 32
    %v45 = vpop.permute.xlu0 %44
    %vm46 = vcmask 392448
    %47 = vst.msk [vmem:[#allocation0] ss:$8 sm:$0x3] %vm46, %v45
    %s48 = scalar_lea.vmem %s0, 1
    %s49 = smov 3
    %v50 = vld [vmem:[%s48] ss:$8 sm:%s49]
    %51 = vrot.lane.b32.xlu0 %v50, 16
    %v52 = vpop.permute.xlu0 %51
    %vm53 = vcmask 261248
    %54 = vst.msk [vmem:[#allocation0] ss:$8 sm:$0x3] %vm53, %v52
    %s56 = sshllo.u32 0, 1
    %v58 = vld [vmem:[#allocation0] sm:%s56]
    %s59 = sshllo.u32 0, 1
    %60 = vst [vmem:[%s1] sm:%s59] %v58
    %s61 = scalar_lea.vmem [#allocation0], 8
    %v62 = vld [vmem:[%s61] sm:%s56]
    %s63 = sshllo.u32 0, 1
    %s64 = scalar_lea.vmem %s1, 1
    %65 = vst [vmem:[%s64] sm:%s63] %v62

// kernel: res_unet_block_outermost.1
$region0: #{res_unet_block_outermost.1}
  #allocation0 [shape = 'u32[]', space=smem, size = 0x4, offset = 0x4, fixed_abs, tag = 'smem constant byte address 0x4 - core index']
  #allocation1 [shape = 'u32[144,128]{1,0:T(1,128)}', space=vmem, size = 0x12000, scoped, tag = 'internal scratch']
  %s0 = inlined_call_operand.vmem [shape: f32[2,4,8,256], index: 0, kind: input, shape index: {}]
  %s1 = inlined_call_operand.vmem [shape: bf16[16,72], index: 1, kind: input, shape index: {}]
  %s2 = inlined_call_operand.vmem [shape: bf16[2,16,144], index: 2, kind: input, shape index: {}]
  %s3 = inlined_call_operand.vmem [shape: bf16[2,16,144], index: 3, kind: input, shape index: {}]
  %s4 = inlined_call_operand.vmem [shape: bf16[2,16,16], index: 4, kind: input, shape index: {}]
  %s5 = inlined_call_operand.vmem [shape: bf16[2,16,64], index: 5, kind: input, shape index: {}]
  %s6 = inlined_call_operand.vmem [shape: f32[2,1,16], index: 6, kind: input, shape index: {}]
  %s7 = inlined_call_operand.vmem [shape: f32[2,16,1], index: 7, kind: input, shape index: {}]
  %s8 = inlined_call_operand.vmem [shape: f32[2,3,256], index: 8, kind: input, shape index: {}]
  %s9 = inlined_call_operand.vmem [shape: f32[2,3,256], index: 9, kind: input, shape index: {}]
  %s10 = inlined_call_operand.vmem [shape: bf16[16,16], index: 10, kind: input, shape index: {}]
  %s11 = inlined_call_operand.vmem [shape: bf16[32,288], index: 11, kind: input, shape index: {}]
  %s12 = inlined_call_operand.vmem [shape: f32[72,256], index: 12, kind: input, shape index: {}]
  %s13 = inlined_call_operand.vmem [shape: f32[144,256], index: 13, kind: input, shape index: {}]
  %s14 = inlined_call_operand.vmem [shape: f32[288,256], index: 14, kind: input, shape index: {}]
  %s15 = inlined_call_operand.vmem [shape: f32[256,16], index: 15, kind: input, shape index: {}]
  %s16 = inlined_call_operand.vmem [shape: f32[16,256], index: 16, kind: input, shape index: {}]
  %s17 = inlined_call_operand.vmem [shape: f32[2,32,256], index: 17, kind: output, shape index: {}]
  %s18 = sld [smem:[#allocation0]]
  $region101: #{res_unet_block_outermost.1} parent=0
    _
  %s20 = ssub.s32 1, %s18
  %s21 = scalar_select 0, %s20, %s18
  loop: start=0, step=1, limit=4
  $region2: #{res_unet_block_outermost.1} parent=0 // loop_pre_header
    _
  $region3: #{res_unet_block_outermost.1} parent=0 // loop_header
    %s23 = sphi 0, %s27
    %p24 = scmp.ge.s32.totalorder %s23, 4
    %s33 = sphi 0, %s35
    %s36 = sphi 0, %s33
    %s37 = sphi 0, %s36
    %s53 = sphi 0, %s37
    %s57 = sphi 0, %s57
    %s59 = sphi 0, %s57
    %s60 = sphi 0, %s59
    %s74 = sphi 0, %s60
    %s78 = sphi 0, %s78
    %s80 = sphi 0, %s78
    %s81 = sphi 0, %s80
    %s95 = sphi 0, %s81
    %s99 = sphi 0, %s99
    %s101 = sphi 0, %s99
    %s102 = sphi 0, %s101
    %s116 = sphi 0, %s102
    %s120 = sphi 0, %s120
    %s122 = sphi 0, %s120
    %s123 = sphi 0, %s122
    %s137 = sphi 0, %s123
    %s141 = sphi 0, %s141
    %s143 = sphi 0, %s141
    %s144 = sphi 0, %s143
    %s158 = sphi 0, %s144
    %s162 = sphi 0, %s162
    %s164 = sphi 0, %s162
    %s165 = sphi 0, %s164
    %s179 = sphi 0, %s165
    %s183 = sphi 0, %s183
    %s185 = sphi 0, %s183
    %s186 = sphi 0, %s185
    %s200 = sphi 0, %s186
    %s204 = sphi 0, %s204
    %s206 = sphi 0, %s204
    %s207 = sphi 0, %s206
    %s221 = sphi 0, %s207
    %s225 = sphi 0, %s225
    %s227 = sphi 0, %s225
    %s228 = sphi 0, %s227
    %s242 = sphi 0, %s228
    %s246 = sphi 0, %s246
    %s248 = sphi 0, %s246
    %s249 = sphi 0, %s248
    %s263 = sphi 0, %s249
    %s267 = sphi 0, %s267
    %s269 = sphi 0, %s267
    %s270 = sphi 0, %s269
    %s284 = sphi 0, %s270
    %s288 = sphi 0, %s288
    %s290 = sphi 0, %s288
    %s291 = sphi 0, %s290
    %s305 = sphi 0, %s291
    %s309 = sphi 0, %s309
    %s311 = sphi 0, %s309
    %s312 = sphi 0, %s311
    %s326 = sphi 0, %s312
    %s330 = sphi 0, %s330
    %s332 = sphi 0, %s330
    %s333 = sphi 0, %s332
    %s347 = sphi 0, %s333
    %s351 = sphi 0, %s351
    %s353 = sphi 0, %s351
    %s354 = sphi 0, %s353
    %s368 = sphi 0, %s354
    %s372 = sphi 0, %s372
    %s374 = sphi 0, %s372
    %s375 = sphi 0, %s374
    %s389 = sphi 0, %s375
    %s395 = sphi 0, %s397
    %s398 = sphi 0, %s395
    %s399 = sphi 0, %s398
    %s415 = sphi 0, %s399
  $region4: #{res_unet_block_outermost.1} parent=0 // loop_header_branch
    %26 = sbr.rel (%p24) target = $region8
  $region5: #{res_unet_block_outermost.1} parent=0 // loop_body
    %s28 = ssub.s32 %s23, 1
    %s29 = ssub.s32 %s23, 2
    %s30 = sadd.s32 %s23, 1
    %s31 = ssub.s32 %s23, %s30
    %p32 = scmp.eq.s32.totalorder %s31, 0
    %s34 = sadd.s32 %s33, 1
    %s35 = scalar_select %p32, %s33, %s34
    %p38 = pneg %p32
    %p39 = scmp.eq.s32.totalorder %s23, 1
    %p40 = por %p38, %p39
    %p41 = scmp.ne.s32.totalorder %s33, %s36
    %p42 = scmp.eq.s32.totalorder %s23, 0
    %p43 = por %p41, %p42
    %p44 = scmp.ne.s32.totalorder %s33, %s36
    %p45 = scmp.eq.s32.totalorder %s28, 1
    %p46 = por %p44, %p45
    %p47 = scmp.ne.s32.totalorder %s36, %s37
    %p48 = scmp.eq.s32.totalorder %s28, 0
    %p49 = por %p47, %p48
    %p50 = scmp.ne.s32.totalorder %s36, %s37
    %p51 = scmp.eq.s32.totalorder %s29, 1
    %p52 = por %p50, %p51
    %p54 = scmp.ne.s32.totalorder %s37, %s53
    %p55 = scmp.eq.s32.totalorder %s29, 0
    %p56 = por %p54, %p55
    %s58 = sadd.s32 %s57, 1
    %p61 = scmp.eq.s32.totalorder %s23, 1
    %p62 = scmp.ne.s32.totalorder %s57, %s59
    %p63 = scmp.eq.s32.totalorder %s23, 0
    %p64 = por %p62, %p63
    %p65 = scmp.ne.s32.totalorder %s57, %s59
    %p66 = scmp.eq.s32.totalorder %s28, 1
    %p67 = por %p65, %p66
    %p68 = scmp.ne.s32.totalorder %s59, %s60
    %p69 = scmp.eq.s32.totalorder %s28, 0
    %p70 = por %p68, %p69
    %p71 = scmp.ne.s32.totalorder %s59, %s60
    %p72 = scmp.eq.s32.totalorder %s29, 1
    %p73 = por %p71, %p72
    %p75 = scmp.ne.s32.totalorder %s60, %s74
    %p76 = scmp.eq.s32.totalorder %s29, 0
    %p77 = por %p75, %p76
    %s79 = sadd.s32 %s78, 1
    %p82 = scmp.eq.s32.totalorder %s23, 1
    %p83 = scmp.ne.s32.totalorder %s78, %s80
    %p84 = scmp.eq.s32.totalorder %s23, 0
    %p85 = por %p83, %p84
    %p86 = scmp.ne.s32.totalorder %s78, %s80
    %p87 = scmp.eq.s32.totalorder %s28, 1
    %p88 = por %p86, %p87
    %p89 = scmp.ne.s32.totalorder %s80, %s81
    %p90 = scmp.eq.s32.totalorder %s28, 0
    %p91 = por %p89, %p90
    %p92 = scmp.ne.s32.totalorder %s80, %s81
    %p93 = scmp.eq.s32.totalorder %s29, 1
    %p94 = por %p92, %p93
    %p96 = scmp.ne.s32.totalorder %s81, %s95
    %p97 = scmp.eq.s32.totalorder %s29, 0
    %p98 = por %p96, %p97
    %s100 = sadd.s32 %s99, 1
    %p103 = scmp.eq.s32.totalorder %s23, 1
    %p104 = scmp.ne.s32.totalorder %s99, %s101
    %p105 = scmp.eq.s32.totalorder %s23, 0
    %p106 = por %p104, %p105
    %p107 = scmp.ne.s32.totalorder %s99, %s101
    %p108 = scmp.eq.s32.totalorder %s28, 1
    %p109 = por %p107, %p108
    %p110 = scmp.ne.s32.totalorder %s101, %s102
    %p111 = scmp.eq.s32.totalorder %s28, 0
    %p112 = por %p110, %p111
    %p113 = scmp.ne.s32.totalorder %s101, %s102
    %p114 = scmp.eq.s32.totalorder %s29, 1
    %p115 = por %p113, %p114
    %p117 = scmp.ne.s32.totalorder %s102, %s116
    %p118 = scmp.eq.s32.totalorder %s29, 0
    %p119 = por %p117, %p118
    %s121 = sadd.s32 %s120, 1
    %p124 = scmp.eq.s32.totalorder %s23, 1
    %p125 = scmp.ne.s32.totalorder %s120, %s122
    %p126 = scmp.eq.s32.totalorder %s23, 0
    %p127 = por %p125, %p126
    %p128 = scmp.ne.s32.totalorder %s120, %s122
    %p129 = scmp.eq.s32.totalorder %s28, 1
    %p130 = por %p128, %p129
    %p131 = scmp.ne.s32.totalorder %s122, %s123
    %p132 = scmp.eq.s32.totalorder %s28, 0
    %p133 = por %p131, %p132
    %p134 = scmp.ne.s32.totalorder %s122, %s123
    %p135 = scmp.eq.s32.totalorder %s29, 1
    %p136 = por %p134, %p135
    %p138 = scmp.ne.s32.totalorder %s123, %s137
    %p139 = scmp.eq.s32.totalorder %s29, 0
    %p140 = por %p138, %p139
    %s142 = sadd.s32 %s141, 1
    %p145 = scmp.eq.s32.totalorder %s23, 1
    %p146 = scmp.ne.s32.totalorder %s141, %s143
    %p147 = scmp.eq.s32.totalorder %s23, 0
    %p148 = por %p146, %p147
    %p149 = scmp.ne.s32.totalorder %s141, %s143
    %p150 = scmp.eq.s32.totalorder %s28, 1
    %p151 = por %p149, %p150
    %p152 = scmp.ne.s32.totalorder %s143, %s144
    %p153 = scmp.eq.s32.totalorder %s28, 0
    %p154 = por %p152, %p153
    %p155 = scmp.ne.s32.totalorder %s143, %s144
    %p156 = scmp.eq.s32.totalorder %s29, 1
    %p157 = por %p155, %p156
    %p159 = scmp.ne.s32.totalorder %s144, %s158
    %p160 = scmp.eq.s32.totalorder %s29, 0
    %p161 = por %p159, %p160
    %s163 = sadd.s32 %s162, 1
    %p166 = scmp.eq.s32.totalorder %s23, 1
    %p167 = scmp.ne.s32.totalorder %s162, %s164
    %p168 = scmp.eq.s32.totalorder %s23, 0
    %p169 = por %p167, %p168
    %p170 = scmp.ne.s32.totalorder %s162, %s164
    %p171 = scmp.eq.s32.totalorder %s28, 1
    %p172 = por %p170, %p171
    %p173 = scmp.ne.s32.totalorder %s164, %s165
    %p174 = scmp.eq.s32.totalorder %s28, 0
    %p175 = por %p173, %p174
    %p176 = scmp.ne.s32.totalorder %s164, %s165
    %p177 = scmp.eq.s32.totalorder %s29, 1
    %p178 = por %p176, %p177
    %p180 = scmp.ne.s32.totalorder %s165, %s179
    %p181 = scmp.eq.s32.totalorder %s29, 0
    %p182 = por %p180, %p181
    %s184 = sadd.s32 %s183, 1
    %p187 = scmp.eq.s32.totalorder %s23, 1
    %p188 = scmp.ne.s32.totalorder %s183, %s185
    %p189 = scmp.eq.s32.totalorder %s23, 0
    %p190 = por %p188, %p189
    %p191 = scmp.ne.s32.totalorder %s183, %s185
    %p192 = scmp.eq.s32.totalorder %s28, 1
    %p193 = por %p191, %p192
    %p194 = scmp.ne.s32.totalorder %s185, %s186
    %p195 = scmp.eq.s32.totalorder %s28, 0
    %p196 = por %p194, %p195
    %p197 = scmp.ne.s32.totalorder %s185, %s186
    %p198 = scmp.eq.s32.totalorder %s29, 1
    %p199 = por %p197, %p198
    %p201 = scmp.ne.s32.totalorder %s186, %s200
    %p202 = scmp.eq.s32.totalorder %s29, 0
    %p203 = por %p201, %p202
    %s205 = sadd.s32 %s204, 1
    %p208 = scmp.eq.s32.totalorder %s23, 1
    %p209 = scmp.ne.s32.totalorder %s204, %s206
    %p210 = scmp.eq.s32.totalorder %s23, 0
    %p211 = por %p209, %p210
    %p212 = scmp.ne.s32.totalorder %s204, %s206
    %p213 = scmp.eq.s32.totalorder %s28, 1
    %p214 = por %p212, %p213
    %p215 = scmp.ne.s32.totalorder %s206, %s207
    %p216 = scmp.eq.s32.totalorder %s28, 0
    %p217 = por %p215, %p216
    %p218 = scmp.ne.s32.totalorder %s206, %s207
    %p219 = scmp.eq.s32.totalorder %s29, 1
    %p220 = por %p218, %p219
    %p222 = scmp.ne.s32.totalorder %s207, %s221
    %p223 = scmp.eq.s32.totalorder %s29, 0
    %p224 = por %p222, %p223
    %s226 = sadd.s32 %s225, 1
    %p229 = scmp.eq.s32.totalorder %s23, 1
    %p230 = scmp.ne.s32.totalorder %s225, %s227
    %p231 = scmp.eq.s32.totalorder %s23, 0
    %p232 = por %p230, %p231
    %p233 = scmp.ne.s32.totalorder %s225, %s227
    %p234 = scmp.eq.s32.totalorder %s28, 1
    %p235 = por %p233, %p234
    %p236 = scmp.ne.s32.totalorder %s227, %s228
    %p237 = scmp.eq.s32.totalorder %s28, 0
    %p238 = por %p236, %p237
    %p239 = scmp.ne.s32.totalorder %s227, %s228
    %p240 = scmp.eq.s32.totalorder %s29, 1
    %p241 = por %p239, %p240
    %p243 = scmp.ne.s32.totalorder %s228, %s242
    %p244 = scmp.eq.s32.totalorder %s29, 0
    %p245 = por %p243, %p244
    %s247 = sadd.s32 %s246, 1
    %p250 = scmp.eq.s32.totalorder %s23, 1
    %p251 = scmp.ne.s32.totalorder %s246, %s248
    %p252 = scmp.eq.s32.totalorder %s23, 0
    %p253 = por %p251, %p252
    %p254 = scmp.ne.s32.totalorder %s246, %s248
    %p255 = scmp.eq.s32.totalorder %s28, 1
    %p256 = por %p254, %p255
    %p257 = scmp.ne.s32.totalorder %s248, %s249
    %p258 = scmp.eq.s32.totalorder %s28, 0
    %p259 = por %p257, %p258
    %p260 = scmp.ne.s32.totalorder %s248, %s249
    %p261 = scmp.eq.s32.totalorder %s29, 1
    %p262 = por %p260, %p261
    %p264 = scmp.ne.s32.totalorder %s249, %s263
    %p265 = scmp.eq.s32.totalorder %s29, 0
    %p266 = por %p264, %p265
    %s268 = sadd.s32 %s267, 1
    %p271 = scmp.eq.s32.totalorder %s23, 1
    %p272 = scmp.ne.s32.totalorder %s267, %s269
    %p273 = scmp.eq.s32.totalorder %s23, 0
    %p274 = por %p272, %p273
    %p275 = scmp.ne.s32.totalorder %s267, %s269
    %p276 = scmp.eq.s32.totalorder %s28, 1
    %p277 = por %p275, %p276
    %p278 = scmp.ne.s32.totalorder %s269, %s270
    %p279 = scmp.eq.s32.totalorder %s28, 0
    %p280 = por %p278, %p279
    %p281 = scmp.ne.s32.totalorder %s269, %s270
    %p282 = scmp.eq.s32.totalorder %s29, 1
    %p283 = por %p281, %p282
    %p285 = scmp.ne.s32.totalorder %s270, %s284
    %p286 = scmp.eq.s32.totalorder %s29, 0
    %p287 = por %p285, %p286
    %s289 = sadd.s32 %s288, 1
    %p292 = scmp.eq.s32.totalorder %s23, 1
    %p293 = scmp.ne.s32.totalorder %s288, %s290
    %p294 = scmp.eq.s32.totalorder %s23, 0
    %p295 = por %p293, %p294
    %p296 = scmp.ne.s32.totalorder %s288, %s290
    %p297 = scmp.eq.s32.totalorder %s28, 1
    %p298 = por %p296, %p297
    %p299 = scmp.ne.s32.totalorder %s290, %s291
    %p300 = scmp.eq.s32.totalorder %s28, 0
    %p301 = por %p299, %p300
    %p302 = scmp.ne.s32.totalorder %s290, %s291
    %p303 = scmp.eq.s32.totalorder %s29, 1
    %p304 = por %p302, %p303
    %p306 = scmp.ne.s32.totalorder %s291, %s305
    %p307 = scmp.eq.s32.totalorder %s29, 0
    %p308 = por %p306, %p307
    %s310 = sadd.s32 %s309, 1
    %p313 = scmp.eq.s32.totalorder %s23, 1
    %p314 = scmp.ne.s32.totalorder %s309, %s311
    %p315 = scmp.eq.s32.totalorder %s23, 0
    %p316 = por %p314, %p315
    %p317 = scmp.ne.s32.totalorder %s309, %s311
    %p318 = scmp.eq.s32.totalorder %s28, 1
    %p319 = por %p317, %p318
    %p320 = scmp.ne.s32.totalorder %s311, %s312
    %p321 = scmp.eq.s32.totalorder %s28, 0
    %p322 = por %p320, %p321
    %p323 = scmp.ne.s32.totalorder %s311, %s312
    %p324 = scmp.eq.s32.totalorder %s29, 1
    %p325 = por %p323, %p324
    %p327 = scmp.ne.s32.totalorder %s312, %s326
    %p328 = scmp.eq.s32.totalorder %s29, 0
    %p329 = por %p327, %p328
    %s331 = sadd.s32 %s330, 1
    %p334 = scmp.eq.s32.totalorder %s23, 1
    %p335 = scmp.ne.s32.totalorder %s330, %s332
    %p336 = scmp.eq.s32.totalorder %s23, 0
    %p337 = por %p335, %p336
    %p338 = scmp.ne.s32.totalorder %s330, %s332
    %p339 = scmp.eq.s32.totalorder %s28, 1
    %p340 = por %p338, %p339
    %p341 = scmp.ne.s32.totalorder %s332, %s333
    %p342 = scmp.eq.s32.totalorder %s28, 0
    %p343 = por %p341, %p342
    %p344 = scmp.ne.s32.totalorder %s332, %s333
    %p345 = scmp.eq.s32.totalorder %s29, 1
    %p346 = por %p344, %p345
    %p348 = scmp.ne.s32.totalorder %s333, %s347
    %p349 = scmp.eq.s32.totalorder %s29, 0
    %p350 = por %p348, %p349
    %s352 = sadd.s32 %s351, 1
    %p355 = scmp.eq.s32.totalorder %s23, 1
    %p356 = scmp.ne.s32.totalorder %s351, %s353
    %p357 = scmp.eq.s32.totalorder %s23, 0
    %p358 = por %p356, %p357
    %p359 = scmp.ne.s32.totalorder %s351, %s353
    %p360 = scmp.eq.s32.totalorder %s28, 1
    %p361 = por %p359, %p360
    %p362 = scmp.ne.s32.totalorder %s353, %s354
    %p363 = scmp.eq.s32.totalorder %s28, 0
    %p364 = por %p362, %p363
    %p365 = scmp.ne.s32.totalorder %s353, %s354
    %p366 = scmp.eq.s32.totalorder %s29, 1
    %p367 = por %p365, %p366
    %p369 = scmp.ne.s32.totalorder %s354, %s368
    %p370 = scmp.eq.s32.totalorder %s29, 0
    %p371 = por %p369, %p370
    %s373 = sadd.s32 %s372, 1
    %p376 = scmp.eq.s32.totalorder %s23, 1
    %p377 = scmp.ne.s32.totalorder %s372, %s374
    %p378 = scmp.eq.s32.totalorder %s23, 0
    %p379 = por %p377, %p378
    %p380 = scmp.ne.s32.totalorder %s372, %s374
    %p381 = scmp.eq.s32.totalorder %s28, 1
    %p382 = por %p380, %p381
    %p383 = scmp.ne.s32.totalorder %s374, %s375
    %p384 = scmp.eq.s32.totalorder %s28, 0
    %p385 = por %p383, %p384
    %p386 = scmp.ne.s32.totalorder %s374, %s375
    %p387 = scmp.eq.s32.totalorder %s29, 1
    %p388 = por %p386, %p387
    %p390 = scmp.ne.s32.totalorder %s375, %s389
    %p391 = scmp.eq.s32.totalorder %s29, 0
    %p392 = por %p390, %p391
    %s393 = ssub.s32 %s23, %s30
    %p394 = scmp.eq.s32.totalorder %s393, 0
    %s396 = sadd.s32 %s395, 1
    %s397 = scalar_select %p394, %s395, %s396
    %p400 = pneg %p394
    %p401 = scmp.eq.s32.totalorder %s23, 1
    %p402 = por %p400, %p401
    %p403 = scmp.ne.s32.totalorder %s395, %s398
    %p404 = scmp.eq.s32.totalorder %s23, 0
    %p405 = por %p403, %p404
    %p406 = scmp.ne.s32.totalorder %s395, %s398
    %p407 = scmp.eq.s32.totalorder %s28, 1
    %p408 = por %p406, %p407
    %p409 = scmp.ne.s32.totalorder %s398, %s399
    %p410 = scmp.eq.s32.totalorder %s28, 0
    %p411 = por %p409, %p410
    %p412 = scmp.ne.s32.totalorder %s398, %s399
    %p413 = scmp.eq.s32.totalorder %s29, 1
    %p414 = por %p412, %p413
    %p416 = scmp.ne.s32.totalorder %s399, %s415
    %p417 = scmp.eq.s32.totalorder %s29, 0
    %p418 = por %p416, %p417
    %p419 = scmp.le.s32.totalorder 1, %s23
    %p420 = scmp.lt.s32.totalorder %s23, 3
    %p421 = pnand %p419, %p420
    %p422 = pneg %p421
    // Predicated region
    $region9: #{res_unet_block_outermost.1} parent=5 // pred_check
      _
    $region10: #{res_unet_block_outermost.1} parent=5 // pred_check_branch
      %424 = sbr.rel (%p421) target = $region12
    $region11: #{res_unet_block_outermost.1} parent=5 // pred_region
      %s425 = ssub.s32 %s23, 1
      // Predicated region
      $region13: #{res_unet_block_outermost.1} parent=11 // pred_check
        %p426 = pneg %p70
      $region14: #{res_unet_block_outermost.1} parent=11 // pred_check_branch
        %428 = sbr.rel (%p426) target = $region16
      $region15: #{res_unet_block_outermost.1} parent=11 // pred_region
        _
      $region16: #{res_unet_block_outermost.1} parent=11 // pred_fallthru
        _
      // Predicated region
      $region17: #{res_unet_block_outermost.1} parent=11 // pred_check
        %p429 = pneg %p91
      $region18: #{res_unet_block_outermost.1} parent=11 // pred_check_branch
        %431 = sbr.rel (%p429) target = $region20
      $region19: #{res_unet_block_outermost.1} parent=11 // pred_region
        _
      $region20: #{res_unet_block_outermost.1} parent=11 // pred_fallthru
        _
      // Predicated region
      $region21: #{res_unet_block_outermost.1} parent=11 // pred_check
        %p432 = pneg %p112
      $region22: #{res_unet_block_outermost.1} parent=11 // pred_check_branch
        %434 = sbr.rel (%p432) target = $region24
      $region23: #{res_unet_block_outermost.1} parent=11 // pred_region
        _
      $region24: #{res_unet_block_outermost.1} parent=11 // pred_fallthru
        _
      // Predicated region
      $region25: #{res_unet_block_outermost.1} parent=11 // pred_check
        %p435 = pneg %p133
      $region26: #{res_unet_block_outermost.1} parent=11 // pred_check_branch
        %437 = sbr.rel (%p435) target = $region28
      $region27: #{res_unet_block_outermost.1} parent=11 // pred_region
        _
      $region28: #{res_unet_block_outermost.1} parent=11 // pred_fallthru
        _
      // Predicated region
      $region29: #{res_unet_block_outermost.1} parent=11 // pred_check
        %p438 = pneg %p154
      $region30: #{res_unet_block_outermost.1} parent=11 // pred_check_branch
        %440 = sbr.rel (%p438) target = $region32
      $region31: #{res_unet_block_outermost.1} parent=11 // pred_region
        _
      $region32: #{res_unet_block_outermost.1} parent=11 // pred_fallthru
        _
      // Predicated region
      $region33: #{res_unet_block_outermost.1} parent=11 // pred_check
        %p441 = pneg %p175
      $region34: #{res_unet_block_outermost.1} parent=11 // pred_check_branch
        %443 = sbr.rel (%p441) target = $region36
      $region35: #{res_unet_block_outermost.1} parent=11 // pred_region
        _
      $region36: #{res_unet_block_outermost.1} parent=11 // pred_fallthru
        _
      // Predicated region
      $region37: #{res_unet_block_outermost.1} parent=11 // pred_check
        %p444 = pneg %p196
      $region38: #{res_unet_block_outermost.1} parent=11 // pred_check_branch
        %446 = sbr.rel (%p444) target = $region40
      $region39: #{res_unet_block_outermost.1} parent=11 // pred_region
        _
      $region40: #{res_unet_block_outermost.1} parent=11 // pred_fallthru
        _
      // Predicated region
      $region41: #{res_unet_block_outermost.1} parent=11 // pred_check
        %p447 = pneg %p217
      $region42: #{res_unet_block_outermost.1} parent=11 // pred_check_branch
        %449 = sbr.rel (%p447) target = $region44
      $region43: #{res_unet_block_outermost.1} parent=11 // pred_region
        _
      $region44: #{res_unet_block_outermost.1} parent=11 // pred_fallthru
        _
      // Predicated region
      $region45: #{res_unet_block_outermost.1} parent=11 // pred_check
        %p450 = pneg %p238
      $region46: #{res_unet_block_outermost.1} parent=11 // pred_check_branch
        %452 = sbr.rel (%p450) target = $region48
      $region47: #{res_unet_block_outermost.1} parent=11 // pred_region
        _
      $region48: #{res_unet_block_outermost.1} parent=11 // pred_fallthru
        _
      // Predicated region
      $region49: #{res_unet_block_outermost.1} parent=11 // pred_check
        %p453 = pneg %p259
      $region50: #{res_unet_block_outermost.1} parent=11 // pred_check_branch
        %455 = sbr.rel (%p453) target = $region52
      $region51: #{res_unet_block_outermost.1} parent=11 // pred_region
        _
      $region52: #{res_unet_block_outermost.1} parent=11 // pred_fallthru
        _
      // Predicated region
      $region53: #{res_unet_block_outermost.1} parent=11 // pred_check
        %p456 = pneg %p280
      $region54: #{res_unet_block_outermost.1} parent=11 // pred_check_branch
        %458 = sbr.rel (%p456) target = $region56
      $region55: #{res_unet_block_outermost.1} parent=11 // pred_region
        _
      $region56: #{res_unet_block_outermost.1} parent=11 // pred_fallthru
        _
      // Predicated region
      $region57: #{res_unet_block_outermost.1} parent=11 // pred_check
        %p459 = pneg %p301
      $region58: #{res_unet_block_outermost.1} parent=11 // pred_check_branch
        %461 = sbr.rel (%p459) target = $region60
      $region59: #{res_unet_block_outermost.1} parent=11 // pred_region
        _
      $region60: #{res_unet_block_outermost.1} parent=11 // pred_fallthru
        _
      // Predicated region
      $region61: #{res_unet_block_outermost.1} parent=11 // pred_check
        %p462 = pneg %p322
      $region62: #{res_unet_block_outermost.1} parent=11 // pred_check_branch
        %464 = sbr.rel (%p462) target = $region64
      $region63: #{res_unet_block_outermost.1} parent=11 // pred_region
        _
      $region64: #{res_unet_block_outermost.1} parent=11 // pred_fallthru
        _
      // Predicated region
      $region65: #{res_unet_block_outermost.1} parent=11 // pred_check
        %p465 = pneg %p343
      $region66: #{res_unet_block_outermost.1} parent=11 // pred_check_branch
        %467 = sbr.rel (%p465) target = $region68
      $region67: #{res_unet_block_outermost.1} parent=11 // pred_region
        _
      $region68: #{res_unet_block_outermost.1} parent=11 // pred_fallthru
        _
      // Predicated region
      $region69: #{res_unet_block_outermost.1} parent=11 // pred_check
        %p468 = pneg %p364
      $region70: #{res_unet_block_outermost.1} parent=11 // pred_check_branch
        %470 = sbr.rel (%p468) target = $region72
      $region71: #{res_unet_block_outermost.1} parent=11 // pred_region
        _
      $region72: #{res_unet_block_outermost.1} parent=11 // pred_fallthru
        _
      // Predicated region
      $region73: #{res_unet_block_outermost.1} parent=11 // pred_check
        %p471 = pneg %p385
      $region74: #{res_unet_block_outermost.1} parent=11 // pred_check_branch
        %473 = sbr.rel (%p471) target = $region76
      $region75: #{res_unet_block_outermost.1} parent=11 // pred_region
        _
      $region76: #{res_unet_block_outermost.1} parent=11 // pred_fallthru
        _
    $region12: #{res_unet_block_outermost.1} parent=5 // pred_fallthru
      _
    %p474 = scmp.lt.s32.totalorder %s23, 2
    // Predicated region
    $region77: #{res_unet_block_outermost.1} parent=5 // pred_check
      %p475 = pneg %p474
    $region78: #{res_unet_block_outermost.1} parent=5 // pred_check_branch
      %477 = sbr.rel (%p475) target = $region80
    $region79: #{res_unet_block_outermost.1} parent=5 // pred_region
      // Predicated region
      $region81: #{res_unet_block_outermost.1} parent=79 // pred_check
        %p478 = pneg %p43
      $region82: #{res_unet_block_outermost.1} parent=79 // pred_check_branch
        %480 = sbr.rel (%p478) target = $region84
      $region83: #{res_unet_block_outermost.1} parent=79 // pred_region
        %p481 = scmp.lt.s32.totalorder %s23, 1
        %s482 = scalar_select %p481, %s23, 1
        %s483 = smul.addr %s482, 8
        %s484 = smul.addr %s483, 8
        %s485 = scalar_lea.vmem %s0, %s484
      $region84: #{res_unet_block_outermost.1} parent=79 // pred_fallthru
        _
    $region80: #{res_unet_block_outermost.1} parent=5 // pred_fallthru
      _
    %p486 = scmp.le.s32.totalorder 1, %s23
    %p487 = scmp.lt.s32.totalorder %s23, 3
    %p488 = pnand %p486, %p487
    %p489 = pneg %p488
    // Predicated region
    $region85: #{res_unet_block_outermost.1} parent=5 // pred_check
      _
    $region86: #{res_unet_block_outermost.1} parent=5 // pred_check_branch
      %491 = sbr.rel (%p488) target = $region88
    $region87: #{res_unet_block_outermost.1} parent=5 // pred_region
      %s492 = ssub.s32 %s23, 1
      %p493 = scmp.lt.s32.totalorder %s28, 1
      %s494 = scalar_select %p493, %s28, 1
      %s495 = smul.addr %s494, 8
      %s496 = smul.addr %s495, 8
      %s497 = scalar_lea.vmem %s0, %s496
      %p498 = pneg %p49
      %p499 = pneg %p46
      %p500 = pneg %p70
      %p501 = pneg %p67
      %p502 = pneg %p91
      %p503 = pneg %p88
      %p504 = pneg %p112
      %p505 = pneg %p109
      %p506 = pneg %p133
      %p507 = pneg %p130
      %p508 = pneg %p154
      %p509 = pneg %p151
      %p510 = pneg %p175
      %p511 = pneg %p172
      %p512 = pneg %p196
      %p513 = pneg %p193
      %p514 = pneg %p217
      %p515 = pneg %p214
      %p516 = pneg %p238
      %p517 = pneg %p235
      %p518 = pneg %p259
      %p519 = pneg %p256
      %p520 = pneg %p280
      %p521 = pneg %p277
      %p522 = pneg %p301
      %p523 = pneg %p298
      %p524 = pneg %p322
      %p525 = pneg %p319
      %p526 = pneg %p343
      %p527 = pneg %p340
      %p528 = pneg %p364
      %p529 = pneg %p361
      %p530 = pneg %p385
      %p531 = pneg %p382
      %p532 = pneg %p411
      %p533 = pneg %p408
      %p534 = scmp.lt.s32.totalorder %s28, 1
      %s535 = scalar_select %p534, %s28, 1
      %s536 = smul.addr %s535, 8
      %s537 = smul.addr %s536, 8
      %s538 = scalar_lea.vmem %s17, %s537
      %p539 = scmp.lt.s32.totalorder %s28, 1
      %s540 = scalar_select %p539, %s28, 1
      %s541 = smul.addr %s540, 8
      %s542 = smul.addr %s541, 8
      %s543 = scalar_lea.vmem %s0, %s542
      %p544 = scmp.lt.s32.totalorder %s28, 1
      %s545 = scalar_select %p544, %s28, 1
      %s546 = smul.addr %s545, 8
      %s547 = smul.addr %s546, 8
      %s548 = scalar_lea.vmem %s17, %s547
      %v550 = vld [vmem:[%s15] sm:$0xff]
      %v551 = vld [vmem:[%s15 + $0x8] sm:$0xff]
      %v552 = vld [vmem:[%s15 + $0x10] sm:$0xff]
      %v553 = vld [vmem:[%s15 + $0x18] sm:$0xff]
      %v554 = vld [vmem:[%s15 + $0x20] sm:$0xff]
      %v555 = vld [vmem:[%s15 + $0x28] sm:$0xff]
      %v556 = vld [vmem:[%s15 + $0x30] sm:$0xff]
      %v557 = vld [vmem:[%s15 + $0x38] sm:$0xff]
      %v558 = vld [vmem:[%s15 + $0x40] sm:$0xff]
      %v559 = vld [vmem:[%s15 + $0x48] sm:$0xff]
      %v560 = vld [vmem:[%s15 + $0x50] sm:$0xff]
      %v561 = vld [vmem:[%s15 + $0x58] sm:$0xff]
      %v562 = vld [vmem:[%s15 + $0x60] sm:$0xff]
      %v563 = vld [vmem:[%s15 + $0x68] sm:$0xff]
      %v564 = vld [vmem:[%s15 + $0x70] sm:$0xff]
      %v565 = vld [vmem:[%s15 + $0x78] sm:$0xff]
      %v566 = vld [vmem:[%s15 + $0x80] sm:$0xff]
      %v567 = vld [vmem:[%s15 + $0x88] sm:$0xff]
      %v568 = vld [vmem:[%s15 + $0x90] sm:$0xff]
      %v569 = vld [vmem:[%s15 + $0x98] sm:$0xff]
      %v570 = vld [vmem:[%s15 + $0xa0] sm:$0xff]
      %v571 = vld [vmem:[%s15 + $0xa8] sm:$0xff]
      %v572 = vld [vmem:[%s15 + $0xb0] sm:$0xff]
      %v573 = vld [vmem:[%s15 + $0xb8] sm:$0xff]
      %v574 = vld [vmem:[%s15 + $0xc0] sm:$0xff]
      %v575 = vld [vmem:[%s15 + $0xc8] sm:$0xff]
      %v576 = vld [vmem:[%s15 + $0xd0] sm:$0xff]
      %v577 = vld [vmem:[%s15 + $0xd8] sm:$0xff]
      %v578 = vld [vmem:[%s15 + $0xe0] sm:$0xff]
      %v579 = vld [vmem:[%s15 + $0xe8] sm:$0xff]
      %v580 = vld [vmem:[%s15 + $0xf0] sm:$0xff]
      %v581 = vld [vmem:[%s15 + $0xf8] sm:$0xff]
      %v582 = vld [vmem:[%s16] sm:$0xff]
      %v583 = vld [vmem:[%s16 + $0x8] sm:$0xff]
      %v584 = vld [vmem:[%s16 + $0x10] sm:$0xff]
      %v585 = vld [vmem:[%s16 + $0x18] sm:$0xff]
      %v586 = vld [vmem:[%s13] sm:$0xff]
      %v587 = vld [vmem:[%s13 + $0x8] sm:$0xff]
      %v588 = vld [vmem:[%s13 + $0x10] sm:$0xff]
      %v589 = vld [vmem:[%s13 + $0x18] sm:$0xff]
      %v590 = vld [vmem:[%s13 + $0x20] sm:$0xff]
      %v591 = vld [vmem:[%s13 + $0x28] sm:$0xff]
      %v592 = vld [vmem:[%s13 + $0x30] sm:$0xff]
      %v593 = vld [vmem:[%s13 + $0x38] sm:$0xff]
      %v594 = vld [vmem:[%s13 + $0x40] sm:$0xff]
      %v595 = vld [vmem:[%s13 + $0x48] sm:$0xff]
      %v596 = vld [vmem:[%s13 + $0x50] sm:$0xff]
      %v597 = vld [vmem:[%s13 + $0x58] sm:$0xff]
      %v598 = vld [vmem:[%s13 + $0x60] sm:$0xff]
      %v599 = vld [vmem:[%s13 + $0x68] sm:$0xff]
      %v600 = vld [vmem:[%s13 + $0x70] sm:$0xff]
      %v601 = vld [vmem:[%s13 + $0x78] sm:$0xff]
      %v602 = vld [vmem:[%s13 + $0x80] sm:$0xff]
      %v603 = vld [vmem:[%s13 + $0x88] sm:$0xff]
      %v604 = vld [vmem:[%s13 + $0x90] sm:$0xff]
      %v605 = vld [vmem:[%s13 + $0x98] sm:$0xff]
      %v606 = vld [vmem:[%s13 + $0xa0] sm:$0xff]
      %v607 = vld [vmem:[%s13 + $0xa8] sm:$0xff]
      %v608 = vld [vmem:[%s13 + $0xb0] sm:$0xff]
      %v609 = vld [vmem:[%s13 + $0xb8] sm:$0xff]
      %v610 = vld [vmem:[%s13 + $0xc0] sm:$0xff]
      %v611 = vld [vmem:[%s13 + $0xc8] sm:$0xff]
      %v612 = vld [vmem:[%s13 + $0xd0] sm:$0xff]
      %v613 = vld [vmem:[%s13 + $0xd8] sm:$0xff]
      %v614 = vld [vmem:[%s13 + $0xe0] sm:$0xff]
      %v615 = vld [vmem:[%s13 + $0xe8] sm:$0xff]
      %v616 = vld [vmem:[%s13 + $0xf0] sm:$0xff]
      %v617 = vld [vmem:[%s13 + $0xf8] sm:$0xff]
      %v618 = vld [vmem:[%s13 + $0x100] sm:$0xff]
      %v619 = vld [vmem:[%s13 + $0x108] sm:$0xff]
      %v620 = vld [vmem:[%s13 + $0x110] sm:$0xff]
      %v621 = vld [vmem:[%s13 + $0x118] sm:$0xff]
      %v622 = vld [vmem:[%s543] sm:$0xff]
      %v623 = vld [vmem:[%s543 + $0x8] sm:$0xff]
      %v624 = vld [vmem:[%s543 + $0x10] sm:$0xff]
      %v625 = vld [vmem:[%s543 + $0x18] sm:$0xff]
      %v626 = vld [vmem:[%s543 + $0x20] sm:$0xff]
      %v627 = vld [vmem:[%s543 + $0x28] sm:$0xff]
      %v628 = vld [vmem:[%s543 + $0x30] sm:$0xff]
      %v629 = vld [vmem:[%s543 + $0x38] sm:$0xff]
      %630 = vrot.lane.b32.xlu0 %v628, 17
      %v631 = vpop.permute.xlu0 %630
      %632 = vrot.lane.b32.xlu0 %v629, 17
      %v633 = vpop.permute.xlu0 %632
      %v634 = vlaneseq
      %v635 = vand.u32 %v634, 127
      %vm636 = vcmp.lt.s32.totalorder %v635, 17
      %v637 = vsel %vm636, %v631, %v633
      %v638 = vsel %vm636, %v633, %v631
      %639 = vrot.lane.b32.xlu0 %v626, 16
      %v640 = vpop.permute.xlu0 %639
      %641 = vrot.lane.b32.xlu0 %v627, 16
      %v642 = vpop.permute.xlu0 %641
      %vm643 = vcmp.lt.s32.totalorder %v635, 16
      %v644 = vsel %vm643, %v640, %v642
      %v645 = vsel %vm643, %v642, %v640
      %646 = vrot.lane.b32.xlu0 %v628, 16
      %v647 = vpop.permute.xlu0 %646
      %648 = vrot.lane.b32.xlu0 %v629, 16
      %v649 = vpop.permute.xlu0 %648
      %v650 = vsel %vm643, %v647, %v649
      %v651 = vsel %vm643, %v649, %v647
      %652 = vrot.lane.b32.xlu0 %v624, 1
      %v653 = vpop.permute.xlu0 %652
      %654 = vrot.lane.b32.xlu0 %v625, 1
      %v655 = vpop.permute.xlu0 %654
      %vm656 = vcmp.lt.s32.totalorder %v635, 1
      %v657 = vsel %vm656, %v653, %v655
      %v658 = vsel %vm656, %v655, %v653
      %659 = vrot.lane.b32.xlu0 %v628, 1
      %v660 = vpop.permute.xlu0 %659
      %661 = vrot.lane.b32.xlu0 %v629, 1
      %v662 = vpop.permute.xlu0 %661
      %v663 = vsel %vm656, %v660, %v662
      %v664 = vsel %vm656, %v662, %v660
      %v665 = vld [vmem:[%s12] sm:$0xff]
      %v666 = vld [vmem:[%s12 + $0x8] sm:$0xff]
      %v667 = vld [vmem:[%s12 + $0x10] sm:$0xff]
      %v668 = vld [vmem:[%s12 + $0x18] sm:$0xff]
      %v669 = vld [vmem:[%s12 + $0x20] sm:$0xff]
      %v670 = vld [vmem:[%s12 + $0x28] sm:$0xff]
      %v671 = vld [vmem:[%s12 + $0x30] sm:$0xff]
      %v672 = vld [vmem:[%s12 + $0x38] sm:$0xff]
      %v673 = vld [vmem:[%s12 + $0x40] sm:$0xff]
      %v674 = vld [vmem:[%s12 + $0x48] sm:$0xff]
      %v675 = vld [vmem:[%s12 + $0x50] sm:$0xff]
      %v676 = vld [vmem:[%s12 + $0x58] sm:$0xff]
      %v677 = vld [vmem:[%s12 + $0x60] sm:$0xff]
      %v678 = vld [vmem:[%s12 + $0x68] sm:$0xff]
      %v679 = vld [vmem:[%s12 + $0x70] sm:$0xff]
      %v680 = vld [vmem:[%s12 + $0x78] sm:$0xff]
      %v681 = vld [vmem:[%s12 + $0x80] sm:$0xff]
      %v682 = vld [vmem:[%s12 + $0x88] sm:$0xff]
      %v683 = vmul.f32 %v638, %v665
      %v684 = vmul.f32 %v637, %v666
      %v685 = vmul.f32 %v645, %v667
      %v686 = vmul.f32 %v644, %v668
      %v687 = vmul.f32 %v651, %v669
      %v688 = vmul.f32 %v650, %v670
      %v689 = vmul.f32 %v658, %v671
      %v690 = vmul.f32 %v657, %v672
      %v691 = vmul.f32 %v622, %v673
      %v692 = vmul.f32 %v623, %v674
      %v693 = vmul.f32 %v624, %v675
      %v694 = vmul.f32 %v625, %v676
      %v695 = vmul.f32 %v664, %v677
      %v696 = vmul.f32 %v663, %v678
      %v697 = vmul.f32 %v626, %v679
      %v698 = vmul.f32 %v627, %v680
      %v699 = vmul.f32 %v628, %v681
      %v700 = vmul.f32 %v629, %v682
      %v701 = vpack.c.bf16 %v685, %v683
      %v702 = vpack.c.bf16 %v686, %v684
      %v703 = vpack.c.bf16 %v689, %v687
      %v704 = vpack.c.bf16 %v690, %v688
      %v705 = vpack.c.bf16 %v693, %v691
      %v706 = vpack.c.bf16 %v694, %v692
      %v707 = vpack.c.bf16 %v697, %v695
      %v708 = vpack.c.bf16 %v698, %v696
      %v709 = vpack.c.bf16 %v699, %v699
      %v710 = vpack.c.bf16 %v700, %v700
      %v711 = vld [vmem:[%s1] sm:$0xf]
      %v712 = vld [vmem:[%s1 + $0x4] sm:$0xf]
      %v715 = vunpack.c.l.b16 %v711
      %v716 = vunpack.c.l.b16 %v712
      %v717 = vpack.c.b16 %v716, %v715
      %vm718 = vcmask 588800
      %v720 = vsel %vm718, %v717, 0
      %vm722 = vcmask 1043456
      %v724 = vsel %vm722, %v709, 0
      %v727 = vsel %vm722, %v710, 0
      %729 = vmatprep.subr.bf16.mxu0 %v702
      %730 = vmatpush1.bf16.msra.mxu0 %v701
      %731 = vmatprep.subr.bf16.mxu0 %v704
      %732 = vmatpush1.bf16.msra.mxu0 %v703
      %733 = vmatprep.subr.bf16.mxu0 %v706
      %734 = vmatpush1.bf16.msra.mxu0 %v705
      %735 = vmatprep.subr.bf16.mxu0 %v708
      %736 = vmatpush1.bf16.msra.mxu0 %v707
      %737 = vmatprep.subr.bf16.mxu0 %v727
      %738 = vmatpush1.bf16.msra.mxu0 %v724
      %739 = vmatprep.subr.bf16.mxu0 0
      %740 = vmatpush1.bf16.msra.mxu0 0
      %741 = vmatprep.subr.bf16.mxu0 0
      %742 = vmatpush1.bf16.msra.mxu0 0
      %743 = vmatprep.subr.bf16.mxu0 0
      %744 = vmatpush1.bf16.msra.mxu0 0
      %745 = vmatprep.subr.bf16.mxu0 0
      %746 = vmatpush1.bf16.msra.mxu0 0
      %747 = vmatprep.subr.bf16.mxu0 0
      %748 = vmatpush1.bf16.msra.mxu0 0
      %749 = vmatprep.subr.bf16.mxu0 0
      %750 = vmatpush1.bf16.msra.mxu0 0
      %751 = vmatprep.subr.bf16.mxu0 0
      %752 = vmatpush1.bf16.msra.mxu0 0
      %753 = vmatprep.subr.bf16.mxu0 0
      %754 = vmatpush1.bf16.msra.mxu0 0
      %755 = vmatprep.subr.bf16.mxu0 0
      %756 = vmatpush1.bf16.msra.mxu0 0
      %757 = vmatprep.subr.bf16.mxu0 0
      %758 = vmatpush1.bf16.msra.mxu0 0
      %759 = vmatprep.subr.bf16.mxu0 0
      %760 = vmatpush1.bf16.msra.mxu0 0
      %761 = vmatprep.mubr.bf16.mxu0 0
      %762 = vmatmul.mubr.bf16.gmra.mrb[0].mxu0 %v720
      %v763 = vpop.f32.mrb[0].mxu0
      %v764 = vadd.f32 0.0, %v763
      %v765 = vpop.f32.mrb[0].mxu0
      %v766 = vadd.f32 0.0, %v765
      %v767 = vpop.f32.mrb[0].mxu0
      %v768 = vadd.f32 0.0, %v767
      %v769 = vpop.f32.mrb[0].mxu0
      %v770 = vadd.f32 0.0, %v769
      %771 = vdwg.mxu0
      %v772 = vmax.f32 %v764, 0.0
      %v773 = vmax.f32 %v766, 0.0
      %v774 = vmax.f32 %v768, 0.0
      %v775 = vmax.f32 %v770, 0.0
      %v776 = vld [vmem:[%s8] sm:$0x77]
      %v777 = vld [vmem:[%s9] sm:$0x77]
      %v778 = vld [vmem:[%s2] sm:$0xff]
      %v779 = vld [vmem:[%s2 + $0x8] sm:$0xff]
      %780 = vrot.lane.b32.xlu0 %v772, 17
      %v781 = vpop.permute.xlu0 %780
      %782 = vrot.lane.b32.xlu0 %v774, 17
      %v783 = vpop.permute.xlu0 %782
      %784 = vrot.lane.b32.xlu0 %v773, 17
      %v785 = vpop.permute.xlu0 %784
      %786 = vrot.lane.b32.xlu0 %v775, 17
      %v787 = vpop.permute.xlu0 %786
      %v788 = vsel %vm636, %v781, %v785
      %v789 = vsel %vm636, %v783, %v787
      %v790 = vsel %vm636, %v785, %v781
      %v791 = vsel %vm636, %v787, %v783
      %792 = vrot.lane.b32.xlu0 %v772, 16
      %v793 = vpop.permute.xlu0 %792
      %794 = vrot.lane.b32.xlu0 %v774, 16
      %v795 = vpop.permute.xlu0 %794
      %796 = vrot.lane.b32.xlu0 %v773, 16
      %v797 = vpop.permute.xlu0 %796
      %798 = vrot.lane.b32.xlu0 %v775, 16
      %v799 = vpop.permute.xlu0 %798
      %v800 = vsel %vm643, %v793, %v797
      %v801 = vsel %vm643, %v795, %v799
      %v802 = vsel %vm643, %v797, %v793
      %v803 = vsel %vm643, %v799, %v795
      %804 = vrot.lane.b32.xlu0 %v772, 15
      %v805 = vpop.permute.xlu0 %804
      %806 = vrot.lane.b32.xlu0 %v774, 15
      %v807 = vpop.permute.xlu0 %806
      %808 = vrot.lane.b32.xlu0 %v773, 15
      %v809 = vpop.permute.xlu0 %808
      %810 = vrot.lane.b32.xlu0 %v775, 15
      %v811 = vpop.permute.xlu0 %810
      %vm812 = vcmp.lt.s32.totalorder %v635, 15
      %v813 = vsel %vm812, %v805, %v809
      %v814 = vsel %vm812, %v807, %v811
      %v815 = vsel %vm812, %v809, %v805
      %v816 = vsel %vm812, %v811, %v807
      %817 = vrot.lane.b32.xlu0 %v772, 1
      %v818 = vpop.permute.xlu0 %817
      %819 = vrot.lane.b32.xlu0 %v774, 1
      %v820 = vpop.permute.xlu0 %819
      %821 = vrot.lane.b32.xlu0 %v773, 1
      %v822 = vpop.permute.xlu0 %821
      %823 = vrot.lane.b32.xlu0 %v775, 1
      %v824 = vpop.permute.xlu0 %823
      %v825 = vsel %vm656, %v818, %v822
      %v826 = vsel %vm656, %v820, %v824
      %v827 = vsel %vm656, %v822, %v818
      %v828 = vsel %vm656, %v824, %v820
      %829 = vrot.lane.b32.xlu0 %v772, 127
      %v830 = vpop.permute.xlu0 %829
      %831 = vrot.lane.b32.xlu0 %v774, 127
      %v832 = vpop.permute.xlu0 %831
      %833 = vrot.lane.b32.xlu0 %v773, 127
      %v834 = vpop.permute.xlu0 %833
      %835 = vrot.lane.b32.xlu0 %v775, 127
      %v836 = vpop.permute.xlu0 %835
      %vm837 = vcmp.lt.s32.totalorder %v635, 127
      %v838 = vsel %vm837, %v830, %v834
      %v839 = vsel %vm837, %v832, %v836
      %v840 = vsel %vm837, %v834, %v830
      %v841 = vsel %vm837, %v836, %v832
      %842 = vrot.lane.b32.xlu0 %v772, 113
      %v843 = vpop.permute.xlu0 %842
      %844 = vrot.lane.b32.xlu0 %v774, 113
      %v845 = vpop.permute.xlu0 %844
      %846 = vrot.lane.b32.xlu0 %v773, 113
      %v847 = vpop.permute.xlu0 %846
      %848 = vrot.lane.b32.xlu0 %v775, 113
      %v849 = vpop.permute.xlu0 %848
      %vm850 = vcmp.lt.s32.totalorder %v635, 113
      %v851 = vsel %vm850, %v843, %v847
      %v852 = vsel %vm850, %v845, %v849
      %v853 = vsel %vm850, %v847, %v843
      %v854 = vsel %vm850, %v849, %v845
      %855 = vrot.lane.b32.xlu0 %v772, 112
      %v856 = vpop.permute.xlu0 %855
      %857 = vrot.lane.b32.xlu0 %v774, 112
      %v858 = vpop.permute.xlu0 %857
      %859 = vrot.lane.b32.xlu0 %v773, 112
      %v860 = vpop.permute.xlu0 %859
      %861 = vrot.lane.b32.xlu0 %v775, 112
      %v862 = vpop.permute.xlu0 %861
      %vm863 = vcmp.lt.s32.totalorder %v635, 112
      %v864 = vsel %vm863, %v856, %v860
      %v865 = vsel %vm863, %v858, %v862
      %v866 = vsel %vm863, %v860, %v856
      %v867 = vsel %vm863, %v862, %v858
      %868 = vrot.lane.b32.xlu0 %v772, 111
      %v869 = vpop.permute.xlu0 %868
      %870 = vrot.lane.b32.xlu0 %v774, 111
      %v871 = vpop.permute.xlu0 %870
      %872 = vrot.lane.b32.xlu0 %v773, 111
      %v873 = vpop.permute.xlu0 %872
      %874 = vrot.lane.b32.xlu0 %v775, 111
      %v875 = vpop.permute.xlu0 %874
      %vm876 = vcmp.lt.s32.totalorder %v635, 111
      %v877 = vsel %vm876, %v869, %v873
      %v878 = vsel %vm876, %v871, %v875
      %v879 = vsel %vm876, %v873, %v869
      %v880 = vsel %vm876, %v875, %v871
      %v881 = vmul.f32 %v790, %v586
      %v882 = vmul.f32 %v788, %v587
      %v883 = vmul.f32 %v791, %v588
      %v884 = vmul.f32 %v789, %v589
      %v885 = vmul.f32 %v802, %v590
      %v886 = vmul.f32 %v800, %v591
      %v887 = vmul.f32 %v803, %v592
      %v888 = vmul.f32 %v801, %v593
      %v889 = vmul.f32 %v815, %v594
      %v890 = vmul.f32 %v813, %v595
      %v891 = vmul.f32 %v816, %v596
      %v892 = vmul.f32 %v814, %v597
      %v893 = vmul.f32 %v827, %v598
      %v894 = vmul.f32 %v825, %v599
      %v895 = vmul.f32 %v828, %v600
      %v896 = vmul.f32 %v826, %v601
      %v897 = vmul.f32 %v772, %v602
      %v898 = vmul.f32 %v773, %v603
      %v899 = vmul.f32 %v774, %v604
      %v900 = vmul.f32 %v775, %v605
      %v901 = vmul.f32 %v838, %v606
      %v902 = vmul.f32 %v840, %v607
      %v903 = vmul.f32 %v839, %v608
      %v904 = vmul.f32 %v841, %v609
      %v905 = vmul.f32 %v851, %v610
      %v906 = vmul.f32 %v853, %v611
      %v907 = vmul.f32 %v852, %v612
      %v908 = vmul.f32 %v854, %v613
      %v909 = vmul.f32 %v864, %v614
      %v910 = vmul.f32 %v866, %v615
      %v911 = vmul.f32 %v865, %v616
      %v912 = vmul.f32 %v867, %v617
      %v913 = vmul.f32 %v877, %v618
      %v914 = vmul.f32 %v879, %v619
      %v915 = vmul.f32 %v878, %v620
      %v916 = vmul.f32 %v880, %v621
      %v917 = vpack.c.bf16 %v883, %v881
      %v918 = vpack.c.bf16 %v884, %v882
      %v919 = vpack.c.bf16 %v887, %v885
      %v920 = vpack.c.bf16 %v888, %v886
      %v921 = vpack.c.bf16 %v891, %v889
      %v922 = vpack.c.bf16 %v892, %v890
      %v923 = vpack.c.bf16 %v895, %v893
      %v924 = vpack.c.bf16 %v896, %v894
      %v925 = vpack.c.bf16 %v899, %v897
      %v926 = vpack.c.bf16 %v900, %v898
      %v927 = vpack.c.bf16 %v903, %v901
      %v928 = vpack.c.bf16 %v904, %v902
      %v929 = vpack.c.bf16 %v907, %v905
      %v930 = vpack.c.bf16 %v908, %v906
      %v931 = vpack.c.bf16 %v911, %v909
      %v932 = vpack.c.bf16 %v912, %v910
      %v933 = vpack.c.bf16 %v915, %v913
      %v934 = vpack.c.bf16 %v916, %v914
      %v937 = vunpack.c.l.b16 %v778
      %v938 = vunpack.c.h.b16 %v778
      %v939 = vunpack.c.l.b16 %v779
      %v940 = vunpack.c.h.b16 %v779
      %v941 = vpack.c.b16 %v939, %v937
      %v942 = vpack.c.b16 %v940, %v938
      %vm944 = vcmask 130048
      %v946 = vsel %vm944, %v942, 0
      %948 = vmatprep.subr.bf16.mxu0 %v918
      %949 = vmatpush1.bf16.msra.mxu0 %v917
      %950 = vmatprep.subr.bf16.mxu0 %v920
      %951 = vmatpush1.bf16.msra.mxu0 %v919
      %952 = vmatprep.subr.bf16.mxu0 %v922
      %953 = vmatpush1.bf16.msra.mxu0 %v921
      %954 = vmatprep.subr.bf16.mxu0 %v924
      %955 = vmatpush1.bf16.msra.mxu0 %v923
      %956 = vmatprep.subr.bf16.mxu0 %v926
      %957 = vmatpush1.bf16.msra.mxu0 %v925
      %958 = vmatprep.subr.bf16.mxu0 %v928
      %959 = vmatpush1.bf16.msra.mxu0 %v927
      %960 = vmatprep.subr.bf16.mxu0 %v930
      %961 = vmatpush1.bf16.msra.mxu0 %v929
      %962 = vmatprep.subr.bf16.mxu0 %v932
      %963 = vmatpush1.bf16.msra.mxu0 %v931
      %964 = vmatprep.subr.bf16.mxu0 %v934
      %965 = vmatpush1.bf16.msra.mxu0 %v933
      %966 = vmatprep.subr.bf16.mxu0 0
      %967 = vmatpush1.bf16.msra.mxu0 0
      %968 = vmatprep.subr.bf16.mxu0 0
      %969 = vmatpush1.bf16.msra.mxu0 0
      %970 = vmatprep.subr.bf16.mxu0 0
      %971 = vmatpush1.bf16.msra.mxu0 0
      %972 = vmatprep.subr.bf16.mxu0 0
      %973 = vmatpush1.bf16.msra.mxu0 0
      %974 = vmatprep.subr.bf16.mxu0 0
      %975 = vmatpush1.bf16.msra.mxu0 0
      %976 = vmatprep.subr.bf16.mxu0 0
      %977 = vmatpush1.bf16.msra.mxu0 0
      %978 = vmatprep.subr.bf16.mxu0 0
      %979 = vmatpush1.bf16.msra.mxu0 0
      %980 = vmatprep.mubr.bf16.mxu0 %v946
      %981 = vmatmul.mubr.bf16.gmra.mrb[0].mxu0 %v941
      %v982 = vpop.f32.mrb[0].mxu0
      %v983 = vadd.f32 0.0, %v982
      %v984 = vpop.f32.mrb[0].mxu0
      %v985 = vadd.f32 0.0, %v984
      %v986 = vpop.f32.mrb[0].mxu0
      %v987 = vadd.f32 0.0, %v986
      %v988 = vpop.f32.mrb[0].mxu0
      %v989 = vadd.f32 0.0, %v988
      %990 = vdwg.mxu0
      %v991 = vmul.f32 %v983, %v983
      %v992 = vmul.f32 %v985, %v985
      %v993 = vmul.f32 %v987, %v987
      %v994 = vmul.f32 %v989, %v989
      %995 = vmatprep.subr.mxu0 0.0
      %996 = vmatpush1.msra.mxu0 %v550
      %997 = vmatprep.subr.mxu0 0.0
      %998 = vmatpush1.msra.mxu0 %v551
      %999 = vmatprep.subr.mxu0 0.0
      %1000 = vmatpush1.msra.mxu0 %v552
      %1001 = vmatprep.subr.mxu0 0.0
      %1002 = vmatpush1.msra.mxu0 %v553
      %1003 = vmatprep.subr.mxu0 0.0
      %1004 = vmatpush1.msra.mxu0 %v554
      %1005 = vmatprep.subr.mxu0 0.0
      %1006 = vmatpush1.msra.mxu0 %v555
      %1007 = vmatprep.subr.mxu0 0.0
      %1008 = vmatpush1.msra.mxu0 %v556
      %1009 = vmatprep.subr.mxu0 0.0
      %1010 = vmatpush1.msra.mxu0 %v557
      %1011 = vmatprep.subr.mxu0 0.0
      %1012 = vmatpush1.msra.mxu0 %v558
      %1013 = vmatprep.subr.mxu0 0.0
      %1014 = vmatpush1.msra.mxu0 %v559
      %1015 = vmatprep.subr.mxu0 0.0
      %1016 = vmatpush1.msra.mxu0 %v560
      %1017 = vmatprep.subr.mxu0 0.0
      %1018 = vmatpush1.msra.mxu0 %v561
      %1019 = vmatprep.subr.mxu0 0.0
      %1020 = vmatpush1.msra.mxu0 %v562
      %1021 = vmatprep.subr.mxu0 0.0
      %1022 = vmatpush1.msra.mxu0 %v563
      %1023 = vmatprep.subr.mxu0 0.0
      %1024 = vmatpush1.msra.mxu0 %v564
      %1025 = vmatprep.subr.mxu0 0.0
      %1026 = vmatpush1.msra.mxu0 %v565
      %1027 = vmatprep.subr.mxu0 0.0
      %1028 = vmatpush1.msra.mxu0 %v566
      %1029 = vmatprep.subr.mxu0 0.0
      %1030 = vmatpush1.msra.mxu0 %v567
      %1031 = vmatprep.subr.mxu0 0.0
      %1032 = vmatpush1.msra.mxu0 %v568
      %1033 = vmatprep.subr.mxu0 0.0
      %1034 = vmatpush1.msra.mxu0 %v569
      %1035 = vmatprep.subr.mxu0 0.0
      %1036 = vmatpush1.msra.mxu0 %v570
      %1037 = vmatprep.subr.mxu0 0.0
      %1038 = vmatpush1.msra.mxu0 %v571
      %1039 = vmatprep.subr.mxu0 0.0
      %1040 = vmatpush1.msra.mxu0 %v572
      %1041 = vmatprep.subr.mxu0 0.0
      %1042 = vmatpush1.msra.mxu0 %v573
      %1043 = vmatprep.subr.mxu0 0.0
      %1044 = vmatpush1.msra.mxu0 %v574
      %1045 = vmatprep.subr.mxu0 0.0
      %1046 = vmatpush1.msra.mxu0 %v575
      %1047 = vmatprep.subr.mxu0 0.0
      %1048 = vmatpush1.msra.mxu0 %v576
      %1049 = vmatprep.subr.mxu0 0.0
      %1050 = vmatpush1.msra.mxu0 %v577
      %1051 = vmatprep.subr.mxu0 0.0
      %1052 = vmatpush1.msra.mxu0 %v578
      %1053 = vmatprep.subr.mxu0 0.0
      %1054 = vmatpush1.msra.mxu0 %v579
      %1055 = vmatprep.subr.mxu0 0.0
      %1056 = vmatpush1.msra.mxu0 %v580
      %1057 = vmatprep.subr.mxu0 0.0
      %1058 = vmatpush1.msra.mxu0 %v581
      %1059 = vmatprep.mubr.f32.mxu0 %v985
      %1060 = vmatmul.mubr.f32.gmra.mrb[0].mxu0 %v983
      %v1061 = vpop.f32.mrb[0].mxu0
      %v1062 = vadd.f32 0.0, %v1061
      %v1063 = vpop.f32.mrb[0].mxu0
      %1064 = vmatprep.mubr.f32.mxu0 %v989
      %1065 = vmatmul.mubr.f32.gmra.mrb[0].mxu0 %v987
      %v1066 = vpop.f32.mrb[0].mxu0
      %v1067 = vadd.f32 0.0, %v1066
      %v1068 = vpop.f32.mrb[0].mxu0
      %1069 = vmatprep.mubr.f32.mxu0 %v992
      %1070 = vmatmul.mubr.f32.gmra.mrb[0].mxu0 %v991
      %v1071 = vpop.f32.mrb[0].mxu0
      %v1072 = vadd.f32 0.0, %v1071
      %v1073 = vpop.f32.mrb[0].mxu0
      %1074 = vmatprep.mubr.f32.mxu0 %v994
      %1075 = vmatmul.mubr.f32.gmra.mrb[0].mxu0 %v993
      %v1076 = vpop.f32.mrb[0].mxu0
      %v1077 = vadd.f32 0.0, %v1076
      %v1078 = vpop.f32.mrb[0].mxu0
      %1079 = vdwg.mxu0
      %v1080 = vmul.f32 %v1062, %v1062
      %v1081 = vmul.f32 %v1067, %v1067
      %v1082 = vsub.f32 %v1072, %v1080
      %v1083 = vsub.f32 %v1077, %v1081
      %v1084 = vmax.f32 %v1082, 0.0
      %v1085 = vmax.f32 %v1083, 0.0
      %v1086 = vadd.f32 %v1084, 1e-05
      %v1087 = vadd.f32 %v1085, 1e-05
      %v1088 = vrsqrt.pop %v1086
      %v1089 = vrsqrt.pop %v1087
      %v1091 = vsel %vm944, %v1062, 0
      %v1094 = vsel %vm944, %v1067, 0
      %1096 = vmatprep.subr.mxu0 %v583
      %1097 = vmatpush1.msra.mxu0 %v582
      %1098 = vmatprep.subr.mxu0 %v585
      %1099 = vmatpush1.msra.mxu0 %v584
      %1100 = vmatprep.subr.mxu0 0.0
      %1101 = vmatpush1.msra.mxu0 0.0
      %1102 = vmatprep.subr.mxu0 0.0
      %1103 = vmatpush1.msra.mxu0 0.0
      %1104 = vmatprep.subr.mxu0 0.0
      %1105 = vmatpush1.msra.mxu0 0.0
      %1106 = vmatprep.subr.mxu0 0.0
      %1107 = vmatpush1.msra.mxu0 0.0
      %1108 = vmatprep.subr.mxu0 0.0
      %1109 = vmatpush1.msra.mxu0 0.0
      %1110 = vmatprep.subr.mxu0 0.0
      %1111 = vmatpush1.msra.mxu0 0.0
      %1112 = vmatprep.subr.mxu0 0.0
      %1113 = vmatpush1.msra.mxu0 0.0
      %1114 = vmatprep.subr.mxu0 0.0
      %1115 = vmatpush1.msra.mxu0 0.0
      %1116 = vmatprep.subr.mxu0 0.0
      %1117 = vmatpush1.msra.mxu0 0.0
      %1118 = vmatprep.subr.mxu0 0.0
      %1119 = vmatpush1.msra.mxu0 0.0
      %1120 = vmatprep.subr.mxu0 0.0
      %1121 = vmatpush1.msra.mxu0 0.0
      %1122 = vmatprep.subr.mxu0 0.0
      %1123 = vmatpush1.msra.mxu0 0.0
      %1124 = vmatprep.subr.mxu0 0.0
      %1125 = vmatpush1.msra.mxu0 0.0
      %1126 = vmatprep.subr.mxu0 0.0
      %1127 = vmatpush1.msra.mxu0 0.0
      %1128 = vmatprep.subr.mxu0 0.0
      %1129 = vmatpush1.msra.mxu0 0.0
      %1130 = vmatprep.subr.mxu0 0.0
      %1131 = vmatpush1.msra.mxu0 0.0
      %1132 = vmatprep.subr.mxu0 0.0
      %1133 = vmatpush1.msra.mxu0 0.0
      %1134 = vmatprep.subr.mxu0 0.0
      %1135 = vmatpush1.msra.mxu0 0.0
      %1136 = vmatprep.subr.mxu0 0.0
      %1137 = vmatpush1.msra.mxu0 0.0
      %1138 = vmatprep.subr.mxu0 0.0
      %1139 = vmatpush1.msra.mxu0 0.0
      %1140 = vmatprep.subr.mxu0 0.0
      %1141 = vmatpush1.msra.mxu0 0.0
      %1142 = vmatprep.subr.mxu0 0.0
      %1143 = vmatpush1.msra.mxu0 0.0
      %1144 = vmatprep.subr.mxu0 0.0
      %1145 = vmatpush1.msra.mxu0 0.0
      %1146 = vmatprep.subr.mxu0 0.0
      %1147 = vmatpush1.msra.mxu0 0.0
      %1148 = vmatprep.subr.mxu0 0.0
      %1149 = vmatpush1.msra.mxu0 0.0
      %1150 = vmatprep.subr.mxu0 0.0
      %1151 = vmatpush1.msra.mxu0 0.0
      %1152 = vmatprep.subr.mxu0 0.0
      %1153 = vmatpush1.msra.mxu0 0.0
      %1154 = vmatprep.subr.mxu0 0.0
      %1155 = vmatpush1.msra.mxu0 0.0
      %1156 = vmatprep.subr.mxu0 0.0
      %1157 = vmatpush1.msra.mxu0 0.0
      %1158 = vmatprep.subr.mxu0 0.0
      %1159 = vmatpush1.msra.mxu0 0.0
      %1160 = vmatprep.mubr.f32.mxu0 0.0
      %1161 = vmatmul.mubr.f32.gmra.mrb[0].mxu0 %v1091
      %v1162 = vpop.f32.mrb[0].mxu0
      %v1163 = vadd.f32 0.0, %v1162
      %v1164 = vpop.f32.mrb[0].mxu0
      %v1165 = vadd.f32 0.0, %v1164
      %1166 = vmatprep.mubr.f32.mxu0 0.0
      %1167 = vmatmul.mubr.f32.gmra.mrb[0].mxu0 %v1094
      %v1168 = vpop.f32.mrb[0].mxu0
      %v1169 = vadd.f32 0.0, %v1168
      %v1170 = vpop.f32.mrb[0].mxu0
      %v1171 = vadd.f32 0.0, %v1170
      %1172 = vdwg.mxu0
      %v1174 = vsel %vm944, %v1088, 0
      %v1177 = vsel %vm944, %v1089, 0
      %1179 = vmatprep.subr.mxu0 %v583
      %1180 = vmatpush1.msra.mxu0 %v582
      %1181 = vmatprep.subr.mxu0 %v585
      %1182 = vmatpush1.msra.mxu0 %v584
      %1183 = vmatprep.subr.mxu0 0.0
      %1184 = vmatpush1.msra.mxu0 0.0
      %1185 = vmatprep.subr.mxu0 0.0
      %1186 = vmatpush1.msra.mxu0 0.0
      %1187 = vmatprep.subr.mxu0 0.0
      %1188 = vmatpush1.msra.mxu0 0.0
      %1189 = vmatprep.subr.mxu0 0.0
      %1190 = vmatpush1.msra.mxu0 0.0
      %1191 = vmatprep.subr.mxu0 0.0
      %1192 = vmatpush1.msra.mxu0 0.0
      %1193 = vmatprep.subr.mxu0 0.0
      %1194 = vmatpush1.msra.mxu0 0.0
      %1195 = vmatprep.subr.mxu0 0.0
      %1196 = vmatpush1.msra.mxu0 0.0
      %1197 = vmatprep.subr.mxu0 0.0
      %1198 = vmatpush1.msra.mxu0 0.0
      %1199 = vmatprep.subr.mxu0 0.0
      %1200 = vmatpush1.msra.mxu0 0.0
      %1201 = vmatprep.subr.mxu0 0.0
      %1202 = vmatpush1.msra.mxu0 0.0
      %1203 = vmatprep.subr.mxu0 0.0
      %1204 = vmatpush1.msra.mxu0 0.0
      %1205 = vmatprep.subr.mxu0 0.0
      %1206 = vmatpush1.msra.mxu0 0.0
      %1207 = vmatprep.subr.mxu0 0.0
      %1208 = vmatpush1.msra.mxu0 0.0
      %1209 = vmatprep.subr.mxu0 0.0
      %1210 = vmatpush1.msra.mxu0 0.0
      %1211 = vmatprep.subr.mxu0 0.0
      %1212 = vmatpush1.msra.mxu0 0.0
      %1213 = vmatprep.subr.mxu0 0.0
      %1214 = vmatpush1.msra.mxu0 0.0
      %1215 = vmatprep.subr.mxu0 0.0
      %1216 = vmatpush1.msra.mxu0 0.0
      %1217 = vmatprep.subr.mxu0 0.0
      %1218 = vmatpush1.msra.mxu0 0.0
      %1219 = vmatprep.subr.mxu0 0.0
      %1220 = vmatpush1.msra.mxu0 0.0
      %1221 = vmatprep.subr.mxu0 0.0
      %1222 = vmatpush1.msra.mxu0 0.0
      %1223 = vmatprep.subr.mxu0 0.0
      %1224 = vmatpush1.msra.mxu0 0.0
      %1225 = vmatprep.subr.mxu0 0.0
      %1226 = vmatpush1.msra.mxu0 0.0
      %1227 = vmatprep.subr.mxu0 0.0
      %1228 = vmatpush1.msra.mxu0 0.0
      %1229 = vmatprep.subr.mxu0 0.0
      %1230 = vmatpush1.msra.mxu0 0.0
      %1231 = vmatprep.subr.mxu0 0.0
      %1232 = vmatpush1.msra.mxu0 0.0
      %1233 = vmatprep.subr.mxu0 0.0
      %1234 = vmatpush1.msra.mxu0 0.0
      %1235 = vmatprep.subr.mxu0 0.0
      %1236 = vmatpush1.msra.mxu0 0.0
      %1237 = vmatprep.subr.mxu0 0.0
      %1238 = vmatpush1.msra.mxu0 0.0
      %1239 = vmatprep.subr.mxu0 0.0
      %1240 = vmatpush1.msra.mxu0 0.0
      %1241 = vmatprep.subr.mxu0 0.0
      %1242 = vmatpush1.msra.mxu0 0.0
      %1243 = vmatprep.mubr.f32.mxu0 0.0
      %1244 = vmatmul.mubr.f32.gmra.mrb[0].mxu0 %v1174
      %v1245 = vpop.f32.mrb[0].mxu0
      %v1246 = vadd.f32 0.0, %v1245
      %v1247 = vpop.f32.mrb[0].mxu0
      %v1248 = vadd.f32 0.0, %v1247
      %1249 = vmatprep.mubr.f32.mxu0 0.0
      %1250 = vmatmul.mubr.f32.gmra.mrb[0].mxu0 %v1177
      %v1251 = vpop.f32.mrb[0].mxu0
      %v1252 = vadd.f32 0.0, %v1251
      %v1253 = vpop.f32.mrb[0].mxu0
      %v1254 = vadd.f32 0.0, %v1253
      %1255 = vdwg.mxu0
      %v1256 = vsub.f32 %v983, %v1163
      %v1257 = vsub.f32 %v985, %v1165
      %v1258 = vsub.f32 %v987, %v1169
      %v1259 = vsub.f32 %v989, %v1171
      %v1260 = vmul.f32 %v1256, %v1246
      %v1261 = vmul.f32 %v1257, %v1248
      %v1262 = vmul.f32 %v1258, %v1252
      %v1263 = vmul.f32 %v1259, %v1254
      %v1265 = vlaneseq
      %v1266 = vshrl.u32 %v1265, 7
      %v1267 = vsub.s32 0, %v1266
      %v1268 = vrot.slane %v776, %v1267
      %v1269 = vlaneseq
      %v1270 = vshrl.u32 %v1269, 7
      %v1271 = vsub.s32 4, %v1270
      %v1272 = vrot.slane %v776, %v1271
      %v1275 = vlaneseq
      %v1276 = vshrl.u32 %v1275, 7
      %v1277 = vsub.s32 0, %v1276
      %v1278 = vrot.slane %v1268, %v1277
      %v1279 = vlaneseq
      %v1280 = vshrl.u32 %v1279, 7
      %v1281 = vsub.s32 0, %v1280
      %v1282 = vrot.slane %v1272, %v1281
      %v1283 = vmul.f32 %v1260, %v1278
      %v1284 = vmul.f32 %v1261, %v1282
      %v1285 = vmul.f32 %v1262, %v1278
      %v1286 = vmul.f32 %v1263, %v1282
      %v1288 = vlaneseq
      %v1289 = vshrl.u32 %v1288, 7
      %v1290 = vsub.s32 0, %v1289
      %v1291 = vrot.slane %v777, %v1290
      %v1292 = vlaneseq
      %v1293 = vshrl.u32 %v1292, 7
      %v1294 = vsub.s32 4, %v1293
      %v1295 = vrot.slane %v777, %v1294
      %v1298 = vlaneseq
      %v1299 = vshrl.u32 %v1298, 7
      %v1300 = vsub.s32 0, %v1299
      %v1301 = vrot.slane %v1291, %v1300
      %v1302 = vlaneseq
      %v1303 = vshrl.u32 %v1302, 7
      %v1304 = vsub.s32 0, %v1303
      %v1305 = vrot.slane %v1295, %v1304
      %v1306 = vadd.f32 %v1283, %v1301
      %v1307 = vadd.f32 %v1284, %v1305
      %v1308 = vadd.f32 %v1285, %v1301
      %v1309 = vadd.f32 %v1286, %v1305
      %v1310 = vmax.f32 %v1306, 0.0
      %v1311 = vmax.f32 %v1307, 0.0
      %v1312 = vmax.f32 %v1308, 0.0
      %v1313 = vmax.f32 %v1309, 0.0
      %v1314 = vld [vmem:[%s3] sm:$0xff]
      %v1315 = vld [vmem:[%s3 + $0x8] sm:$0xff]
      %1316 = vrot.lane.b32.xlu0 %v1310, 17
      %v1317 = vpop.permute.xlu0 %1316
      %1318 = vrot.lane.b32.xlu0 %v1312, 17
      %v1319 = vpop.permute.xlu0 %1318
      %1320 = vrot.lane.b32.xlu0 %v1311, 17
      %v1321 = vpop.permute.xlu0 %1320
      %1322 = vrot.lane.b32.xlu0 %v1313, 17
      %v1323 = vpop.permute.xlu0 %1322
      %v1324 = vsel %vm636, %v1317, %v1321
      %v1325 = vsel %vm636, %v1319, %v1323
      %v1326 = vsel %vm636, %v1321, %v1317
      %v1327 = vsel %vm636, %v1323, %v1319
      %1328 = vrot.lane.b32.xlu0 %v1310, 16
      %v1329 = vpop.permute.xlu0 %1328
      %1330 = vrot.lane.b32.xlu0 %v1312, 16
      %v1331 = vpop.permute.xlu0 %1330
      %1332 = vrot.lane.b32.xlu0 %v1311, 16
      %v1333 = vpop.permute.xlu0 %1332
      %1334 = vrot.lane.b32.xlu0 %v1313, 16
      %v1335 = vpop.permute.xlu0 %1334
      %v1336 = vsel %vm643, %v1329, %v1333
      %v1337 = vsel %vm643, %v1331, %v1335
      %v1338 = vsel %vm643, %v1333, %v1329
      %v1339 = vsel %vm643, %v1335, %v1331
      %1340 = vrot.lane.b32.xlu0 %v1310, 15
      %v1341 = vpop.permute.xlu0 %1340
      %1342 = vrot.lane.b32.xlu0 %v1312, 15
      %v1343 = vpop.permute.xlu0 %1342
      %1344 = vrot.lane.b32.xlu0 %v1311, 15
      %v1345 = vpop.permute.xlu0 %1344
      %1346 = vrot.lane.b32.xlu0 %v1313, 15
      %v1347 = vpop.permute.xlu0 %1346
      %v1348 = vsel %vm812, %v1341, %v1345
      %v1349 = vsel %vm812, %v1343, %v1347
      %v1350 = vsel %vm812, %v1345, %v1341
      %v1351 = vsel %vm812, %v1347, %v1343
      %1352 = vrot.lane.b32.xlu0 %v1310, 1
      %v1353 = vpop.permute.xlu0 %1352
      %1354 = vrot.lane.b32.xlu0 %v1312, 1
      %v1355 = vpop.permute.xlu0 %1354
      %1356 = vrot.lane.b32.xlu0 %v1311, 1
      %v1357 = vpop.permute.xlu0 %1356
      %1358 = vrot.lane.b32.xlu0 %v1313, 1
      %v1359 = vpop.permute.xlu0 %1358
      %v1360 = vsel %vm656, %v1353, %v1357
      %v1361 = vsel %vm656, %v1355, %v1359
      %v1362 = vsel %vm656, %v1357, %v1353
      %v1363 = vsel %vm656, %v1359, %v1355
      %1364 = vrot.lane.b32.xlu0 %v1310, 127
      %v1365 = vpop.permute.xlu0 %1364
      %1366 = vrot.lane.b32.xlu0 %v1312, 127
      %v1367 = vpop.permute.xlu0 %1366
      %1368 = vrot.lane.b32.xlu0 %v1311, 127
      %v1369 = vpop.permute.xlu0 %1368
      %1370 = vrot.lane.b32.xlu0 %v1313, 127
      %v1371 = vpop.permute.xlu0 %1370
      %v1372 = vsel %vm837, %v1365, %v1369
      %v1373 = vsel %vm837, %v1367, %v1371
      %v1374 = vsel %vm837, %v1369, %v1365
      %v1375 = vsel %vm837, %v1371, %v1367
      %1376 = vrot.lane.b32.xlu0 %v1310, 113
      %v1377 = vpop.permute.xlu0 %1376
      %1378 = vrot.lane.b32.xlu0 %v1312, 113
      %v1379 = vpop.permute.xlu0 %1378
      %1380 = vrot.lane.b32.xlu0 %v1311, 113
      %v1381 = vpop.permute.xlu0 %1380
      %1382 = vrot.lane.b32.xlu0 %v1313, 113
      %v1383 = vpop.permute.xlu0 %1382
      %v1384 = vsel %vm850, %v1377, %v1381
      %v1385 = vsel %vm850, %v1379, %v1383
      %v1386 = vsel %vm850, %v1381, %v1377
      %v1387 = vsel %vm850, %v1383, %v1379
      %1388 = vrot.lane.b32.xlu0 %v1310, 112
      %v1389 = vpop.permute.xlu0 %1388
      %1390 = vrot.lane.b32.xlu0 %v1312, 112
      %v1391 = vpop.permute.xlu0 %1390
      %1392 = vrot.lane.b32.xlu0 %v1311, 112
      %v1393 = vpop.permute.xlu0 %1392
      %1394 = vrot.lane.b32.xlu0 %v1313, 112
      %v1395 = vpop.permute.xlu0 %1394
      %v1396 = vsel %vm863, %v1389, %v1393
      %v1397 = vsel %vm863, %v1391, %v1395
      %v1398 = vsel %vm863, %v1393, %v1389
      %v1399 = vsel %vm863, %v1395, %v1391
      %1400 = vrot.lane.b32.xlu0 %v1310, 111
      %v1401 = vpop.permute.xlu0 %1400
      %1402 = vrot.lane.b32.xlu0 %v1312, 111
      %v1403 = vpop.permute.xlu0 %1402
      %1404 = vrot.lane.b32.xlu0 %v1311, 111
      %v1405 = vpop.permute.xlu0 %1404
      %1406 = vrot.lane.b32.xlu0 %v1313, 111
      %v1407 = vpop.permute.xlu0 %1406
      %v1408 = vsel %vm876, %v1401, %v1405
      %v1409 = vsel %vm876, %v1403, %v1407
      %v1410 = vsel %vm876, %v1405, %v1401
      %v1411 = vsel %vm876, %v1407, %v1403
      %v1412 = vmul.f32 %v1326, %v586
      %v1413 = vmul.f32 %v1324, %v587
      %v1414 = vmul.f32 %v1327, %v588
      %v1415 = vmul.f32 %v1325, %v589
      %v1416 = vmul.f32 %v1338, %v590
      %v1417 = vmul.f32 %v1336, %v591
      %v1418 = vmul.f32 %v1339, %v592
      %v1419 = vmul.f32 %v1337, %v593
      %v1420 = vmul.f32 %v1350, %v594
      %v1421 = vmul.f32 %v1348, %v595
      %v1422 = vmul.f32 %v1351, %v596
      %v1423 = vmul.f32 %v1349, %v597
      %v1424 = vmul.f32 %v1362, %v598
      %v1425 = vmul.f32 %v1360, %v599
      %v1426 = vmul.f32 %v1363, %v600
      %v1427 = vmul.f32 %v1361, %v601
      %v1428 = vmul.f32 %v1310, %v602
      %v1429 = vmul.f32 %v1311, %v603
      %v1430 = vmul.f32 %v1312, %v604
      %v1431 = vmul.f32 %v1313, %v605
      %v1432 = vmul.f32 %v1372, %v606
      %v1433 = vmul.f32 %v1374, %v607
      %v1434 = vmul.f32 %v1373, %v608
      %v1435 = vmul.f32 %v1375, %v609
      %v1436 = vmul.f32 %v1384, %v610
      %v1437 = vmul.f32 %v1386, %v611
      %v1438 = vmul.f32 %v1385, %v612
      %v1439 = vmul.f32 %v1387, %v613
      %v1440 = vmul.f32 %v1396, %v614
      %v1441 = vmul.f32 %v1398, %v615
      %v1442 = vmul.f32 %v1397, %v616
      %v1443 = vmul.f32 %v1399, %v617
      %v1444 = vmul.f32 %v1408, %v618
      %v1445 = vmul.f32 %v1410, %v619
      %v1446 = vmul.f32 %v1409, %v620
      %v1447 = vmul.f32 %v1411, %v621
      %v1448 = vpack.c.bf16 %v1414, %v1412
      %v1449 = vpack.c.bf16 %v1415, %v1413
      %v1450 = vpack.c.bf16 %v1418, %v1416
      %v1451 = vpack.c.bf16 %v1419, %v1417
      %v1452 = vpack.c.bf16 %v1422, %v1420
      %v1453 = vpack.c.bf16 %v1423, %v1421
      %v1454 = vpack.c.bf16 %v1426, %v1424
      %v1455 = vpack.c.bf16 %v1427, %v1425
      %v1456 = vpack.c.bf16 %v1430, %v1428
      %v1457 = vpack.c.bf16 %v1431, %v1429
      %v1458 = vpack.c.bf16 %v1434, %v1432
      %v1459 = vpack.c.bf16 %v1435, %v1433
      %v1460 = vpack.c.bf16 %v1438, %v1436
      %v1461 = vpack.c.bf16 %v1439, %v1437
      %v1462 = vpack.c.bf16 %v1442, %v1440
      %v1463 = vpack.c.bf16 %v1443, %v1441
      %v1464 = vpack.c.bf16 %v1446, %v1444
      %v1465 = vpack.c.bf16 %v1447, %v1445
      %v1468 = vunpack.c.l.b16 %v1314
      %v1469 = vunpack.c.h.b16 %v1314
      %v1470 = vunpack.c.l.b16 %v1315
      %v1471 = vunpack.c.h.b16 %v1315
      %v1472 = vpack.c.b16 %v1470, %v1468
      %v1473 = vpack.c.b16 %v1471, %v1469
      %v1476 = vsel %vm944, %v1473, 0
      %1478 = vmatprep.subr.bf16.mxu0 %v1449
      %1479 = vmatpush1.bf16.msra.mxu0 %v1448
      %1480 = vmatprep.subr.bf16.mxu0 %v1451
      %1481 = vmatpush1.bf16.msra.mxu0 %v1450
      %1482 = vmatprep.subr.bf16.mxu0 %v1453
      %1483 = vmatpush1.bf16.msra.mxu0 %v1452
      %1484 = vmatprep.subr.bf16.mxu0 %v1455
      %1485 = vmatpush1.bf16.msra.mxu0 %v1454
      %1486 = vmatprep.subr.bf16.mxu0 %v1457
      %1487 = vmatpush1.bf16.msra.mxu0 %v1456
      %1488 = vmatprep.subr.bf16.mxu0 %v1459
      %1489 = vmatpush1.bf16.msra.mxu0 %v1458
      %1490 = vmatprep.subr.bf16.mxu0 %v1461
      %1491 = vmatpush1.bf16.msra.mxu0 %v1460
      %1492 = vmatprep.subr.bf16.mxu0 %v1463
      %1493 = vmatpush1.bf16.msra.mxu0 %v1462
      %1494 = vmatprep.subr.bf16.mxu0 %v1465
      %1495 = vmatpush1.bf16.msra.mxu0 %v1464
      %1496 = vmatprep.subr.bf16.mxu0 0
      %1497 = vmatpush1.bf16.msra.mxu0 0
      %1498 = vmatprep.subr.bf16.mxu0 0
      %1499 = vmatpush1.bf16.msra.mxu0 0
      %1500 = vmatprep.subr.bf16.mxu0 0
      %1501 = vmatpush1.bf16.msra.mxu0 0
      %1502 = vmatprep.subr.bf16.mxu0 0
      %1503 = vmatpush1.bf16.msra.mxu0 0
      %1504 = vmatprep.subr.bf16.mxu0 0
      %1505 = vmatpush1.bf16.msra.mxu0 0
      %1506 = vmatprep.subr.bf16.mxu0 0
      %1507 = vmatpush1.bf16.msra.mxu0 0
      %1508 = vmatprep.subr.bf16.mxu0 0
      %1509 = vmatpush1.bf16.msra.mxu0 0
      %1510 = vmatprep.mubr.bf16.mxu0 %v1476
      %1511 = vmatmul.mubr.bf16.gmra.mrb[0].mxu0 %v1472
      %v1512 = vpop.f32.mrb[0].mxu0
      %v1513 = vadd.f32 0.0, %v1512
      %v1514 = vpop.f32.mrb[0].mxu0
      %v1515 = vadd.f32 0.0, %v1514
      %v1516 = vpop.f32.mrb[0].mxu0
      %v1517 = vadd.f32 0.0, %v1516
      %v1518 = vpop.f32.mrb[0].mxu0
      %v1519 = vadd.f32 0.0, %v1518
      %1520 = vdwg.mxu0
      %v1521 = vmul.f32 %v1513, %v1513
      %v1522 = vmul.f32 %v1515, %v1515
      %v1523 = vmul.f32 %v1517, %v1517
      %v1524 = vmul.f32 %v1519, %v1519
      %1525 = vmatprep.subr.mxu0 0.0
      %1526 = vmatpush1.msra.mxu0 %v550
      %1527 = vmatprep.subr.mxu0 0.0
      %1528 = vmatpush1.msra.mxu0 %v551
      %1529 = vmatprep.subr.mxu0 0.0
      %1530 = vmatpush1.msra.mxu0 %v552
      %1531 = vmatprep.subr.mxu0 0.0
      %1532 = vmatpush1.msra.mxu0 %v553
      %1533 = vmatprep.subr.mxu0 0.0
      %1534 = vmatpush1.msra.mxu0 %v554
      %1535 = vmatprep.subr.mxu0 0.0
      %1536 = vmatpush1.msra.mxu0 %v555
      %1537 = vmatprep.subr.mxu0 0.0
      %1538 = vmatpush1.msra.mxu0 %v556
      %1539 = vmatprep.subr.mxu0 0.0
      %1540 = vmatpush1.msra.mxu0 %v557
      %1541 = vmatprep.subr.mxu0 0.0
      %1542 = vmatpush1.msra.mxu0 %v558
      %1543 = vmatprep.subr.mxu0 0.0
      %1544 = vmatpush1.msra.mxu0 %v559
      %1545 = vmatprep.subr.mxu0 0.0
      %1546 = vmatpush1.msra.mxu0 %v560
      %1547 = vmatprep.subr.mxu0 0.0
      %1548 = vmatpush1.msra.mxu0 %v561
      %1549 = vmatprep.subr.mxu0 0.0
      %1550 = vmatpush1.msra.mxu0 %v562
      %1551 = vmatprep.subr.mxu0 0.0
      %1552 = vmatpush1.msra.mxu0 %v563
      %1553 = vmatprep.subr.mxu0 0.0
      %1554 = vmatpush1.msra.mxu0 %v564
      %1555 = vmatprep.subr.mxu0 0.0
      %1556 = vmatpush1.msra.mxu0 %v565
      %1557 = vmatprep.subr.mxu0 0.0
      %1558 = vmatpush1.msra.mxu0 %v566
      %1559 = vmatprep.subr.mxu0 0.0
      %1560 = vmatpush1.msra.mxu0 %v567
      %1561 = vmatprep.subr.mxu0 0.0
      %1562 = vmatpush1.msra.mxu0 %v568
      %1563 = vmatprep.subr.mxu0 0.0
      %1564 = vmatpush1.msra.mxu0 %v569
      %1565 = vmatprep.subr.mxu0 0.0
      %1566 = vmatpush1.msra.mxu0 %v570
      %1567 = vmatprep.subr.mxu0 0.0
      %1568 = vmatpush1.msra.mxu0 %v571
      %1569 = vmatprep.subr.mxu0 0.0
      %1570 = vmatpush1.msra.mxu0 %v572
      %1571 = vmatprep.subr.mxu0 0.0
      %1572 = vmatpush1.msra.mxu0 %v573
      %1573 = vmatprep.subr.mxu0 0.0
      %1574 = vmatpush1.msra.mxu0 %v574
      %1575 = vmatprep.subr.mxu0 0.0
      %1576 = vmatpush1.msra.mxu0 %v575
      %1577 = vmatprep.subr.mxu0 0.0
      %1578 = vmatpush1.msra.mxu0 %v576
      %1579 = vmatprep.subr.mxu0 0.0
      %1580 = vmatpush1.msra.mxu0 %v577
      %1581 = vmatprep.subr.mxu0 0.0
      %1582 = vmatpush1.msra.mxu0 %v578
      %1583 = vmatprep.subr.mxu0 0.0
      %1584 = vmatpush1.msra.mxu0 %v579
      %1585 = vmatprep.subr.mxu0 0.0
      %1586 = vmatpush1.msra.mxu0 %v580
      %1587 = vmatprep.subr.mxu0 0.0
      %1588 = vmatpush1.msra.mxu0 %v581
      %1589 = vmatprep.mubr.f32.mxu0 %v1515
      %1590 = vmatmul.mubr.f32.gmra.mrb[0].mxu0 %v1513
      %v1591 = vpop.f32.mrb[0].mxu0
      %v1592 = vadd.f32 0.0, %v1591
      %v1593 = vpop.f32.mrb[0].mxu0
      %1594 = vmatprep.mubr.f32.mxu0 %v1519
      %1595 = vmatmul.mubr.f32.gmra.mrb[0].mxu0 %v1517
      %v1596 = vpop.f32.mrb[0].mxu0
      %v1597 = vadd.f32 0.0, %v1596
      %v1598 = vpop.f32.mrb[0].mxu0
      %1599 = vmatprep.mubr.f32.mxu0 %v1522
      %1600 = vmatmul.mubr.f32.gmra.mrb[0].mxu0 %v1521
      %v1601 = vpop.f32.mrb[0].mxu0
      %v1602 = vadd.f32 0.0, %v1601
      %v1603 = vpop.f32.mrb[0].mxu0
      %1604 = vmatprep.mubr.f32.mxu0 %v1524
      %1605 = vmatmul.mubr.f32.gmra.mrb[0].mxu0 %v1523
      %v1606 = vpop.f32.mrb[0].mxu0
      %v1607 = vadd.f32 0.0, %v1606
      %v1608 = vpop.f32.mrb[0].mxu0
      %1609 = vdwg.mxu0
      %v1610 = vmul.f32 %v1592, %v1592
      %v1611 = vmul.f32 %v1597, %v1597
      %v1612 = vsub.f32 %v1602, %v1610
      %v1613 = vsub.f32 %v1607, %v1611
      %v1614 = vmax.f32 %v1612, 0.0
      %v1615 = vmax.f32 %v1613, 0.0
      %v1616 = vadd.f32 %v1614, 1e-05
      %v1617 = vadd.f32 %v1615, 1e-05
      %v1618 = vrsqrt.pop %v1616
      %v1619 = vrsqrt.pop %v1617
      %v1621 = vsel %vm944, %v1592, 0
      %v1624 = vsel %vm944, %v1597, 0
      %1626 = vmatprep.subr.mxu0 %v583
      %1627 = vmatpush1.msra.mxu0 %v582
      %1628 = vmatprep.subr.mxu0 %v585
      %1629 = vmatpush1.msra.mxu0 %v584
      %1630 = vmatprep.subr.mxu0 0.0
      %1631 = vmatpush1.msra.mxu0 0.0
      %1632 = vmatprep.subr.mxu0 0.0
      %1633 = vmatpush1.msra.mxu0 0.0
      %1634 = vmatprep.subr.mxu0 0.0
      %1635 = vmatpush1.msra.mxu0 0.0
      %1636 = vmatprep.subr.mxu0 0.0
      %1637 = vmatpush1.msra.mxu0 0.0
      %1638 = vmatprep.subr.mxu0 0.0
      %1639 = vmatpush1.msra.mxu0 0.0
      %1640 = vmatprep.subr.mxu0 0.0
      %1641 = vmatpush1.msra.mxu0 0.0
      %1642 = vmatprep.subr.mxu0 0.0
      %1643 = vmatpush1.msra.mxu0 0.0
      %1644 = vmatprep.subr.mxu0 0.0
      %1645 = vmatpush1.msra.mxu0 0.0
      %1646 = vmatprep.subr.mxu0 0.0
      %1647 = vmatpush1.msra.mxu0 0.0
      %1648 = vmatprep.subr.mxu0 0.0
      %1649 = vmatpush1.msra.mxu0 0.0
      %1650 = vmatprep.subr.mxu0 0.0
      %1651 = vmatpush1.msra.mxu0 0.0
      %1652 = vmatprep.subr.mxu0 0.0
      %1653 = vmatpush1.msra.mxu0 0.0
      %1654 = vmatprep.subr.mxu0 0.0
      %1655 = vmatpush1.msra.mxu0 0.0
      %1656 = vmatprep.subr.mxu0 0.0
      %1657 = vmatpush1.msra.mxu0 0.0
      %1658 = vmatprep.subr.mxu0 0.0
      %1659 = vmatpush1.msra.mxu0 0.0
      %1660 = vmatprep.subr.mxu0 0.0
      %1661 = vmatpush1.msra.mxu0 0.0
      %1662 = vmatprep.subr.mxu0 0.0
      %1663 = vmatpush1.msra.mxu0 0.0
      %1664 = vmatprep.subr.mxu0 0.0
      %1665 = vmatpush1.msra.mxu0 0.0
      %1666 = vmatprep.subr.mxu0 0.0
      %1667 = vmatpush1.msra.mxu0 0.0
      %1668 = vmatprep.subr.mxu0 0.0
      %1669 = vmatpush1.msra.mxu0 0.0
      %1670 = vmatprep.subr.mxu0 0.0
      %1671 = vmatpush1.msra.mxu0 0.0
      %1672 = vmatprep.subr.mxu0 0.0
      %1673 = vmatpush1.msra.mxu0 0.0
      %1674 = vmatprep.subr.mxu0 0.0
      %1675 = vmatpush1.msra.mxu0 0.0
      %1676 = vmatprep.subr.mxu0 0.0
      %1677 = vmatpush1.msra.mxu0 0.0
      %1678 = vmatprep.subr.mxu0 0.0
      %1679 = vmatpush1.msra.mxu0 0.0
      %1680 = vmatprep.subr.mxu0 0.0
      %1681 = vmatpush1.msra.mxu0 0.0
      %1682 = vmatprep.subr.mxu0 0.0
      %1683 = vmatpush1.msra.mxu0 0.0
      %1684 = vmatprep.subr.mxu0 0.0
      %1685 = vmatpush1.msra.mxu0 0.0
      %1686 = vmatprep.subr.mxu0 0.0
      %1687 = vmatpush1.msra.mxu0 0.0
      %1688 = vmatprep.subr.mxu0 0.0
      %1689 = vmatpush1.msra.mxu0 0.0
      %1690 = vmatprep.mubr.f32.mxu0 0.0
      %1691 = vmatmul.mubr.f32.gmra.mrb[0].mxu0 %v1621
      %v1692 = vpop.f32.mrb[0].mxu0
      %v1693 = vadd.f32 0.0, %v1692
      %v1694 = vpop.f32.mrb[0].mxu0
      %v1695 = vadd.f32 0.0, %v1694
      %1696 = vmatprep.mubr.f32.mxu0 0.0
      %1697 = vmatmul.mubr.f32.gmra.mrb[0].mxu0 %v1624
      %v1698 = vpop.f32.mrb[0].mxu0
      %v1699 = vadd.f32 0.0, %v1698
      %v1700 = vpop.f32.mrb[0].mxu0
      %v1701 = vadd.f32 0.0, %v1700
      %1702 = vdwg.mxu0
      %v1704 = vsel %vm944, %v1618, 0
      %v1707 = vsel %vm944, %v1619, 0
      %1709 = vmatprep.subr.mxu0 %v583
      %1710 = vmatpush1.msra.mxu0 %v582
      %1711 = vmatprep.subr.mxu0 %v585
      %1712 = vmatpush1.msra.mxu0 %v584
      %1713 = vmatprep.subr.mxu0 0.0
      %1714 = vmatpush1.msra.mxu0 0.0
      %1715 = vmatprep.subr.mxu0 0.0
      %1716 = vmatpush1.msra.mxu0 0.0
      %1717 = vmatprep.subr.mxu0 0.0
      %1718 = vmatpush1.msra.mxu0 0.0
      %1719 = vmatprep.subr.mxu0 0.0
      %1720 = vmatpush1.msra.mxu0 0.0
      %1721 = vmatprep.subr.mxu0 0.0
      %1722 = vmatpush1.msra.mxu0 0.0
      %1723 = vmatprep.subr.mxu0 0.0
      %1724 = vmatpush1.msra.mxu0 0.0
      %1725 = vmatprep.subr.mxu0 0.0
      %1726 = vmatpush1.msra.mxu0 0.0
      %1727 = vmatprep.subr.mxu0 0.0
      %1728 = vmatpush1.msra.mxu0 0.0
      %1729 = vmatprep.subr.mxu0 0.0
      %1730 = vmatpush1.msra.mxu0 0.0
      %1731 = vmatprep.subr.mxu0 0.0
      %1732 = vmatpush1.msra.mxu0 0.0
      %1733 = vmatprep.subr.mxu0 0.0
      %1734 = vmatpush1.msra.mxu0 0.0
      %1735 = vmatprep.subr.mxu0 0.0
      %1736 = vmatpush1.msra.mxu0 0.0
      %1737 = vmatprep.subr.mxu0 0.0
      %1738 = vmatpush1.msra.mxu0 0.0
      %1739 = vmatprep.subr.mxu0 0.0
      %1740 = vmatpush1.msra.mxu0 0.0
      %1741 = vmatprep.subr.mxu0 0.0
      %1742 = vmatpush1.msra.mxu0 0.0
      %1743 = vmatprep.subr.mxu0 0.0
      %1744 = vmatpush1.msra.mxu0 0.0
      %1745 = vmatprep.subr.mxu0 0.0
      %1746 = vmatpush1.msra.mxu0 0.0
      %1747 = vmatprep.subr.mxu0 0.0
      %1748 = vmatpush1.msra.mxu0 0.0
      %1749 = vmatprep.subr.mxu0 0.0
      %1750 = vmatpush1.msra.mxu0 0.0
      %1751 = vmatprep.subr.mxu0 0.0
      %1752 = vmatpush1.msra.mxu0 0.0
      %1753 = vmatprep.subr.mxu0 0.0
      %1754 = vmatpush1.msra.mxu0 0.0
      %1755 = vmatprep.subr.mxu0 0.0
      %1756 = vmatpush1.msra.mxu0 0.0
      %1757 = vmatprep.subr.mxu0 0.0
      %1758 = vmatpush1.msra.mxu0 0.0
      %1759 = vmatprep.subr.mxu0 0.0
      %1760 = vmatpush1.msra.mxu0 0.0
      %1761 = vmatprep.subr.mxu0 0.0
      %1762 = vmatpush1.msra.mxu0 0.0
      %1763 = vmatprep.subr.mxu0 0.0
      %1764 = vmatpush1.msra.mxu0 0.0
      %1765 = vmatprep.subr.mxu0 0.0
      %1766 = vmatpush1.msra.mxu0 0.0
      %1767 = vmatprep.subr.mxu0 0.0
      %1768 = vmatpush1.msra.mxu0 0.0
      %1769 = vmatprep.subr.mxu0 0.0
      %1770 = vmatpush1.msra.mxu0 0.0
      %1771 = vmatprep.subr.mxu0 0.0
      %1772 = vmatpush1.msra.mxu0 0.0
      %1773 = vmatprep.mubr.f32.mxu0 0.0
      %1774 = vmatmul.mubr.f32.gmra.mrb[0].mxu0 %v1704
      %v1775 = vpop.f32.mrb[0].mxu0
      %v1776 = vadd.f32 0.0, %v1775
      %v1777 = vpop.f32.mrb[0].mxu0
      %v1778 = vadd.f32 0.0, %v1777
      %1779 = vmatprep.mubr.f32.mxu0 0.0
      %1780 = vmatmul.mubr.f32.gmra.mrb[0].mxu0 %v1707
      %v1781 = vpop.f32.mrb[0].mxu0
      %v1782 = vadd.f32 0.0, %v1781
      %v1783 = vpop.f32.mrb[0].mxu0
      %v1784 = vadd.f32 0.0, %v1783
      %1785 = vdwg.mxu0
      %v1786 = vsub.f32 %v1513, %v1693
      %v1787 = vsub.f32 %v1515, %v1695
      %v1788 = vsub.f32 %v1517, %v1699
      %v1789 = vsub.f32 %v1519, %v1701
      %v1790 = vmul.f32 %v1786, %v1776
      %v1791 = vmul.f32 %v1787, %v1778
      %v1792 = vmul.f32 %v1788, %v1782
      %v1793 = vmul.f32 %v1789, %v1784
      %v1794 = vlaneseq
      %v1795 = vshrl.u32 %v1794, 7
      %v1796 = vsub.s32 1, %v1795
      %v1797 = vrot.slane %v776, %v1796
      %v1798 = vlaneseq
      %v1799 = vshrl.u32 %v1798, 7
      %v1800 = vsub.s32 5, %v1799
      %v1801 = vrot.slane %v776, %v1800
      %v1804 = vlaneseq
      %v1805 = vshrl.u32 %v1804, 7
      %v1806 = vsub.s32 1, %v1805
      %v1807 = vrot.slane %v1797, %v1806
      %v1808 = vlaneseq
      %v1809 = vshrl.u32 %v1808, 7
      %v1810 = vsub.s32 1, %v1809
      %v1811 = vrot.slane %v1801, %v1810
      %v1812 = vmul.f32 %v1790, %v1807
      %v1813 = vmul.f32 %v1791, %v1811
      %v1814 = vmul.f32 %v1792, %v1807
      %v1815 = vmul.f32 %v1793, %v1811
      %v1816 = vlaneseq
      %v1817 = vshrl.u32 %v1816, 7
      %v1818 = vsub.s32 1, %v1817
      %v1819 = vrot.slane %v777, %v1818
      %v1820 = vlaneseq
      %v1821 = vshrl.u32 %v1820, 7
      %v1822 = vsub.s32 5, %v1821
      %v1823 = vrot.slane %v777, %v1822
      %v1826 = vlaneseq
      %v1827 = vshrl.u32 %v1826, 7
      %v1828 = vsub.s32 1, %v1827
      %v1829 = vrot.slane %v1819, %v1828
      %v1830 = vlaneseq
      %v1831 = vshrl.u32 %v1830, 7
      %v1832 = vsub.s32 1, %v1831
      %v1833 = vrot.slane %v1823, %v1832
      %v1834 = vadd.f32 %v1812, %v1829
      %v1835 = vadd.f32 %v1813, %v1833
      %v1836 = vadd.f32 %v1814, %v1829
      %v1837 = vadd.f32 %v1815, %v1833
      %v1838 = vmax.f32 %v1834, 0.0
      %v1839 = vmax.f32 %v1835, 0.0
      %v1840 = vmax.f32 %v1836, 0.0
      %v1841 = vmax.f32 %v1837, 0.0
      %v1842 = vld [vmem:[%s4] sm:$0xf]
      %v1843 = vld [vmem:[%s4 + $0x4] sm:$0xf]
      %v1844 = vpack.c.bf16 %v1840, %v1838
      %v1845 = vpack.c.bf16 %v1841, %v1839
      %v1848 = vunpack.c.l.b16 %v1842
      %v1849 = vunpack.c.l.b16 %v1843
      %v1850 = vpack.c.b16 %v1849, %v1848
      %v1852 = vsel %vm944, %v1850, 0
      %1854 = vmatprep.subr.bf16.mxu0 %v1845
      %1855 = vmatpush1.bf16.msra.mxu0 %v1844
      %1856 = vmatprep.subr.bf16.mxu0 0
      %1857 = vmatpush1.bf16.msra.mxu0 0
      %1858 = vmatprep.subr.bf16.mxu0 0
      %1859 = vmatpush1.bf16.msra.mxu0 0
      %1860 = vmatprep.subr.bf16.mxu0 0
      %1861 = vmatpush1.bf16.msra.mxu0 0
      %1862 = vmatprep.subr.bf16.mxu0 0
      %1863 = vmatpush1.bf16.msra.mxu0 0
      %1864 = vmatprep.subr.bf16.mxu0 0
      %1865 = vmatpush1.bf16.msra.mxu0 0
      %1866 = vmatprep.subr.bf16.mxu0 0
      %1867 = vmatpush1.bf16.msra.mxu0 0
      %1868 = vmatprep.subr.bf16.mxu0 0
      %1869 = vmatpush1.bf16.msra.mxu0 0
      %1870 = vmatprep.subr.bf16.mxu0 0
      %1871 = vmatpush1.bf16.msra.mxu0 0
      %1872 = vmatprep.subr.bf16.mxu0 0
      %1873 = vmatpush1.bf16.msra.mxu0 0
      %1874 = vmatprep.subr.bf16.mxu0 0
      %1875 = vmatpush1.bf16.msra.mxu0 0
      %1876 = vmatprep.subr.bf16.mxu0 0
      %1877 = vmatpush1.bf16.msra.mxu0 0
      %1878 = vmatprep.subr.bf16.mxu0 0
      %1879 = vmatpush1.bf16.msra.mxu0 0
      %1880 = vmatprep.subr.bf16.mxu0 0
      %1881 = vmatpush1.bf16.msra.mxu0 0
      %1882 = vmatprep.subr.bf16.mxu0 0
      %1883 = vmatpush1.bf16.msra.mxu0 0
      %1884 = vmatprep.subr.bf16.mxu0 0
      %1885 = vmatpush1.bf16.msra.mxu0 0
      %1886 = vmatprep.mubr.bf16.mxu0 0
      %1887 = vmatmul.mubr.bf16.gmra.mrb[0].mxu0 %v1852
      %v1888 = vpop.f32.mrb[0].mxu0
      %v1889 = vadd.f32 0.0, %v1888
      %v1890 = vpop.f32.mrb[0].mxu0
      %v1891 = vadd.f32 0.0, %v1890
      %v1892 = vpop.f32.mrb[0].mxu0
      %v1893 = vadd.f32 0.0, %v1892
      %v1894 = vpop.f32.mrb[0].mxu0
      %v1895 = vadd.f32 0.0, %v1894
      %1896 = vdwg.mxu0
      %v1897 = vmul.f32 %v1889, %v1889
      %v1898 = vmul.f32 %v1891, %v1891
      %v1899 = vmul.f32 %v1893, %v1893
      %v1900 = vmul.f32 %v1895, %v1895
      %1901 = vmatprep.subr.mxu0 0.0
      %1902 = vmatpush1.msra.mxu0 %v550
      %1903 = vmatprep.subr.mxu0 0.0
      %1904 = vmatpush1.msra.mxu0 %v551
      %1905 = vmatprep.subr.mxu0 0.0
      %1906 = vmatpush1.msra.mxu0 %v552
      %1907 = vmatprep.subr.mxu0 0.0
      %1908 = vmatpush1.msra.mxu0 %v553
      %1909 = vmatprep.subr.mxu0 0.0
      %1910 = vmatpush1.msra.mxu0 %v554
      %1911 = vmatprep.subr.mxu0 0.0
      %1912 = vmatpush1.msra.mxu0 %v555
      %1913 = vmatprep.subr.mxu0 0.0
      %1914 = vmatpush1.msra.mxu0 %v556
      %1915 = vmatprep.subr.mxu0 0.0
      %1916 = vmatpush1.msra.mxu0 %v557
      %1917 = vmatprep.subr.mxu0 0.0
      %1918 = vmatpush1.msra.mxu0 %v558
      %1919 = vmatprep.subr.mxu0 0.0
      %1920 = vmatpush1.msra.mxu0 %v559
      %1921 = vmatprep.subr.mxu0 0.0
      %1922 = vmatpush1.msra.mxu0 %v560
      %1923 = vmatprep.subr.mxu0 0.0
      %1924 = vmatpush1.msra.mxu0 %v561
      %1925 = vmatprep.subr.mxu0 0.0
      %1926 = vmatpush1.msra.mxu0 %v562
      %1927 = vmatprep.subr.mxu0 0.0
      %1928 = vmatpush1.msra.mxu0 %v563
      %1929 = vmatprep.subr.mxu0 0.0
      %1930 = vmatpush1.msra.mxu0 %v564
      %1931 = vmatprep.subr.mxu0 0.0
      %1932 = vmatpush1.msra.mxu0 %v565
      %1933 = vmatprep.subr.mxu0 0.0
      %1934 = vmatpush1.msra.mxu0 %v566
      %1935 = vmatprep.subr.mxu0 0.0
      %1936 = vmatpush1.msra.mxu0 %v567
      %1937 = vmatprep.subr.mxu0 0.0
      %1938 = vmatpush1.msra.mxu0 %v568
      %1939 = vmatprep.subr.mxu0 0.0
      %1940 = vmatpush1.msra.mxu0 %v569
      %1941 = vmatprep.subr.mxu0 0.0
      %1942 = vmatpush1.msra.mxu0 %v570
      %1943 = vmatprep.subr.mxu0 0.0
      %1944 = vmatpush1.msra.mxu0 %v571
      %1945 = vmatprep.subr.mxu0 0.0
      %1946 = vmatpush1.msra.mxu0 %v572
      %1947 = vmatprep.subr.mxu0 0.0
      %1948 = vmatpush1.msra.mxu0 %v573
      %1949 = vmatprep.subr.mxu0 0.0
      %1950 = vmatpush1.msra.mxu0 %v574
      %1951 = vmatprep.subr.mxu0 0.0
      %1952 = vmatpush1.msra.mxu0 %v575
      %1953 = vmatprep.subr.mxu0 0.0
      %1954 = vmatpush1.msra.mxu0 %v576
      %1955 = vmatprep.subr.mxu0 0.0
      %1956 = vmatpush1.msra.mxu0 %v577
      %1957 = vmatprep.subr.mxu0 0.0
      %1958 = vmatpush1.msra.mxu0 %v578
      %1959 = vmatprep.subr.mxu0 0.0
      %1960 = vmatpush1.msra.mxu0 %v579
      %1961 = vmatprep.subr.mxu0 0.0
      %1962 = vmatpush1.msra.mxu0 %v580
      %1963 = vmatprep.subr.mxu0 0.0
      %1964 = vmatpush1.msra.mxu0 %v581
      %1965 = vmatprep.mubr.f32.mxu0 %v1891
      %1966 = vmatmul.mubr.f32.gmra.mrb[0].mxu0 %v1889
      %v1967 = vpop.f32.mrb[0].mxu0
      %v1968 = vadd.f32 0.0, %v1967
      %v1969 = vpop.f32.mrb[0].mxu0
      %1970 = vmatprep.mubr.f32.mxu0 %v1895
      %1971 = vmatmul.mubr.f32.gmra.mrb[0].mxu0 %v1893
      %v1972 = vpop.f32.mrb[0].mxu0
      %v1973 = vadd.f32 0.0, %v1972
      %v1974 = vpop.f32.mrb[0].mxu0
      %1975 = vmatprep.mubr.f32.mxu0 %v1898
      %1976 = vmatmul.mubr.f32.gmra.mrb[0].mxu0 %v1897
      %v1977 = vpop.f32.mrb[0].mxu0
      %v1978 = vadd.f32 0.0, %v1977
      %v1979 = vpop.f32.mrb[0].mxu0
      %1980 = vmatprep.mubr.f32.mxu0 %v1900
      %1981 = vmatmul.mubr.f32.gmra.mrb[0].mxu0 %v1899
      %v1982 = vpop.f32.mrb[0].mxu0
      %v1983 = vadd.f32 0.0, %v1982
      %v1984 = vpop.f32.mrb[0].mxu0
      %1985 = vdwg.mxu0
      %v1986 = vmul.f32 %v1968, %v1968
      %v1987 = vmul.f32 %v1973, %v1973
      %v1988 = vsub.f32 %v1978, %v1986
      %v1989 = vsub.f32 %v1983, %v1987
      %v1990 = vmax.f32 %v1988, 0.0
      %v1991 = vmax.f32 %v1989, 0.0
      %v1992 = vadd.f32 %v1990, 1e-05
      %v1993 = vadd.f32 %v1991, 1e-05
      %v1994 = vrsqrt.pop %v1992
      %v1995 = vrsqrt.pop %v1993
      %v1997 = vsel %vm944, %v1968, 0
      %v2000 = vsel %vm944, %v1973, 0
      %2002 = vmatprep.subr.mxu0 %v583
      %2003 = vmatpush1.msra.mxu0 %v582
      %2004 = vmatprep.subr.mxu0 %v585
      %2005 = vmatpush1.msra.mxu0 %v584
      %2006 = vmatprep.subr.mxu0 0.0
      %2007 = vmatpush1.msra.mxu0 0.0
      %2008 = vmatprep.subr.mxu0 0.0
      %2009 = vmatpush1.msra.mxu0 0.0
      %2010 = vmatprep.subr.mxu0 0.0
      %2011 = vmatpush1.msra.mxu0 0.0
      %2012 = vmatprep.subr.mxu0 0.0
      %2013 = vmatpush1.msra.mxu0 0.0
      %2014 = vmatprep.subr.mxu0 0.0
      %2015 = vmatpush1.msra.mxu0 0.0
      %2016 = vmatprep.subr.mxu0 0.0
      %2017 = vmatpush1.msra.mxu0 0.0
      %2018 = vmatprep.subr.mxu0 0.0
      %2019 = vmatpush1.msra.mxu0 0.0
      %2020 = vmatprep.subr.mxu0 0.0
      %2021 = vmatpush1.msra.mxu0 0.0
      %2022 = vmatprep.subr.mxu0 0.0
      %2023 = vmatpush1.msra.mxu0 0.0
      %2024 = vmatprep.subr.mxu0 0.0
      %2025 = vmatpush1.msra.mxu0 0.0
      %2026 = vmatprep.subr.mxu0 0.0
      %2027 = vmatpush1.msra.mxu0 0.0
      %2028 = vmatprep.subr.mxu0 0.0
      %2029 = vmatpush1.msra.mxu0 0.0
      %2030 = vmatprep.subr.mxu0 0.0
      %2031 = vmatpush1.msra.mxu0 0.0
      %2032 = vmatprep.subr.mxu0 0.0
      %2033 = vmatpush1.msra.mxu0 0.0
      %2034 = vmatprep.subr.mxu0 0.0
      %2035 = vmatpush1.msra.mxu0 0.0
      %2036 = vmatprep.subr.mxu0 0.0
      %2037 = vmatpush1.msra.mxu0 0.0
      %2038 = vmatprep.subr.mxu0 0.0
      %2039 = vmatpush1.msra.mxu0 0.0
      %2040 = vmatprep.subr.mxu0 0.0
      %2041 = vmatpush1.msra.mxu0 0.0
      %2042 = vmatprep.subr.mxu0 0.0
      %2043 = vmatpush1.msra.mxu0 0.0
      %2044 = vmatprep.subr.mxu0 0.0
      %2045 = vmatpush1.msra.mxu0 0.0
      %2046 = vmatprep.subr.mxu0 0.0
      %2047 = vmatpush1.msra.mxu0 0.0
      %2048 = vmatprep.subr.mxu0 0.0
      %2049 = vmatpush1.msra.mxu0 0.0
      %2050 = vmatprep.subr.mxu0 0.0
      %2051 = vmatpush1.msra.mxu0 0.0
      %2052 = vmatprep.subr.mxu0 0.0
      %2053 = vmatpush1.msra.mxu0 0.0
      %2054 = vmatprep.subr.mxu0 0.0
      %2055 = vmatpush1.msra.mxu0 0.0
      %2056 = vmatprep.subr.mxu0 0.0
      %2057 = vmatpush1.msra.mxu0 0.0
      %2058 = vmatprep.subr.mxu0 0.0
      %2059 = vmatpush1.msra.mxu0 0.0
      %2060 = vmatprep.subr.mxu0 0.0
      %2061 = vmatpush1.msra.mxu0 0.0
      %2062 = vmatprep.subr.mxu0 0.0
      %2063 = vmatpush1.msra.mxu0 0.0
      %2064 = vmatprep.subr.mxu0 0.0
      %2065 = vmatpush1.msra.mxu0 0.0
      %2066 = vmatprep.mubr.f32.mxu0 0.0
      %2067 = vmatmul.mubr.f32.gmra.mrb[0].mxu0 %v1997
      %v2068 = vpop.f32.mrb[0].mxu0
      %v2069 = vadd.f32 0.0, %v2068
      %v2070 = vpop.f32.mrb[0].mxu0
      %v2071 = vadd.f32 0.0, %v2070
      %2072 = vmatprep.mubr.f32.mxu0 0.0
      %2073 = vmatmul.mubr.f32.gmra.mrb[0].mxu0 %v2000
      %v2074 = vpop.f32.mrb[0].mxu0
      %v2075 = vadd.f32 0.0, %v2074
      %v2076 = vpop.f32.mrb[0].mxu0
      %v2077 = vadd.f32 0.0, %v2076
      %2078 = vdwg.mxu0
      %v2080 = vsel %vm944, %v1994, 0
      %v2083 = vsel %vm944, %v1995, 0
      %2085 = vmatprep.subr.mxu0 %v583
      %2086 = vmatpush1.msra.mxu0 %v582
      %2087 = vmatprep.subr.mxu0 %v585
      %2088 = vmatpush1.msra.mxu0 %v584
      %2089 = vmatprep.subr.mxu0 0.0
      %2090 = vmatpush1.msra.mxu0 0.0
      %2091 = vmatprep.subr.mxu0 0.0
      %2092 = vmatpush1.msra.mxu0 0.0
      %2093 = vmatprep.subr.mxu0 0.0
      %2094 = vmatpush1.msra.mxu0 0.0
      %2095 = vmatprep.subr.mxu0 0.0
      %2096 = vmatpush1.msra.mxu0 0.0
      %2097 = vmatprep.subr.mxu0 0.0
      %2098 = vmatpush1.msra.mxu0 0.0
      %2099 = vmatprep.subr.mxu0 0.0
      %2100 = vmatpush1.msra.mxu0 0.0
      %2101 = vmatprep.subr.mxu0 0.0
      %2102 = vmatpush1.msra.mxu0 0.0
      %2103 = vmatprep.subr.mxu0 0.0
      %2104 = vmatpush1.msra.mxu0 0.0
      %2105 = vmatprep.subr.mxu0 0.0
      %2106 = vmatpush1.msra.mxu0 0.0
      %2107 = vmatprep.subr.mxu0 0.0
      %2108 = vmatpush1.msra.mxu0 0.0
      %2109 = vmatprep.subr.mxu0 0.0
      %2110 = vmatpush1.msra.mxu0 0.0
      %2111 = vmatprep.subr.mxu0 0.0
      %2112 = vmatpush1.msra.mxu0 0.0
      %2113 = vmatprep.subr.mxu0 0.0
      %2114 = vmatpush1.msra.mxu0 0.0
      %2115 = vmatprep.subr.mxu0 0.0
      %2116 = vmatpush1.msra.mxu0 0.0
      %2117 = vmatprep.subr.mxu0 0.0
      %2118 = vmatpush1.msra.mxu0 0.0
      %2119 = vmatprep.subr.mxu0 0.0
      %2120 = vmatpush1.msra.mxu0 0.0
      %2121 = vmatprep.subr.mxu0 0.0
      %2122 = vmatpush1.msra.mxu0 0.0
      %2123 = vmatprep.subr.mxu0 0.0
      %2124 = vmatpush1.msra.mxu0 0.0
      %2125 = vmatprep.subr.mxu0 0.0
      %2126 = vmatpush1.msra.mxu0 0.0
      %2127 = vmatprep.subr.mxu0 0.0
      %2128 = vmatpush1.msra.mxu0 0.0
      %2129 = vmatprep.subr.mxu0 0.0
      %2130 = vmatpush1.msra.mxu0 0.0
      %2131 = vmatprep.subr.mxu0 0.0
      %2132 = vmatpush1.msra.mxu0 0.0
      %2133 = vmatprep.subr.mxu0 0.0
      %2134 = vmatpush1.msra.mxu0 0.0
      %2135 = vmatprep.subr.mxu0 0.0
      %2136 = vmatpush1.msra.mxu0 0.0
      %2137 = vmatprep.subr.mxu0 0.0
      %2138 = vmatpush1.msra.mxu0 0.0
      %2139 = vmatprep.subr.mxu0 0.0
      %2140 = vmatpush1.msra.mxu0 0.0
      %2141 = vmatprep.subr.mxu0 0.0
      %2142 = vmatpush1.msra.mxu0 0.0
      %2143 = vmatprep.subr.mxu0 0.0
      %2144 = vmatpush1.msra.mxu0 0.0
      %2145 = vmatprep.subr.mxu0 0.0
      %2146 = vmatpush1.msra.mxu0 0.0
      %2147 = vmatprep.subr.mxu0 0.0
      %2148 = vmatpush1.msra.mxu0 0.0
      %2149 = vmatprep.mubr.f32.mxu0 0.0
      %2150 = vmatmul.mubr.f32.gmra.mrb[0].mxu0 %v2080
      %v2151 = vpop.f32.mrb[0].mxu0
      %v2152 = vadd.f32 0.0, %v2151
      %v2153 = vpop.f32.mrb[0].mxu0
      %v2154 = vadd.f32 0.0, %v2153
      %2155 = vmatprep.mubr.f32.mxu0 0.0
      %2156 = vmatmul.mubr.f32.gmra.mrb[0].mxu0 %v2083
      %v2157 = vpop.f32.mrb[0].mxu0
      %v2158 = vadd.f32 0.0, %v2157
      %v2159 = vpop.f32.mrb[0].mxu0
      %v2160 = vadd.f32 0.0, %v2159
      %2161 = vdwg.mxu0
      %v2162 = vsub.f32 %v1889, %v2069
      %v2163 = vsub.f32 %v1891, %v2071
      %v2164 = vsub.f32 %v1893, %v2075
      %v2165 = vsub.f32 %v1895, %v2077
      %v2166 = vmul.f32 %v2162, %v2152
      %v2167 = vmul.f32 %v2163, %v2154
      %v2168 = vmul.f32 %v2164, %v2158
      %v2169 = vmul.f32 %v2165, %v2160
      %v2170 = vlaneseq
      %v2171 = vshrl.u32 %v2170, 7
      %v2172 = vsub.s32 2, %v2171
      %v2173 = vrot.slane %v776, %v2172
      %v2174 = vlaneseq
      %v2175 = vshrl.u32 %v2174, 7
      %v2176 = vsub.s32 6, %v2175
      %v2177 = vrot.slane %v776, %v2176
      %v2180 = vlaneseq
      %v2181 = vshrl.u32 %v2180, 7
      %v2182 = vsub.s32 2, %v2181
      %v2183 = vrot.slane %v2173, %v2182
      %v2184 = vlaneseq
      %v2185 = vshrl.u32 %v2184, 7
      %v2186 = vsub.s32 2, %v2185
      %v2187 = vrot.slane %v2177, %v2186
      %v2188 = vmul.f32 %v2166, %v2183
      %v2189 = vmul.f32 %v2167, %v2187
      %v2190 = vmul.f32 %v2168, %v2183
      %v2191 = vmul.f32 %v2169, %v2187
      %v2192 = vlaneseq
      %v2193 = vshrl.u32 %v2192, 7
      %v2194 = vsub.s32 2, %v2193
      %v2195 = vrot.slane %v777, %v2194
      %v2196 = vlaneseq
      %v2197 = vshrl.u32 %v2196, 7
      %v2198 = vsub.s32 6, %v2197
      %v2199 = vrot.slane %v777, %v2198
      %v2202 = vlaneseq
      %v2203 = vshrl.u32 %v2202, 7
      %v2204 = vsub.s32 2, %v2203
      %v2205 = vrot.slane %v2195, %v2204
      %v2206 = vlaneseq
      %v2207 = vshrl.u32 %v2206, 7
      %v2208 = vsub.s32 2, %v2207
      %v2209 = vrot.slane %v2199, %v2208
      %v2210 = vadd.f32 %v2188, %v2205
      %v2211 = vadd.f32 %v2189, %v2209
      %v2212 = vadd.f32 %v2190, %v2205
      %v2213 = vadd.f32 %v2191, %v2209
      %v2214 = vpack.c.bf16 %v774, %v772
      %v2215 = vpack.c.bf16 %v775, %v773
      %v2216 = vpack.c.bf16 %v1312, %v1310
      %v2217 = vpack.c.bf16 %v1313, %v1311
      %v2218 = vpack.c.bf16 %v2212, %v2210
      %v2219 = vpack.c.bf16 %v2213, %v2211
      %v2220 = vld [vmem:[%s5] sm:$0xf]
      %v2221 = vld [vmem:[%s5 + $0x4] sm:$0xf]
      %v2224 = vunpack.c.l.b16 %v2220
      %v2225 = vunpack.c.l.b16 %v2221
      %v2226 = vpack.c.b16 %v2225, %v2224
      %vm2227 = vcmask 523264
      %v2229 = vsel %vm2227, %v2226, 0
      %2231 = vmatprep.subr.bf16.mxu0 %v2215
      %2232 = vmatpush1.bf16.msra.mxu0 %v2214
      %2233 = vmatprep.subr.bf16.mxu0 %v2217
      %2234 = vmatpush1.bf16.msra.mxu0 %v2216
      %2235 = vmatprep.subr.bf16.mxu0 %v1845
      %2236 = vmatpush1.bf16.msra.mxu0 %v1844
      %2237 = vmatprep.subr.bf16.mxu0 %v2219
      %2238 = vmatpush1.bf16.msra.mxu0 %v2218
      %2239 = vmatprep.subr.bf16.mxu0 0
      %2240 = vmatpush1.bf16.msra.mxu0 0
      %2241 = vmatprep.subr.bf16.mxu0 0
      %2242 = vmatpush1.bf16.msra.mxu0 0
      %2243 = vmatprep.subr.bf16.mxu0 0
      %2244 = vmatpush1.bf16.msra.mxu0 0
      %2245 = vmatprep.subr.bf16.mxu0 0
      %2246 = vmatpush1.bf16.msra.mxu0 0
      %2247 = vmatprep.subr.bf16.mxu0 0
      %2248 = vmatpush1.bf16.msra.mxu0 0
      %2249 = vmatprep.subr.bf16.mxu0 0
      %2250 = vmatpush1.bf16.msra.mxu0 0
      %2251 = vmatprep.subr.bf16.mxu0 0
      %2252 = vmatpush1.bf16.msra.mxu0 0
      %2253 = vmatprep.subr.bf16.mxu0 0
      %2254 = vmatpush1.bf16.msra.mxu0 0
      %2255 = vmatprep.subr.bf16.mxu0 0
      %2256 = vmatpush1.bf16.msra.mxu0 0
      %2257 = vmatprep.subr.bf16.mxu0 0
      %2258 = vmatpush1.bf16.msra.mxu0 0
      %2259 = vmatprep.subr.bf16.mxu0 0
      %2260 = vmatpush1.bf16.msra.mxu0 0
      %2261 = vmatprep.subr.bf16.mxu0 0
      %2262 = vmatpush1.bf16.msra.mxu0 0
      %2263 = vmatprep.mubr.bf16.mxu0 0
      %2264 = vmatmul.mubr.bf16.gmra.mrb[0].mxu0 %v2229
      %v2265 = vpop.f32.mrb[0].mxu0
      %v2266 = vadd.f32 0.0, %v2265
      %v2267 = vpop.f32.mrb[0].mxu0
      %v2268 = vadd.f32 0.0, %v2267
      %v2269 = vpop.f32.mrb[0].mxu0
      %v2270 = vadd.f32 0.0, %v2269
      %v2271 = vpop.f32.mrb[0].mxu0
      %v2272 = vadd.f32 0.0, %v2271
      %2273 = vdwg.mxu0
      %v2274 = vadd.f32 %v2266, %v2268
      %2275 = vadd.xlane.f32.xlu0 %v2274
      %v2276 = vpop.xlane.xlu0 %2275
      %v2277 = vadd.f32 %v2270, %v2272
      %2278 = vadd.xlane.f32.xlu0 %v2277
      %v2279 = vpop.xlane.xlu0 %2278
      %v2280 = vrcp.pop 256.0
      %v2281 = vmul.f32 %v2276, %v2280
      %v2282 = vmul.f32 %v2279, %v2280
      %v2283 = vld [vmem:[%s6] sm:$0x1]
      %v2285 = vsel %vm944, %v2283, 0
      %2287 = vmatprep.subr.mxu0 0.0
      %2288 = vmatpush1.msra.mxu0 %v2281
      %2289 = vmatprep.subr.mxu0 0.0
      %2290 = vmatpush1.msra.mxu0 %v2282
      %2291 = vmatprep.subr.mxu0 0.0
      %2292 = vmatpush1.msra.mxu0 0.0
      %2293 = vmatprep.subr.mxu0 0.0
      %2294 = vmatpush1.msra.mxu0 0.0
      %2295 = vmatprep.subr.mxu0 0.0
      %2296 = vmatpush1.msra.mxu0 0.0
      %2297 = vmatprep.subr.mxu0 0.0
      %2298 = vmatpush1.msra.mxu0 0.0
      %2299 = vmatprep.subr.mxu0 0.0
      %2300 = vmatpush1.msra.mxu0 0.0
      %2301 = vmatprep.subr.mxu0 0.0
      %2302 = vmatpush1.msra.mxu0 0.0
      %2303 = vmatprep.subr.mxu0 0.0
      %2304 = vmatpush1.msra.mxu0 0.0
      %2305 = vmatprep.subr.mxu0 0.0
      %2306 = vmatpush1.msra.mxu0 0.0
      %2307 = vmatprep.subr.mxu0 0.0
      %2308 = vmatpush1.msra.mxu0 0.0
      %2309 = vmatprep.subr.mxu0 0.0
      %2310 = vmatpush1.msra.mxu0 0.0
      %2311 = vmatprep.subr.mxu0 0.0
      %2312 = vmatpush1.msra.mxu0 0.0
      %2313 = vmatprep.subr.mxu0 0.0
      %2314 = vmatpush1.msra.mxu0 0.0
      %2315 = vmatprep.subr.mxu0 0.0
      %2316 = vmatpush1.msra.mxu0 0.0
      %2317 = vmatprep.subr.mxu0 0.0
      %2318 = vmatpush1.msra.mxu0 0.0
      %2319 = vmatprep.subr.mxu0 0.0
      %2320 = vmatpush1.msra.mxu0 0.0
      %2321 = vmatprep.subr.mxu0 0.0
      %2322 = vmatpush1.msra.mxu0 0.0
      %2323 = vmatprep.subr.mxu0 0.0
      %2324 = vmatpush1.msra.mxu0 0.0
      %2325 = vmatprep.subr.mxu0 0.0
      %2326 = vmatpush1.msra.mxu0 0.0
      %2327 = vmatprep.subr.mxu0 0.0
      %2328 = vmatpush1.msra.mxu0 0.0
      %2329 = vmatprep.subr.mxu0 0.0
      %2330 = vmatpush1.msra.mxu0 0.0
      %2331 = vmatprep.subr.mxu0 0.0
      %2332 = vmatpush1.msra.mxu0 0.0
      %2333 = vmatprep.subr.mxu0 0.0
      %2334 = vmatpush1.msra.mxu0 0.0
      %2335 = vmatprep.subr.mxu0 0.0
      %2336 = vmatpush1.msra.mxu0 0.0
      %2337 = vmatprep.subr.mxu0 0.0
      %2338 = vmatpush1.msra.mxu0 0.0
      %2339 = vmatprep.subr.mxu0 0.0
      %2340 = vmatpush1.msra.mxu0 0.0
      %2341 = vmatprep.subr.mxu0 0.0
      %2342 = vmatpush1.msra.mxu0 0.0
      %2343 = vmatprep.subr.mxu0 0.0
      %2344 = vmatpush1.msra.mxu0 0.0
      %2345 = vmatprep.subr.mxu0 0.0
      %2346 = vmatpush1.msra.mxu0 0.0
      %2347 = vmatprep.subr.mxu0 0.0
      %2348 = vmatpush1.msra.mxu0 0.0
      %2349 = vmatprep.subr.mxu0 0.0
      %2350 = vmatpush1.msra.mxu0 0.0
      %2351 = vmatprep.mubr.f32.mxu0 0.0
      %2352 = vmatmul.mubr.f32.gmra.mrb[0].mxu0 %v2285
      %v2353 = vpop.f32.mrb[0].mxu0
      %v2354 = vadd.f32 0.0, %v2353
      %v2355 = vpop.f32.mrb[0].mxu0
      %2356 = vdwg.mxu0
      %v2357 = vmax.f32 %v2354, 0.0
      %v2358 = vld [vmem:[%s7] sm:$0xff]
      %v2359 = vld [vmem:[%s7 + $0x8] sm:$0xff]
      %vm2360 = vcmask 7168
      %v2362 = vsel %vm2360, %v2358, 0
      %v2365 = vsel %vm2360, %v2359, 0
      %vm2367 = vcmask 1040384
      %v2369 = vsel %vm2367, %v2357, 0
      %2371 = vmatprep.subr.mxu0 0.0
      %2372 = vmatpush1.msra.mxu0 %v2369
      %2373 = vmatprep.subr.mxu0 0.0
      %2374 = vmatpush1.msra.mxu0 0.0
      %2375 = vmatprep.subr.mxu0 0.0
      %2376 = vmatpush1.msra.mxu0 0.0
      %2377 = vmatprep.subr.mxu0 0.0
      %2378 = vmatpush1.msra.mxu0 0.0
      %2379 = vmatprep.subr.mxu0 0.0
      %2380 = vmatpush1.msra.mxu0 0.0
      %2381 = vmatprep.subr.mxu0 0.0
      %2382 = vmatpush1.msra.mxu0 0.0
      %2383 = vmatprep.subr.mxu0 0.0
      %2384 = vmatpush1.msra.mxu0 0.0
      %2385 = vmatprep.subr.mxu0 0.0
      %2386 = vmatpush1.msra.mxu0 0.0
      %2387 = vmatprep.subr.mxu0 0.0
      %2388 = vmatpush1.msra.mxu0 0.0
      %2389 = vmatprep.subr.mxu0 0.0
      %2390 = vmatpush1.msra.mxu0 0.0
      %2391 = vmatprep.subr.mxu0 0.0
      %2392 = vmatpush1.msra.mxu0 0.0
      %2393 = vmatprep.subr.mxu0 0.0
      %2394 = vmatpush1.msra.mxu0 0.0
      %2395 = vmatprep.subr.mxu0 0.0
      %2396 = vmatpush1.msra.mxu0 0.0
      %2397 = vmatprep.subr.mxu0 0.0
      %2398 = vmatpush1.msra.mxu0 0.0
      %2399 = vmatprep.subr.mxu0 0.0
      %2400 = vmatpush1.msra.mxu0 0.0
      %2401 = vmatprep.subr.mxu0 0.0
      %2402 = vmatpush1.msra.mxu0 0.0
      %2403 = vmatprep.subr.mxu0 0.0
      %2404 = vmatpush1.msra.mxu0 0.0
      %2405 = vmatprep.subr.mxu0 0.0
      %2406 = vmatpush1.msra.mxu0 0.0
      %2407 = vmatprep.subr.mxu0 0.0
      %2408 = vmatpush1.msra.mxu0 0.0
      %2409 = vmatprep.subr.mxu0 0.0
      %2410 = vmatpush1.msra.mxu0 0.0
      %2411 = vmatprep.subr.mxu0 0.0
      %2412 = vmatpush1.msra.mxu0 0.0
      %2413 = vmatprep.subr.mxu0 0.0
      %2414 = vmatpush1.msra.mxu0 0.0
      %2415 = vmatprep.subr.mxu0 0.0
      %2416 = vmatpush1.msra.mxu0 0.0
      %2417 = vmatprep.subr.mxu0 0.0
      %2418 = vmatpush1.msra.mxu0 0.0
      %2419 = vmatprep.subr.mxu0 0.0
      %2420 = vmatpush1.msra.mxu0 0.0
      %2421 = vmatprep.subr.mxu0 0.0
      %2422 = vmatpush1.msra.mxu0 0.0
      %2423 = vmatprep.subr.mxu0 0.0
      %2424 = vmatpush1.msra.mxu0 0.0
      %2425 = vmatprep.subr.mxu0 0.0
      %2426 = vmatpush1.msra.mxu0 0.0
      %2427 = vmatprep.subr.mxu0 0.0
      %2428 = vmatpush1.msra.mxu0 0.0
      %2429 = vmatprep.subr.mxu0 0.0
      %2430 = vmatpush1.msra.mxu0 0.0
      %2431 = vmatprep.subr.mxu0 0.0
      %2432 = vmatpush1.msra.mxu0 0.0
      %2433 = vmatprep.subr.mxu0 0.0
      %2434 = vmatpush1.msra.mxu0 0.0
      %2435 = vmatprep.mubr.f32.mxu0 0.0
      %2436 = vmatmul.mubr.f32.gmra.mrb[0].mxu0 %v2362
      %v2437 = vpop.f32.mrb[0].mxu0
      %v2438 = vadd.f32 0.0, %v2437
      %v2439 = vpop.f32.mrb[0].mxu0
      %2440 = vmatprep.mubr.f32.mxu0 0.0
      %2441 = vmatmul.mubr.f32.gmra.mrb[0].mxu0 %v2365
      %v2442 = vpop.f32.mrb[0].mxu0
      %v2443 = vadd.f32 0.0, %v2442
      %v2444 = vpop.f32.mrb[0].mxu0
      %2445 = vdwg.mxu0
      %v2446 = vxor.u32 %v2438, 2147483648
      %v2447 = vxor.u32 %v2443, 2147483648
      %v2448 = vmul.f32 %v2446, 1.442695
      %v2449 = vpow.pop %v2448
      %v2450 = vmul.f32 %v2447, 1.442695
      %v2451 = vpow.pop %v2450
      %v2452 = vadd.f32 %v2449, 1.0
      %v2453 = vadd.f32 %v2451, 1.0
      %v2454 = vrcp.pop %v2452
      %v2455 = vmul.f32 1.0, %v2454
      %v2456 = vrcp.pop %v2453
      %v2457 = vmul.f32 1.0, %v2456
      %2459 = vset.pattern.permute.xlu0 0
      %2460 = vperm.xlu0 %2459, %v2455
      %v2461 = vpop.permute.xlu0 %2460
      %2464 = vset.pattern.permute.xlu0 0
      %2465 = vperm.xlu0 %2464, %v2457
      %v2466 = vpop.permute.xlu0 %2465
      %v2468 = vmul.f32 %v2266, %v2461
      %v2469 = vmul.f32 %v2268, %v2461
      %v2470 = vmul.f32 %v2270, %v2466
      %v2471 = vmul.f32 %v2272, %v2466
      %v2472 = vadd.f32 %v2468, %v772
      %v2473 = vadd.f32 %v2469, %v773
      %v2474 = vadd.f32 %v2470, %v774
      %v2475 = vadd.f32 %v2471, %v775
      %v2476 = vmax.f32 %v2472, 0.0
      %v2477 = vmax.f32 %v2473, 0.0
      %v2478 = vmax.f32 %v2474, 0.0
      %v2479 = vmax.f32 %v2475, 0.0
      %s2480 = scalar_lea.vmem %s8, 8
      %v2481 = vld [vmem:[%s2480] sm:$0x77]
      %s2482 = scalar_lea.vmem %s9, 8
      %v2483 = vld [vmem:[%s2482] sm:$0x77]
      %s2484 = scalar_lea.vmem %s2, 16
      %v2485 = vld [vmem:[%s2484] sm:$0xff]
      %v2486 = vld [vmem:[%s2484 + $0x8] sm:$0xff]
      %2487 = vrot.lane.b32.xlu0 %v2476, 17
      %v2488 = vpop.permute.xlu0 %2487
      %2489 = vrot.lane.b32.xlu0 %v2478, 17
      %v2490 = vpop.permute.xlu0 %2489
      %2491 = vrot.lane.b32.xlu0 %v2477, 17
      %v2492 = vpop.permute.xlu0 %2491
      %2493 = vrot.lane.b32.xlu0 %v2479, 17
      %v2494 = vpop.permute.xlu0 %2493
      %v2495 = vsel %vm636, %v2488, %v2492
      %v2496 = vsel %vm636, %v2490, %v2494
      %v2497 = vsel %vm636, %v2492, %v2488
      %v2498 = vsel %vm636, %v2494, %v2490
      %2499 = vrot.lane.b32.xlu0 %v2476, 16
      %v2500 = vpop.permute.xlu0 %2499
      %2501 = vrot.lane.b32.xlu0 %v2478, 16
      %v2502 = vpop.permute.xlu0 %2501
      %2503 = vrot.lane.b32.xlu0 %v2477, 16
      %v2504 = vpop.permute.xlu0 %2503
      %2505 = vrot.lane.b32.xlu0 %v2479, 16
      %v2506 = vpop.permute.xlu0 %2505
      %v2507 = vsel %vm643, %v2500, %v2504
      %v2508 = vsel %vm643, %v2502, %v2506
      %v2509 = vsel %vm643, %v2504, %v2500
      %v2510 = vsel %vm643, %v2506, %v2502
      %2511 = vrot.lane.b32.xlu0 %v2476, 15
      %v2512 = vpop.permute.xlu0 %2511
      %2513 = vrot.lane.b32.xlu0 %v2478, 15
      %v2514 = vpop.permute.xlu0 %2513
      %2515 = vrot.lane.b32.xlu0 %v2477, 15
      %v2516 = vpop.permute.xlu0 %2515
      %2517 = vrot.lane.b32.xlu0 %v2479, 15
      %v2518 = vpop.permute.xlu0 %2517
      %v2519 = vsel %vm812, %v2512, %v2516
      %v2520 = vsel %vm812, %v2514, %v2518
      %v2521 = vsel %vm812, %v2516, %v2512
      %v2522 = vsel %vm812, %v2518, %v2514
      %2523 = vrot.lane.b32.xlu0 %v2476, 1
      %v2524 = vpop.permute.xlu0 %2523
      %2525 = vrot.lane.b32.xlu0 %v2478, 1
      %v2526 = vpop.permute.xlu0 %2525
      %2527 = vrot.lane.b32.xlu0 %v2477, 1
      %v2528 = vpop.permute.xlu0 %2527
      %2529 = vrot.lane.b32.xlu0 %v2479, 1
      %v2530 = vpop.permute.xlu0 %2529
      %v2531 = vsel %vm656, %v2524, %v2528
      %v2532 = vsel %vm656, %v2526, %v2530
      %v2533 = vsel %vm656, %v2528, %v2524
      %v2534 = vsel %vm656, %v2530, %v2526
      %2535 = vrot.lane.b32.xlu0 %v2476, 127
      %v2536 = vpop.permute.xlu0 %2535
      %2537 = vrot.lane.b32.xlu0 %v2478, 127
      %v2538 = vpop.permute.xlu0 %2537
      %2539 = vrot.lane.b32.xlu0 %v2477, 127
      %v2540 = vpop.permute.xlu0 %2539
      %2541 = vrot.lane.b32.xlu0 %v2479, 127
      %v2542 = vpop.permute.xlu0 %2541
      %v2543 = vsel %vm837, %v2536, %v2540
      %v2544 = vsel %vm837, %v2538, %v2542
      %v2545 = vsel %vm837, %v2540, %v2536
      %v2546 = vsel %vm837, %v2542, %v2538
      %2547 = vrot.lane.b32.xlu0 %v2476, 113
      %v2548 = vpop.permute.xlu0 %2547
      %2549 = vrot.lane.b32.xlu0 %v2478, 113
      %v2550 = vpop.permute.xlu0 %2549
      %2551 = vrot.lane.b32.xlu0 %v2477, 113
      %v2552 = vpop.permute.xlu0 %2551
      %2553 = vrot.lane.b32.xlu0 %v2479, 113
      %v2554 = vpop.permute.xlu0 %2553
      %v2555 = vsel %vm850, %v2548, %v2552
      %v2556 = vsel %vm850, %v2550, %v2554
      %v2557 = vsel %vm850, %v2552, %v2548
      %v2558 = vsel %vm850, %v2554, %v2550
      %2559 = vrot.lane.b32.xlu0 %v2476, 112
      %v2560 = vpop.permute.xlu0 %2559
      %2561 = vrot.lane.b32.xlu0 %v2478, 112
      %v2562 = vpop.permute.xlu0 %2561
      %2563 = vrot.lane.b32.xlu0 %v2477, 112
      %v2564 = vpop.permute.xlu0 %2563
      %2565 = vrot.lane.b32.xlu0 %v2479, 112
      %v2566 = vpop.permute.xlu0 %2565
      %v2567 = vsel %vm863, %v2560, %v2564
      %v2568 = vsel %vm863, %v2562, %v2566
      %v2569 = vsel %vm863, %v2564, %v2560
      %v2570 = vsel %vm863, %v2566, %v2562
      %2571 = vrot.lane.b32.xlu0 %v2476, 111
      %v2572 = vpop.permute.xlu0 %2571
      %2573 = vrot.lane.b32.xlu0 %v2478, 111
      %v2574 = vpop.permute.xlu0 %2573
      %2575 = vrot.lane.b32.xlu0 %v2477, 111
      %v2576 = vpop.permute.xlu0 %2575
      %2577 = vrot.lane.b32.xlu0 %v2479, 111
      %v2578 = vpop.permute.xlu0 %2577
      %v2579 = vsel %vm876, %v2572, %v2576
      %v2580 = vsel %vm876, %v2574, %v2578
      %v2581 = vsel %vm876, %v2576, %v2572
      %v2582 = vsel %vm876, %v2578, %v2574
      %v2583 = vmul.f32 %v2497, %v586
      %v2584 = vmul.f32 %v2495, %v587
      %v2585 = vmul.f32 %v2498, %v588
      %v2586 = vmul.f32 %v2496, %v589
      %v2587 = vmul.f32 %v2509, %v590
      %v2588 = vmul.f32 %v2507, %v591
      %v2589 = vmul.f32 %v2510, %v592
      %v2590 = vmul.f32 %v2508, %v593
      %v2591 = vmul.f32 %v2521, %v594
      %v2592 = vmul.f32 %v2519, %v595
      %v2593 = vmul.f32 %v2522, %v596
      %v2594 = vmul.f32 %v2520, %v597
      %v2595 = vmul.f32 %v2533, %v598
      %v2596 = vmul.f32 %v2531, %v599
      %v2597 = vmul.f32 %v2534, %v600
      %v2598 = vmul.f32 %v2532, %v601
      %v2599 = vmul.f32 %v2476, %v602
      %v2600 = vmul.f32 %v2477, %v603
      %v2601 = vmul.f32 %v2478, %v604
      %v2602 = vmul.f32 %v2479, %v605
      %v2603 = vmul.f32 %v2543, %v606
      %v2604 = vmul.f32 %v2545, %v607
      %v2605 = vmul.f32 %v2544, %v608
      %v2606 = vmul.f32 %v2546, %v609
      %v2607 = vmul.f32 %v2555, %v610
      %v2608 = vmul.f32 %v2557, %v611
      %v2609 = vmul.f32 %v2556, %v612
      %v2610 = vmul.f32 %v2558, %v613
      %v2611 = vmul.f32 %v2567, %v614
      %v2612 = vmul.f32 %v2569, %v615
      %v2613 = vmul.f32 %v2568, %v616
      %v2614 = vmul.f32 %v2570, %v617
      %v2615 = vmul.f32 %v2579, %v618
      %v2616 = vmul.f32 %v2581, %v619
      %v2617 = vmul.f32 %v2580, %v620
      %v2618 = vmul.f32 %v2582, %v621
      %v2619 = vpack.c.bf16 %v2585, %v2583
      %v2620 = vpack.c.bf16 %v2586, %v2584
      %v2621 = vpack.c.bf16 %v2589, %v2587
      %v2622 = vpack.c.bf16 %v2590, %v2588
      %v2623 = vpack.c.bf16 %v2593, %v2591
      %v2624 = vpack.c.bf16 %v2594, %v2592
      %v2625 = vpack.c.bf16 %v2597, %v2595
      %v2626 = vpack.c.bf16 %v2598, %v2596
      %v2627 = vpack.c.bf16 %v2601, %v2599
      %v2628 = vpack.c.bf16 %v2602, %v2600
      %v2629 = vpack.c.bf16 %v2605, %v2603
      %v2630 = vpack.c.bf16 %v2606, %v2604
      %v2631 = vpack.c.bf16 %v2609, %v2607
      %v2632 = vpack.c.bf16 %v2610, %v2608
      %v2633 = vpack.c.bf16 %v2613, %v2611
      %v2634 = vpack.c.bf16 %v2614, %v2612
      %v2635 = vpack.c.bf16 %v2617, %v2615
      %v2636 = vpack.c.bf16 %v2618, %v2616
      %v2639 = vunpack.c.l.b16 %v2485
      %v2640 = vunpack.c.h.b16 %v2485
      %v2641 = vunpack.c.l.b16 %v2486
      %v2642 = vunpack.c.h.b16 %v2486
      %v2643 = vpack.c.b16 %v2641, %v2639
      %v2644 = vpack.c.b16 %v2642, %v2640
      %v2647 = vsel %vm944, %v2644, 0
      %2649 = vmatprep.subr.bf16.mxu0 %v2620
      %2650 = vmatpush1.bf16.msra.mxu0 %v2619
      %2651 = vmatprep.subr.bf16.mxu0 %v2622
      %2652 = vmatpush1.bf16.msra.mxu0 %v2621
      %2653 = vmatprep.subr.bf16.mxu0 %v2624
      %2654 = vmatpush1.bf16.msra.mxu0 %v2623
      %2655 = vmatprep.subr.bf16.mxu0 %v2626
      %2656 = vmatpush1.bf16.msra.mxu0 %v2625
      %2657 = vmatprep.subr.bf16.mxu0 %v2628
      %2658 = vmatpush1.bf16.msra.mxu0 %v2627
      %2659 = vmatprep.subr.bf16.mxu0 %v2630
      %2660 = vmatpush1.bf16.msra.mxu0 %v2629
      %2661 = vmatprep.subr.bf16.mxu0 %v2632
      %2662 = vmatpush1.bf16.msra.mxu0 %v2631
      %2663 = vmatprep.subr.bf16.mxu0 %v2634
      %2664 = vmatpush1.bf16.msra.mxu0 %v2633
      %2665 = vmatprep.subr.bf16.mxu0 %v2636
      %2666 = vmatpush1.bf16.msra.mxu0 %v2635
      %2667 = vmatprep.subr.bf16.mxu0 0
      %2668 = vmatpush1.bf16.msra.mxu0 0
      %2669 = vmatprep.subr.bf16.mxu0 0
      %2670 = vmatpush1.bf16.msra.mxu0 0
      %2671 = vmatprep.subr.bf16.mxu0 0
      %2672 = vmatpush1.bf16.msra.mxu0 0
      %2673 = vmatprep.subr.bf16.mxu0 0
      %2674 = vmatpush1.bf16.msra.mxu0 0
      %2675 = vmatprep.subr.bf16.mxu0 0
      %2676 = vmatpush1.bf16.msra.mxu0 0
      %2677 = vmatprep.subr.bf16.mxu0 0
      %2678 = vmatpush1.bf16.msra.mxu0 0
      %2679 = vmatprep.subr.bf16.mxu0 0
      %2680 = vmatpush1.bf16.msra.mxu0 0
      %2681 = vmatprep.mubr.bf16.mxu0 %v2647
      %2682 = vmatmul.mubr.bf16.gmra.mrb[0].mxu0 %v2643
      %v2683 = vpop.f32.mrb[0].mxu0
      %v2684 = vadd.f32 0.0, %v2683
      %v2685 = vpop.f32.mrb[0].mxu0
      %v2686 = vadd.f32 0.0, %v2685
      %v2687 = vpop.f32.mrb[0].mxu0
      %v2688 = vadd.f32 0.0, %v2687
      %v2689 = vpop.f32.mrb[0].mxu0
      %v2690 = vadd.f32 0.0, %v2689
      %2691 = vdwg.mxu0
      %v2692 = vmul.f32 %v2684, %v2684
      %v2693 = vmul.f32 %v2686, %v2686
      %v2694 = vmul.f32 %v2688, %v2688
      %v2695 = vmul.f32 %v2690, %v2690
      %2696 = vmatprep.subr.mxu0 0.0
      %2697 = vmatpush1.msra.mxu0 %v550
      %2698 = vmatprep.subr.mxu0 0.0
      %2699 = vmatpush1.msra.mxu0 %v551
      %2700 = vmatprep.subr.mxu0 0.0
      %2701 = vmatpush1.msra.mxu0 %v552
      %2702 = vmatprep.subr.mxu0 0.0
      %2703 = vmatpush1.msra.mxu0 %v553
      %2704 = vmatprep.subr.mxu0 0.0
      %2705 = vmatpush1.msra.mxu0 %v554
      %2706 = vmatprep.subr.mxu0 0.0
      %2707 = vmatpush1.msra.mxu0 %v555
      %2708 = vmatprep.subr.mxu0 0.0
      %2709 = vmatpush1.msra.mxu0 %v556
      %2710 = vmatprep.subr.mxu0 0.0
      %2711 = vmatpush1.msra.mxu0 %v557
      %2712 = vmatprep.subr.mxu0 0.0
      %2713 = vmatpush1.msra.mxu0 %v558
      %2714 = vmatprep.subr.mxu0 0.0
      %2715 = vmatpush1.msra.mxu0 %v559
      %2716 = vmatprep.subr.mxu0 0.0
      %2717 = vmatpush1.msra.mxu0 %v560
      %2718 = vmatprep.subr.mxu0 0.0
      %2719 = vmatpush1.msra.mxu0 %v561
      %2720 = vmatprep.subr.mxu0 0.0
      %2721 = vmatpush1.msra.mxu0 %v562
      %2722 = vmatprep.subr.mxu0 0.0
      %2723 = vmatpush1.msra.mxu0 %v563
      %2724 = vmatprep.subr.mxu0 0.0
      %2725 = vmatpush1.msra.mxu0 %v564
      %2726 = vmatprep.subr.mxu0 0.0
      %2727 = vmatpush1.msra.mxu0 %v565
      %2728 = vmatprep.subr.mxu0 0.0
      %2729 = vmatpush1.msra.mxu0 %v566
      %2730 = vmatprep.subr.mxu0 0.0
      %2731 = vmatpush1.msra.mxu0 %v567
      %2732 = vmatprep.subr.mxu0 0.0
      %2733 = vmatpush1.msra.mxu0 %v568
      %2734 = vmatprep.subr.mxu0 0.0
      %2735 = vmatpush1.msra.mxu0 %v569
      %2736 = vmatprep.subr.mxu0 0.0
      %2737 = vmatpush1.msra.mxu0 %v570
      %2738 = vmatprep.subr.mxu0 0.0
      %2739 = vmatpush1.msra.mxu0 %v571
      %2740 = vmatprep.subr.mxu0 0.0
      %2741 = vmatpush1.msra.mxu0 %v572
      %2742 = vmatprep.subr.mxu0 0.0
      %2743 = vmatpush1.msra.mxu0 %v573
      %2744 = vmatprep.subr.mxu0 0.0
      %2745 = vmatpush1.msra.mxu0 %v574
      %2746 = vmatprep.subr.mxu0 0.0
      %2747 = vmatpush1.msra.mxu0 %v575
      %2748 = vmatprep.subr.mxu0 0.0
      %2749 = vmatpush1.msra.mxu0 %v576
      %2750 = vmatprep.subr.mxu0 0.0
      %2751 = vmatpush1.msra.mxu0 %v577
      %2752 = vmatprep.subr.mxu0 0.0
      %2753 = vmatpush1.msra.mxu0 %v578
      %2754 = vmatprep.subr.mxu0 0.0
      %2755 = vmatpush1.msra.mxu0 %v579
      %2756 = vmatprep.subr.mxu0 0.0
      %2757 = vmatpush1.msra.mxu0 %v580
      %2758 = vmatprep.subr.mxu0 0.0
      %2759 = vmatpush1.msra.mxu0 %v581
      %2760 = vmatprep.mubr.f32.mxu0 %v2686
      %2761 = vmatmul.mubr.f32.gmra.mrb[0].mxu0 %v2684
      %v2762 = vpop.f32.mrb[0].mxu0
      %v2763 = vadd.f32 0.0, %v2762
      %v2764 = vpop.f32.mrb[0].mxu0
      %2765 = vmatprep.mubr.f32.mxu0 %v2690
      %2766 = vmatmul.mubr.f32.gmra.mrb[0].mxu0 %v2688
      %v2767 = vpop.f32.mrb[0].mxu0
      %v2768 = vadd.f32 0.0, %v2767
      %v2769 = vpop.f32.mrb[0].mxu0
      %2770 = vmatprep.mubr.f32.mxu0 %v2693
      %2771 = vmatmul.mubr.f32.gmra.mrb[0].mxu0 %v2692
      %v2772 = vpop.f32.mrb[0].mxu0
      %v2773 = vadd.f32 0.0, %v2772
      %v2774 = vpop.f32.mrb[0].mxu0
      %2775 = vmatprep.mubr.f32.mxu0 %v2695
      %2776 = vmatmul.mubr.f32.gmra.mrb[0].mxu0 %v2694
      %v2777 = vpop.f32.mrb[0].mxu0
      %v2778 = vadd.f32 0.0, %v2777
      %v2779 = vpop.f32.mrb[0].mxu0
      %2780 = vdwg.mxu0
      %v2781 = vmul.f32 %v2763, %v2763
      %v2782 = vmul.f32 %v2768, %v2768
      %v2783 = vsub.f32 %v2773, %v2781
      %v2784 = vsub.f32 %v2778, %v2782
      %v2785 = vmax.f32 %v2783, 0.0
      %v2786 = vmax.f32 %v2784, 0.0
      %v2787 = vadd.f32 %v2785, 1e-05
      %v2788 = vadd.f32 %v2786, 1e-05
      %v2789 = vrsqrt.pop %v2787
      %v2790 = vrsqrt.pop %v2788
      %v2792 = vsel %vm944, %v2763, 0
      %v2795 = vsel %vm944, %v2768, 0
      %2797 = vmatprep.subr.mxu0 %v583
      %2798 = vmatpush1.msra.mxu0 %v582
      %2799 = vmatprep.subr.mxu0 %v585
      %2800 = vmatpush1.msra.mxu0 %v584
      %2801 = vmatprep.subr.mxu0 0.0
      %2802 = vmatpush1.msra.mxu0 0.0
      %2803 = vmatprep.subr.mxu0 0.0
      %2804 = vmatpush1.msra.mxu0 0.0
      %2805 = vmatprep.subr.mxu0 0.0
      %2806 = vmatpush1.msra.mxu0 0.0
      %2807 = vmatprep.subr.mxu0 0.0
      %2808 = vmatpush1.msra.mxu0 0.0
      %2809 = vmatprep.subr.mxu0 0.0
      %2810 = vmatpush1.msra.mxu0 0.0
      %2811 = vmatprep.subr.mxu0 0.0
      %2812 = vmatpush1.msra.mxu0 0.0
      %2813 = vmatprep.subr.mxu0 0.0
      %2814 = vmatpush1.msra.mxu0 0.0
      %2815 = vmatprep.subr.mxu0 0.0
      %2816 = vmatpush1.msra.mxu0 0.0
      %2817 = vmatprep.subr.mxu0 0.0
      %2818 = vmatpush1.msra.mxu0 0.0
      %2819 = vmatprep.subr.mxu0 0.0
      %2820 = vmatpush1.msra.mxu0 0.0
      %2821 = vmatprep.subr.mxu0 0.0
      %2822 = vmatpush1.msra.mxu0 0.0
      %2823 = vmatprep.subr.mxu0 0.0
      %2824 = vmatpush1.msra.mxu0 0.0
      %2825 = vmatprep.subr.mxu0 0.0
      %2826 = vmatpush1.msra.mxu0 0.0
      %2827 = vmatprep.subr.mxu0 0.0
      %2828 = vmatpush1.msra.mxu0 0.0
      %2829 = vmatprep.subr.mxu0 0.0
      %2830 = vmatpush1.msra.mxu0 0.0
      %2831 = vmatprep.subr.mxu0 0.0
      %2832 = vmatpush1.msra.mxu0 0.0
      %2833 = vmatprep.subr.mxu0 0.0
      %2834 = vmatpush1.msra.mxu0 0.0
      %2835 = vmatprep.subr.mxu0 0.0
      %2836 = vmatpush1.msra.mxu0 0.0
      %2837 = vmatprep.subr.mxu0 0.0
      %2838 = vmatpush1.msra.mxu0 0.0
      %2839 = vmatprep.subr.mxu0 0.0
      %2840 = vmatpush1.msra.mxu0 0.0
      %2841 = vmatprep.subr.mxu0 0.0
      %2842 = vmatpush1.msra.mxu0 0.0
      %2843 = vmatprep.subr.mxu0 0.0
      %2844 = vmatpush1.msra.mxu0 0.0
      %2845 = vmatprep.subr.mxu0 0.0
      %2846 = vmatpush1.msra.mxu0 0.0
      %2847 = vmatprep.subr.mxu0 0.0
      %2848 = vmatpush1.msra.mxu0 0.0
      %2849 = vmatprep.subr.mxu0 0.0
      %2850 = vmatpush1.msra.mxu0 0.0
      %2851 = vmatprep.subr.mxu0 0.0
      %2852 = vmatpush1.msra.mxu0 0.0
      %2853 = vmatprep.subr.mxu0 0.0
      %2854 = vmatpush1.msra.mxu0 0.0
      %2855 = vmatprep.subr.mxu0 0.0
      %2856 = vmatpush1.msra.mxu0 0.0
      %2857 = vmatprep.subr.mxu0 0.0
      %2858 = vmatpush1.msra.mxu0 0.0
      %2859 = vmatprep.subr.mxu0 0.0
      %2860 = vmatpush1.msra.mxu0 0.0
      %2861 = vmatprep.mubr.f32.mxu0 0.0
      %2862 = vmatmul.mubr.f32.gmra.mrb[0].mxu0 %v2792
      %v2863 = vpop.f32.mrb[0].mxu0
      %v2864 = vadd.f32 0.0, %v2863
      %v2865 = vpop.f32.mrb[0].mxu0
      %v2866 = vadd.f32 0.0, %v2865
      %2867 = vmatprep.mubr.f32.mxu0 0.0
      %2868 = vmatmul.mubr.f32.gmra.mrb[0].mxu0 %v2795
      %v2869 = vpop.f32.mrb[0].mxu0
      %v2870 = vadd.f32 0.0, %v2869
      %v2871 = vpop.f32.mrb[0].mxu0
      %v2872 = vadd.f32 0.0, %v2871
      %2873 = vdwg.mxu0
      %v2875 = vsel %vm944, %v2789, 0
      %v2878 = vsel %vm944, %v2790, 0
      %2880 = vmatprep.subr.mxu0 %v583
      %2881 = vmatpush1.msra.mxu0 %v582
      %2882 = vmatprep.subr.mxu0 %v585
      %2883 = vmatpush1.msra.mxu0 %v584
      %2884 = vmatprep.subr.mxu0 0.0
      %2885 = vmatpush1.msra.mxu0 0.0
      %2886 = vmatprep.subr.mxu0 0.0
      %2887 = vmatpush1.msra.mxu0 0.0
      %2888 = vmatprep.subr.mxu0 0.0
      %2889 = vmatpush1.msra.mxu0 0.0
      %2890 = vmatprep.subr.mxu0 0.0
      %2891 = vmatpush1.msra.mxu0 0.0
      %2892 = vmatprep.subr.mxu0 0.0
      %2893 = vmatpush1.msra.mxu0 0.0
      %2894 = vmatprep.subr.mxu0 0.0
      %2895 = vmatpush1.msra.mxu0 0.0
      %2896 = vmatprep.subr.mxu0 0.0
      %2897 = vmatpush1.msra.mxu0 0.0
      %2898 = vmatprep.subr.mxu0 0.0
      %2899 = vmatpush1.msra.mxu0 0.0
      %2900 = vmatprep.subr.mxu0 0.0
      %2901 = vmatpush1.msra.mxu0 0.0
      %2902 = vmatprep.subr.mxu0 0.0
      %2903 = vmatpush1.msra.mxu0 0.0
      %2904 = vmatprep.subr.mxu0 0.0
      %2905 = vmatpush1.msra.mxu0 0.0
      %2906 = vmatprep.subr.mxu0 0.0
      %2907 = vmatpush1.msra.mxu0 0.0
      %2908 = vmatprep.subr.mxu0 0.0
      %2909 = vmatpush1.msra.mxu0 0.0
      %2910 = vmatprep.subr.mxu0 0.0
      %2911 = vmatpush1.msra.mxu0 0.0
      %2912 = vmatprep.subr.mxu0 0.0
      %2913 = vmatpush1.msra.mxu0 0.0
      %2914 = vmatprep.subr.mxu0 0.0
      %2915 = vmatpush1.msra.mxu0 0.0
      %2916 = vmatprep.subr.mxu0 0.0
      %2917 = vmatpush1.msra.mxu0 0.0
      %2918 = vmatprep.subr.mxu0 0.0
      %2919 = vmatpush1.msra.mxu0 0.0
      %2920 = vmatprep.subr.mxu0 0.0
      %2921 = vmatpush1.msra.mxu0 0.0
      %2922 = vmatprep.subr.mxu0 0.0
      %2923 = vmatpush1.msra.mxu0 0.0
      %2924 = vmatprep.subr.mxu0 0.0
      %2925 = vmatpush1.msra.mxu0 0.0
      %2926 = vmatprep.subr.mxu0 0.0
      %2927 = vmatpush1.msra.mxu0 0.0
      %2928 = vmatprep.subr.mxu0 0.0
      %2929 = vmatpush1.msra.mxu0 0.0
      %2930 = vmatprep.subr.mxu0 0.0
      %2931 = vmatpush1.msra.mxu0 0.0
      %2932 = vmatprep.subr.mxu0 0.0
      %2933 = vmatpush1.msra.mxu0 0.0
      %2934 = vmatprep.subr.mxu0 0.0
      %2935 = vmatpush1.msra.mxu0 0.0
      %2936 = vmatprep.subr.mxu0 0.0
      %2937 = vmatpush1.msra.mxu0 0.0
      %2938 = vmatprep.subr.mxu0 0.0
      %2939 = vmatpush1.msra.mxu0 0.0
      %2940 = vmatprep.subr.mxu0 0.0
      %2941 = vmatpush1.msra.mxu0 0.0
      %2942 = vmatprep.subr.mxu0 0.0
      %2943 = vmatpush1.msra.mxu0 0.0
      %2944 = vmatprep.mubr.f32.mxu0 0.0
      %2945 = vmatmul.mubr.f32.gmra.mrb[0].mxu0 %v2875
      %v2946 = vpop.f32.mrb[0].mxu0
      %v2947 = vadd.f32 0.0, %v2946
      %v2948 = vpop.f32.mrb[0].mxu0
      %v2949 = vadd.f32 0.0, %v2948
      %2950 = vmatprep.mubr.f32.mxu0 0.0
      %2951 = vmatmul.mubr.f32.gmra.mrb[0].mxu0 %v2878
      %v2952 = vpop.f32.mrb[0].mxu0
      %v2953 = vadd.f32 0.0, %v2952
      %v2954 = vpop.f32.mrb[0].mxu0
      %v2955 = vadd.f32 0.0, %v2954
      %2956 = vdwg.mxu0
      %v2957 = vsub.f32 %v2684, %v2864
      %v2958 = vsub.f32 %v2686, %v2866
      %v2959 = vsub.f32 %v2688, %v2870
      %v2960 = vsub.f32 %v2690, %v2872
      %v2961 = vmul.f32 %v2957, %v2947
      %v2962 = vmul.f32 %v2958, %v2949
      %v2963 = vmul.f32 %v2959, %v2953
      %v2964 = vmul.f32 %v2960, %v2955
      %v2966 = vlaneseq
      %v2967 = vshrl.u32 %v2966, 7
      %v2968 = vsub.s32 0, %v2967
      %v2969 = vrot.slane %v2481, %v2968
      %v2970 = vlaneseq
      %v2971 = vshrl.u32 %v2970, 7
      %v2972 = vsub.s32 4, %v2971
      %v2973 = vrot.slane %v2481, %v2972
      %v2976 = vlaneseq
      %v2977 = vshrl.u32 %v2976, 7
      %v2978 = vsub.s32 0, %v2977
      %v2979 = vrot.slane %v2969, %v2978
      %v2980 = vlaneseq
      %v2981 = vshrl.u32 %v2980, 7
      %v2982 = vsub.s32 0, %v2981
      %v2983 = vrot.slane %v2973, %v2982
      %v2984 = vmul.f32 %v2961, %v2979
      %v2985 = vmul.f32 %v2962, %v2983
      %v2986 = vmul.f32 %v2963, %v2979
      %v2987 = vmul.f32 %v2964, %v2983
      %v2989 = vlaneseq
      %v2990 = vshrl.u32 %v2989, 7
      %v2991 = vsub.s32 0, %v2990
      %v2992 = vrot.slane %v2483, %v2991
      %v2993 = vlaneseq
      %v2994 = vshrl.u32 %v2993, 7
      %v2995 = vsub.s32 4, %v2994
      %v2996 = vrot.slane %v2483, %v2995
      %v2999 = vlaneseq
      %v3000 = vshrl.u32 %v2999, 7
      %v3001 = vsub.s32 0, %v3000
      %v3002 = vrot.slane %v2992, %v3001
      %v3003 = vlaneseq
      %v3004 = vshrl.u32 %v3003, 7
      %v3005 = vsub.s32 0, %v3004
      %v3006 = vrot.slane %v2996, %v3005
      %v3007 = vadd.f32 %v2984, %v3002
      %v3008 = vadd.f32 %v2985, %v3006
      %v3009 = vadd.f32 %v2986, %v3002
      %v3010 = vadd.f32 %v2987, %v3006
      %v3011 = vmax.f32 %v3007, 0.0
      %v3012 = vmax.f32 %v3008, 0.0
      %v3013 = vmax.f32 %v3009, 0.0
      %v3014 = vmax.f32 %v3010, 0.0
      %s3015 = scalar_lea.vmem %s3, 16
      %v3016 = vld [vmem:[%s3015] sm:$0xff]
      %v3017 = vld [vmem:[%s3015 + $0x8] sm:$0xff]
      %3018 = vrot.lane.b32.xlu0 %v3011, 17
      %v3019 = vpop.permute.xlu0 %3018
      %3020 = vrot.lane.b32.xlu0 %v3013, 17
      %v3021 = vpop.permute.xlu0 %3020
      %3022 = vrot.lane.b32.xlu0 %v3012, 17
      %v3023 = vpop.permute.xlu0 %3022
      %3024 = vrot.lane.b32.xlu0 %v3014, 17
      %v3025 = vpop.permute.xlu0 %3024
      %v3026 = vsel %vm636, %v3019, %v3023
      %v3027 = vsel %vm636, %v3021, %v3025
      %v3028 = vsel %vm636, %v3023, %v3019
      %v3029 = vsel %vm636, %v3025, %v3021
      %3030 = vrot.lane.b32.xlu0 %v3011, 16
      %v3031 = vpop.permute.xlu0 %3030
      %3032 = vrot.lane.b32.xlu0 %v3013, 16
      %v3033 = vpop.permute.xlu0 %3032
      %3034 = vrot.lane.b32.xlu0 %v3012, 16
      %v3035 = vpop.permute.xlu0 %3034
      %3036 = vrot.lane.b32.xlu0 %v3014, 16
      %v3037 = vpop.permute.xlu0 %3036
      %v3038 = vsel %vm643, %v3031, %v3035
      %v3039 = vsel %vm643, %v3033, %v3037
      %v3040 = vsel %vm643, %v3035, %v3031
      %v3041 = vsel %vm643, %v3037, %v3033
      %3042 = vrot.lane.b32.xlu0 %v3011, 15
      %v3043 = vpop.permute.xlu0 %3042
      %3044 = vrot.lane.b32.xlu0 %v3013, 15
      %v3045 = vpop.permute.xlu0 %3044
      %3046 = vrot.lane.b32.xlu0 %v3012, 15
      %v3047 = vpop.permute.xlu0 %3046
      %3048 = vrot.lane.b32.xlu0 %v3014, 15
      %v3049 = vpop.permute.xlu0 %3048
      %v3050 = vsel %vm812, %v3043, %v3047
      %v3051 = vsel %vm812, %v3045, %v3049
      %v3052 = vsel %vm812, %v3047, %v3043
      %v3053 = vsel %vm812, %v3049, %v3045
      %3054 = vrot.lane.b32.xlu0 %v3011, 1
      %v3055 = vpop.permute.xlu0 %3054
      %3056 = vrot.lane.b32.xlu0 %v3013, 1
      %v3057 = vpop.permute.xlu0 %3056
      %3058 = vrot.lane.b32.xlu0 %v3012, 1
      %v3059 = vpop.permute.xlu0 %3058
      %3060 = vrot.lane.b32.xlu0 %v3014, 1
      %v3061 = vpop.permute.xlu0 %3060
      %v3062 = vsel %vm656, %v3055, %v3059
      %v3063 = vsel %vm656, %v3057, %v3061
      %v3064 = vsel %vm656, %v3059, %v3055
      %v3065 = vsel %vm656, %v3061, %v3057
      %3066 = vrot.lane.b32.xlu0 %v3011, 127
      %v3067 = vpop.permute.xlu0 %3066
      %3068 = vrot.lane.b32.xlu0 %v3013, 127
      %v3069 = vpop.permute.xlu0 %3068
      %3070 = vrot.lane.b32.xlu0 %v3012, 127
      %v3071 = vpop.permute.xlu0 %3070
      %3072 = vrot.lane.b32.xlu0 %v3014, 127
      %v3073 = vpop.permute.xlu0 %3072
      %v3074 = vsel %vm837, %v3067, %v3071
      %v3075 = vsel %vm837, %v3069, %v3073
      %v3076 = vsel %vm837, %v3071, %v3067
      %v3077 = vsel %vm837, %v3073, %v3069
      %3078 = vrot.lane.b32.xlu0 %v3011, 113
      %v3079 = vpop.permute.xlu0 %3078
      %3080 = vrot.lane.b32.xlu0 %v3013, 113
      %v3081 = vpop.permute.xlu0 %3080
      %3082 = vrot.lane.b32.xlu0 %v3012, 113
      %v3083 = vpop.permute.xlu0 %3082
      %3084 = vrot.lane.b32.xlu0 %v3014, 113
      %v3085 = vpop.permute.xlu0 %3084
      %v3086 = vsel %vm850, %v3079, %v3083
      %v3087 = vsel %vm850, %v3081, %v3085
      %v3088 = vsel %vm850, %v3083, %v3079
      %v3089 = vsel %vm850, %v3085, %v3081
      %3090 = vrot.lane.b32.xlu0 %v3011, 112
      %v3091 = vpop.permute.xlu0 %3090
      %3092 = vrot.lane.b32.xlu0 %v3013, 112
      %v3093 = vpop.permute.xlu0 %3092
      %3094 = vrot.lane.b32.xlu0 %v3012, 112
      %v3095 = vpop.permute.xlu0 %3094
      %3096 = vrot.lane.b32.xlu0 %v3014, 112
      %v3097 = vpop.permute.xlu0 %3096
      %v3098 = vsel %vm863, %v3091, %v3095
      %v3099 = vsel %vm863, %v3093, %v3097
      %v3100 = vsel %vm863, %v3095, %v3091
      %v3101 = vsel %vm863, %v3097, %v3093
      %3102 = vrot.lane.b32.xlu0 %v3011, 111
      %v3103 = vpop.permute.xlu0 %3102
      %3104 = vrot.lane.b32.xlu0 %v3013, 111
      %v3105 = vpop.permute.xlu0 %3104
      %3106 = vrot.lane.b32.xlu0 %v3012, 111
      %v3107 = vpop.permute.xlu0 %3106
      %3108 = vrot.lane.b32.xlu0 %v3014, 111
      %v3109 = vpop.permute.xlu0 %3108
      %v3110 = vsel %vm876, %v3103, %v3107
      %v3111 = vsel %vm876, %v3105, %v3109
      %v3112 = vsel %vm876, %v3107, %v3103
      %v3113 = vsel %vm876, %v3109, %v3105
      %v3114 = vmul.f32 %v3028, %v586
      %v3115 = vmul.f32 %v3026, %v587
      %v3116 = vmul.f32 %v3029, %v588
      %v3117 = vmul.f32 %v3027, %v589
      %v3118 = vmul.f32 %v3040, %v590
      %v3119 = vmul.f32 %v3038, %v591
      %v3120 = vmul.f32 %v3041, %v592
      %v3121 = vmul.f32 %v3039, %v593
      %v3122 = vmul.f32 %v3052, %v594
      %v3123 = vmul.f32 %v3050, %v595
      %v3124 = vmul.f32 %v3053, %v596
      %v3125 = vmul.f32 %v3051, %v597
      %v3126 = vmul.f32 %v3064, %v598
      %v3127 = vmul.f32 %v3062, %v599
      %v3128 = vmul.f32 %v3065, %v600
      %v3129 = vmul.f32 %v3063, %v601
      %v3130 = vmul.f32 %v3011, %v602
      %v3131 = vmul.f32 %v3012, %v603
      %v3132 = vmul.f32 %v3013, %v604
      %v3133 = vmul.f32 %v3014, %v605
      %v3134 = vmul.f32 %v3074, %v606
      %v3135 = vmul.f32 %v3076, %v607
      %v3136 = vmul.f32 %v3075, %v608
      %v3137 = vmul.f32 %v3077, %v609
      %v3138 = vmul.f32 %v3086, %v610
      %v3139 = vmul.f32 %v3088, %v611
      %v3140 = vmul.f32 %v3087, %v612
      %v3141 = vmul.f32 %v3089, %v613
      %v3142 = vmul.f32 %v3098, %v614
      %v3143 = vmul.f32 %v3100, %v615
      %v3144 = vmul.f32 %v3099, %v616
      %v3145 = vmul.f32 %v3101, %v617
      %v3146 = vmul.f32 %v3110, %v618
      %v3147 = vmul.f32 %v3112, %v619
      %v3148 = vmul.f32 %v3111, %v620
      %v3149 = vmul.f32 %v3113, %v621
      %v3150 = vpack.c.bf16 %v3116, %v3114
      %v3151 = vpack.c.bf16 %v3117, %v3115
      %v3152 = vpack.c.bf16 %v3120, %v3118
      %v3153 = vpack.c.bf16 %v3121, %v3119
      %v3154 = vpack.c.bf16 %v3124, %v3122
      %v3155 = vpack.c.bf16 %v3125, %v3123
      %v3156 = vpack.c.bf16 %v3128, %v3126
      %v3157 = vpack.c.bf16 %v3129, %v3127
      %v3158 = vpack.c.bf16 %v3132, %v3130
      %v3159 = vpack.c.bf16 %v3133, %v3131
      %v3160 = vpack.c.bf16 %v3136, %v3134
      %v3161 = vpack.c.bf16 %v3137, %v3135
      %v3162 = vpack.c.bf16 %v3140, %v3138
      %v3163 = vpack.c.bf16 %v3141, %v3139
      %v3164 = vpack.c.bf16 %v3144, %v3142
      %v3165 = vpack.c.bf16 %v3145, %v3143
      %v3166 = vpack.c.bf16 %v3148, %v3146
      %v3167 = vpack.c.bf16 %v3149, %v3147
      %v3170 = vunpack.c.l.b16 %v3016
      %v3171 = vunpack.c.h.b16 %v3016
      %v3172 = vunpack.c.l.b16 %v3017
      %v3173 = vunpack.c.h.b16 %v3017
      %v3174 = vpack.c.b16 %v3172, %v3170
      %v3175 = vpack.c.b16 %v3173, %v3171
      %v3178 = vsel %vm944, %v3175, 0
      %3180 = vmatprep.subr.bf16.mxu0 %v3151
      %3181 = vmatpush1.bf16.msra.mxu0 %v3150
      %3182 = vmatprep.subr.bf16.mxu0 %v3153
      %3183 = vmatpush1.bf16.msra.mxu0 %v3152
      %3184 = vmatprep.subr.bf16.mxu0 %v3155
      %3185 = vmatpush1.bf16.msra.mxu0 %v3154
      %3186 = vmatprep.subr.bf16.mxu0 %v3157
      %3187 = vmatpush1.bf16.msra.mxu0 %v3156
      %3188 = vmatprep.subr.bf16.mxu0 %v3159
      %3189 = vmatpush1.bf16.msra.mxu0 %v3158
      %3190 = vmatprep.subr.bf16.mxu0 %v3161
      %3191 = vmatpush1.bf16.msra.mxu0 %v3160
      %3192 = vmatprep.subr.bf16.mxu0 %v3163
      %3193 = vmatpush1.bf16.msra.mxu0 %v3162
      %3194 = vmatprep.subr.bf16.mxu0 %v3165
      %3195 = vmatpush1.bf16.msra.mxu0 %v3164
      %3196 = vmatprep.subr.bf16.mxu0 %v3167
      %3197 = vmatpush1.bf16.msra.mxu0 %v3166
      %3198 = vmatprep.subr.bf16.mxu0 0
      %3199 = vmatpush1.bf16.msra.mxu0 0
      %3200 = vmatprep.subr.bf16.mxu0 0
      %3201 = vmatpush1.bf16.msra.mxu0 0
      %3202 = vmatprep.subr.bf16.mxu0 0
      %3203 = vmatpush1.bf16.msra.mxu0 0
      %3204 = vmatprep.subr.bf16.mxu0 0
      %3205 = vmatpush1.bf16.msra.mxu0 0
      %3206 = vmatprep.subr.bf16.mxu0 0
      %3207 = vmatpush1.bf16.msra.mxu0 0
      %3208 = vmatprep.subr.bf16.mxu0 0
      %3209 = vmatpush1.bf16.msra.mxu0 0
      %3210 = vmatprep.subr.bf16.mxu0 0
      %3211 = vmatpush1.bf16.msra.mxu0 0
      %3212 = vmatprep.mubr.bf16.mxu0 %v3178
      %3213 = vmatmul.mubr.bf16.gmra.mrb[0].mxu0 %v3174
      %v3214 = vpop.f32.mrb[0].mxu0
      %v3215 = vadd.f32 0.0, %v3214
      %v3216 = vpop.f32.mrb[0].mxu0
      %v3217 = vadd.f32 0.0, %v3216
      %v3218 = vpop.f32.mrb[0].mxu0
      %v3219 = vadd.f32 0.0, %v3218
      %v3220 = vpop.f32.mrb[0].mxu0
      %v3221 = vadd.f32 0.0, %v3220
      %3222 = vdwg.mxu0
      %v3223 = vmul.f32 %v3215, %v3215
      %v3224 = vmul.f32 %v3217, %v3217
      %v3225 = vmul.f32 %v3219, %v3219
      %v3226 = vmul.f32 %v3221, %v3221
      %3227 = vmatprep.subr.mxu0 0.0
      %3228 = vmatpush1.msra.mxu0 %v550
      %3229 = vmatprep.subr.mxu0 0.0
      %3230 = vmatpush1.msra.mxu0 %v551
      %3231 = vmatprep.subr.mxu0 0.0
      %3232 = vmatpush1.msra.mxu0 %v552
      %3233 = vmatprep.subr.mxu0 0.0
      %3234 = vmatpush1.msra.mxu0 %v553
      %3235 = vmatprep.subr.mxu0 0.0
      %3236 = vmatpush1.msra.mxu0 %v554
      %3237 = vmatprep.subr.mxu0 0.0
      %3238 = vmatpush1.msra.mxu0 %v555
      %3239 = vmatprep.subr.mxu0 0.0
      %3240 = vmatpush1.msra.mxu0 %v556
      %3241 = vmatprep.subr.mxu0 0.0
      %3242 = vmatpush1.msra.mxu0 %v557
      %3243 = vmatprep.subr.mxu0 0.0
      %3244 = vmatpush1.msra.mxu0 %v558
      %3245 = vmatprep.subr.mxu0 0.0
      %3246 = vmatpush1.msra.mxu0 %v559
      %3247 = vmatprep.subr.mxu0 0.0
      %3248 = vmatpush1.msra.mxu0 %v560
      %3249 = vmatprep.subr.mxu0 0.0
      %3250 = vmatpush1.msra.mxu0 %v561
      %3251 = vmatprep.subr.mxu0 0.0
      %3252 = vmatpush1.msra.mxu0 %v562
      %3253 = vmatprep.subr.mxu0 0.0
      %3254 = vmatpush1.msra.mxu0 %v563
      %3255 = vmatprep.subr.mxu0 0.0
      %3256 = vmatpush1.msra.mxu0 %v564
      %3257 = vmatprep.subr.mxu0 0.0
      %3258 = vmatpush1.msra.mxu0 %v565
      %3259 = vmatprep.subr.mxu0 0.0
      %3260 = vmatpush1.msra.mxu0 %v566
      %3261 = vmatprep.subr.mxu0 0.0
      %3262 = vmatpush1.msra.mxu0 %v567
      %3263 = vmatprep.subr.mxu0 0.0
      %3264 = vmatpush1.msra.mxu0 %v568
      %3265 = vmatprep.subr.mxu0 0.0
      %3266 = vmatpush1.msra.mxu0 %v569
      %3267 = vmatprep.subr.mxu0 0.0
      %3268 = vmatpush1.msra.mxu0 %v570
      %3269 = vmatprep.subr.mxu0 0.0
      %3270 = vmatpush1.msra.mxu0 %v571
      %3271 = vmatprep.subr.mxu0 0.0
      %3272 = vmatpush1.msra.mxu0 %v572
      %3273 = vmatprep.subr.mxu0 0.0
      %3274 = vmatpush1.msra.mxu0 %v573
      %3275 = vmatprep.subr.mxu0 0.0
      %3276 = vmatpush1.msra.mxu0 %v574
      %3277 = vmatprep.subr.mxu0 0.0
      %3278 = vmatpush1.msra.mxu0 %v575
      %3279 = vmatprep.subr.mxu0 0.0
      %3280 = vmatpush1.msra.mxu0 %v576
      %3281 = vmatprep.subr.mxu0 0.0
      %3282 = vmatpush1.msra.mxu0 %v577
      %3283 = vmatprep.subr.mxu0 0.0
      %3284 = vmatpush1.msra.mxu0 %v578
      %3285 = vmatprep.subr.mxu0 0.0
      %3286 = vmatpush1.msra.mxu0 %v579
      %3287 = vmatprep.subr.mxu0 0.0
      %3288 = vmatpush1.msra.mxu0 %v580
      %3289 = vmatprep.subr.mxu0 0.0
      %3290 = vmatpush1.msra.mxu0 %v581
      %3291 = vmatprep.mubr.f32.mxu0 %v3217
      %3292 = vmatmul.mubr.f32.gmra.mrb[0].mxu0 %v3215
      %v3293 = vpop.f32.mrb[0].mxu0
      %v3294 = vadd.f32 0.0, %v3293
      %v3295 = vpop.f32.mrb[0].mxu0
      %3296 = vmatprep.mubr.f32.mxu0 %v3221
      %3297 = vmatmul.mubr.f32.gmra.mrb[0].mxu0 %v3219
      %v3298 = vpop.f32.mrb[0].mxu0
      %v3299 = vadd.f32 0.0, %v3298
      %v3300 = vpop.f32.mrb[0].mxu0
      %3301 = vmatprep.mubr.f32.mxu0 %v3224
      %3302 = vmatmul.mubr.f32.gmra.mrb[0].mxu0 %v3223
      %v3303 = vpop.f32.mrb[0].mxu0
      %v3304 = vadd.f32 0.0, %v3303
      %v3305 = vpop.f32.mrb[0].mxu0
      %3306 = vmatprep.mubr.f32.mxu0 %v3226
      %3307 = vmatmul.mubr.f32.gmra.mrb[0].mxu0 %v3225
      %v3308 = vpop.f32.mrb[0].mxu0
      %v3309 = vadd.f32 0.0, %v3308
      %v3310 = vpop.f32.mrb[0].mxu0
      %3311 = vdwg.mxu0
      %v3312 = vmul.f32 %v3294, %v3294
      %v3313 = vmul.f32 %v3299, %v3299
      %v3314 = vsub.f32 %v3304, %v3312
      %v3315 = vsub.f32 %v3309, %v3313
      %v3316 = vmax.f32 %v3314, 0.0
      %v3317 = vmax.f32 %v3315, 0.0
      %v3318 = vadd.f32 %v3316, 1e-05
      %v3319 = vadd.f32 %v3317, 1e-05
      %v3320 = vrsqrt.pop %v3318
      %v3321 = vrsqrt.pop %v3319
      %v3323 = vsel %vm944, %v3294, 0
      %v3326 = vsel %vm944, %v3299, 0
      %3328 = vmatprep.subr.mxu0 %v583
      %3329 = vmatpush1.msra.mxu0 %v582
      %3330 = vmatprep.subr.mxu0 %v585
      %3331 = vmatpush1.msra.mxu0 %v584
      %3332 = vmatprep.subr.mxu0 0.0
      %3333 = vmatpush1.msra.mxu0 0.0
      %3334 = vmatprep.subr.mxu0 0.0
      %3335 = vmatpush1.msra.mxu0 0.0
      %3336 = vmatprep.subr.mxu0 0.0
      %3337 = vmatpush1.msra.mxu0 0.0
      %3338 = vmatprep.subr.mxu0 0.0
      %3339 = vmatpush1.msra.mxu0 0.0
      %3340 = vmatprep.subr.mxu0 0.0
      %3341 = vmatpush1.msra.mxu0 0.0
      %3342 = vmatprep.subr.mxu0 0.0
      %3343 = vmatpush1.msra.mxu0 0.0
      %3344 = vmatprep.subr.mxu0 0.0
      %3345 = vmatpush1.msra.mxu0 0.0
      %3346 = vmatprep.subr.mxu0 0.0
      %3347 = vmatpush1.msra.mxu0 0.0
      %3348 = vmatprep.subr.mxu0 0.0
      %3349 = vmatpush1.msra.mxu0 0.0
      %3350 = vmatprep.subr.mxu0 0.0
      %3351 = vmatpush1.msra.mxu0 0.0
      %3352 = vmatprep.subr.mxu0 0.0
      %3353 = vmatpush1.msra.mxu0 0.0
      %3354 = vmatprep.subr.mxu0 0.0
      %3355 = vmatpush1.msra.mxu0 0.0
      %3356 = vmatprep.subr.mxu0 0.0
      %3357 = vmatpush1.msra.mxu0 0.0
      %3358 = vmatprep.subr.mxu0 0.0
      %3359 = vmatpush1.msra.mxu0 0.0
      %3360 = vmatprep.subr.mxu0 0.0
      %3361 = vmatpush1.msra.mxu0 0.0
      %3362 = vmatprep.subr.mxu0 0.0
      %3363 = vmatpush1.msra.mxu0 0.0
      %3364 = vmatprep.subr.mxu0 0.0
      %3365 = vmatpush1.msra.mxu0 0.0
      %3366 = vmatprep.subr.mxu0 0.0
      %3367 = vmatpush1.msra.mxu0 0.0
      %3368 = vmatprep.subr.mxu0 0.0
      %3369 = vmatpush1.msra.mxu0 0.0
      %3370 = vmatprep.subr.mxu0 0.0
      %3371 = vmatpush1.msra.mxu0 0.0
      %3372 = vmatprep.subr.mxu0 0.0
      %3373 = vmatpush1.msra.mxu0 0.0
      %3374 = vmatprep.subr.mxu0 0.0
      %3375 = vmatpush1.msra.mxu0 0.0
      %3376 = vmatprep.subr.mxu0 0.0
      %3377 = vmatpush1.msra.mxu0 0.0
      %3378 = vmatprep.subr.mxu0 0.0
      %3379 = vmatpush1.msra.mxu0 0.0
      %3380 = vmatprep.subr.mxu0 0.0
      %3381 = vmatpush1.msra.mxu0 0.0
      %3382 = vmatprep.subr.mxu0 0.0
      %3383 = vmatpush1.msra.mxu0 0.0
      %3384 = vmatprep.subr.mxu0 0.0
      %3385 = vmatpush1.msra.mxu0 0.0
      %3386 = vmatprep.subr.mxu0 0.0
      %3387 = vmatpush1.msra.mxu0 0.0
      %3388 = vmatprep.subr.mxu0 0.0
      %3389 = vmatpush1.msra.mxu0 0.0
      %3390 = vmatprep.subr.mxu0 0.0
      %3391 = vmatpush1.msra.mxu0 0.0
      %3392 = vmatprep.mubr.f32.mxu0 0.0
      %3393 = vmatmul.mubr.f32.gmra.mrb[0].mxu0 %v3323
      %v3394 = vpop.f32.mrb[0].mxu0
      %v3395 = vadd.f32 0.0, %v3394
      %v3396 = vpop.f32.mrb[0].mxu0
      %v3397 = vadd.f32 0.0, %v3396
      %3398 = vmatprep.mubr.f32.mxu0 0.0
      %3399 = vmatmul.mubr.f32.gmra.mrb[0].mxu0 %v3326
      %v3400 = vpop.f32.mrb[0].mxu0
      %v3401 = vadd.f32 0.0, %v3400
      %v3402 = vpop.f32.mrb[0].mxu0
      %v3403 = vadd.f32 0.0, %v3402
      %3404 = vdwg.mxu0
      %v3406 = vsel %vm944, %v3320, 0
      %v3409 = vsel %vm944, %v3321, 0
      %3411 = vmatprep.subr.mxu0 %v583
      %3412 = vmatpush1.msra.mxu0 %v582
      %3413 = vmatprep.subr.mxu0 %v585
      %3414 = vmatpush1.msra.mxu0 %v584
      %3415 = vmatprep.subr.mxu0 0.0
      %3416 = vmatpush1.msra.mxu0 0.0
      %3417 = vmatprep.subr.mxu0 0.0
      %3418 = vmatpush1.msra.mxu0 0.0
      %3419 = vmatprep.subr.mxu0 0.0
      %3420 = vmatpush1.msra.mxu0 0.0
      %3421 = vmatprep.subr.mxu0 0.0
      %3422 = vmatpush1.msra.mxu0 0.0
      %3423 = vmatprep.subr.mxu0 0.0
      %3424 = vmatpush1.msra.mxu0 0.0
      %3425 = vmatprep.subr.mxu0 0.0
      %3426 = vmatpush1.msra.mxu0 0.0
      %3427 = vmatprep.subr.mxu0 0.0
      %3428 = vmatpush1.msra.mxu0 0.0
      %3429 = vmatprep.subr.mxu0 0.0
      %3430 = vmatpush1.msra.mxu0 0.0
      %3431 = vmatprep.subr.mxu0 0.0
      %3432 = vmatpush1.msra.mxu0 0.0
      %3433 = vmatprep.subr.mxu0 0.0
      %3434 = vmatpush1.msra.mxu0 0.0
      %3435 = vmatprep.subr.mxu0 0.0
      %3436 = vmatpush1.msra.mxu0 0.0
      %3437 = vmatprep.subr.mxu0 0.0
      %3438 = vmatpush1.msra.mxu0 0.0
      %3439 = vmatprep.subr.mxu0 0.0
      %3440 = vmatpush1.msra.mxu0 0.0
      %3441 = vmatprep.subr.mxu0 0.0
      %3442 = vmatpush1.msra.mxu0 0.0
      %3443 = vmatprep.subr.mxu0 0.0
      %3444 = vmatpush1.msra.mxu0 0.0
      %3445 = vmatprep.subr.mxu0 0.0
      %3446 = vmatpush1.msra.mxu0 0.0
      %3447 = vmatprep.subr.mxu0 0.0
      %3448 = vmatpush1.msra.mxu0 0.0
      %3449 = vmatprep.subr.mxu0 0.0
      %3450 = vmatpush1.msra.mxu0 0.0
      %3451 = vmatprep.subr.mxu0 0.0
      %3452 = vmatpush1.msra.mxu0 0.0
      %3453 = vmatprep.subr.mxu0 0.0
      %3454 = vmatpush1.msra.mxu0 0.0
      %3455 = vmatprep.subr.mxu0 0.0
      %3456 = vmatpush1.msra.mxu0 0.0
      %3457 = vmatprep.subr.mxu0 0.0
      %3458 = vmatpush1.msra.mxu0 0.0
      %3459 = vmatprep.subr.mxu0 0.0
      %3460 = vmatpush1.msra.mxu0 0.0
      %3461 = vmatprep.subr.mxu0 0.0
      %3462 = vmatpush1.msra.mxu0 0.0
      %3463 = vmatprep.subr.mxu0 0.0
      %3464 = vmatpush1.msra.mxu0 0.0
      %3465 = vmatprep.subr.mxu0 0.0
      %3466 = vmatpush1.msra.mxu0 0.0
      %3467 = vmatprep.subr.mxu0 0.0
      %3468 = vmatpush1.msra.mxu0 0.0
      %3469 = vmatprep.subr.mxu0 0.0
      %3470 = vmatpush1.msra.mxu0 0.0
      %3471 = vmatprep.subr.mxu0 0.0
      %3472 = vmatpush1.msra.mxu0 0.0
      %3473 = vmatprep.subr.mxu0 0.0
      %3474 = vmatpush1.msra.mxu0 0.0
      %3475 = vmatprep.mubr.f32.mxu0 0.0
      %3476 = vmatmul.mubr.f32.gmra.mrb[0].mxu0 %v3406
      %v3477 = vpop.f32.mrb[0].mxu0
      %v3478 = vadd.f32 0.0, %v3477
      %v3479 = vpop.f32.mrb[0].mxu0
      %v3480 = vadd.f32 0.0, %v3479
      %3481 = vmatprep.mubr.f32.mxu0 0.0
      %3482 = vmatmul.mubr.f32.gmra.mrb[0].mxu0 %v3409
      %v3483 = vpop.f32.mrb[0].mxu0
      %v3484 = vadd.f32 0.0, %v3483
      %v3485 = vpop.f32.mrb[0].mxu0
      %v3486 = vadd.f32 0.0, %v3485
      %3487 = vdwg.mxu0
      %v3488 = vsub.f32 %v3215, %v3395
      %v3489 = vsub.f32 %v3217, %v3397
      %v3490 = vsub.f32 %v3219, %v3401
      %v3491 = vsub.f32 %v3221, %v3403
      %v3492 = vmul.f32 %v3488, %v3478
      %v3493 = vmul.f32 %v3489, %v3480
      %v3494 = vmul.f32 %v3490, %v3484
      %v3495 = vmul.f32 %v3491, %v3486
      %v3496 = vlaneseq
      %v3497 = vshrl.u32 %v3496, 7
      %v3498 = vsub.s32 1, %v3497
      %v3499 = vrot.slane %v2481, %v3498
      %v3500 = vlaneseq
      %v3501 = vshrl.u32 %v3500, 7
      %v3502 = vsub.s32 5, %v3501
      %v3503 = vrot.slane %v2481, %v3502
      %v3506 = vlaneseq
      %v3507 = vshrl.u32 %v3506, 7
      %v3508 = vsub.s32 1, %v3507
      %v3509 = vrot.slane %v3499, %v3508
      %v3510 = vlaneseq
      %v3511 = vshrl.u32 %v3510, 7
      %v3512 = vsub.s32 1, %v3511
      %v3513 = vrot.slane %v3503, %v3512
      %v3514 = vmul.f32 %v3492, %v3509
      %v3515 = vmul.f32 %v3493, %v3513
      %v3516 = vmul.f32 %v3494, %v3509
      %v3517 = vmul.f32 %v3495, %v3513
      %v3518 = vlaneseq
      %v3519 = vshrl.u32 %v3518, 7
      %v3520 = vsub.s32 1, %v3519
      %v3521 = vrot.slane %v2483, %v3520
      %v3522 = vlaneseq
      %v3523 = vshrl.u32 %v3522, 7
      %v3524 = vsub.s32 5, %v3523
      %v3525 = vrot.slane %v2483, %v3524
      %v3528 = vlaneseq
      %v3529 = vshrl.u32 %v3528, 7
      %v3530 = vsub.s32 1, %v3529
      %v3531 = vrot.slane %v3521, %v3530
      %v3532 = vlaneseq
      %v3533 = vshrl.u32 %v3532, 7
      %v3534 = vsub.s32 1, %v3533
      %v3535 = vrot.slane %v3525, %v3534
      %v3536 = vadd.f32 %v3514, %v3531
      %v3537 = vadd.f32 %v3515, %v3535
      %v3538 = vadd.f32 %v3516, %v3531
      %v3539 = vadd.f32 %v3517, %v3535
      %v3540 = vmax.f32 %v3536, 0.0
      %v3541 = vmax.f32 %v3537, 0.0
      %v3542 = vmax.f32 %v3538, 0.0
      %v3543 = vmax.f32 %v3539, 0.0
      %s3544 = scalar_lea.vmem %s4, 8
      %v3545 = vld [vmem:[%s3544] sm:$0xf]
      %v3546 = vld [vmem:[%s3544 + $0x4] sm:$0xf]
      %v3547 = vpack.c.bf16 %v3542, %v3540
      %v3548 = vpack.c.bf16 %v3543, %v3541
      %v3551 = vunpack.c.l.b16 %v3545
      %v3552 = vunpack.c.l.b16 %v3546
      %v3553 = vpack.c.b16 %v3552, %v3551
      %v3555 = vsel %vm944, %v3553, 0
      %3557 = vmatprep.subr.bf16.mxu0 %v3548
      %3558 = vmatpush1.bf16.msra.mxu0 %v3547
      %3559 = vmatprep.subr.bf16.mxu0 0
      %3560 = vmatpush1.bf16.msra.mxu0 0
      %3561 = vmatprep.subr.bf16.mxu0 0
      %3562 = vmatpush1.bf16.msra.mxu0 0
      %3563 = vmatprep.subr.bf16.mxu0 0
      %3564 = vmatpush1.bf16.msra.mxu0 0
      %3565 = vmatprep.subr.bf16.mxu0 0
      %3566 = vmatpush1.bf16.msra.mxu0 0
      %3567 = vmatprep.subr.bf16.mxu0 0
      %3568 = vmatpush1.bf16.msra.mxu0 0
      %3569 = vmatprep.subr.bf16.mxu0 0
      %3570 = vmatpush1.bf16.msra.mxu0 0
      %3571 = vmatprep.subr.bf16.mxu0 0
      %3572 = vmatpush1.bf16.msra.mxu0 0
      %3573 = vmatprep.subr.bf16.mxu0 0
      %3574 = vmatpush1.bf16.msra.mxu0 0
      %3575 = vmatprep.subr.bf16.mxu0 0
      %3576 = vmatpush1.bf16.msra.mxu0 0
      %3577 = vmatprep.subr.bf16.mxu0 0
      %3578 = vmatpush1.bf16.msra.mxu0 0
      %3579 = vmatprep.subr.bf16.mxu0 0
      %3580 = vmatpush1.bf16.msra.mxu0 0
      %3581 = vmatprep.subr.bf16.mxu0 0
      %3582 = vmatpush1.bf16.msra.mxu0 0
      %3583 = vmatprep.subr.bf16.mxu0 0
      %3584 = vmatpush1.bf16.msra.mxu0 0
      %3585 = vmatprep.subr.bf16.mxu0 0
      %3586 = vmatpush1.bf16.msra.mxu0 0
      %3587 = vmatprep.subr.bf16.mxu0 0
      %3588 = vmatpush1.bf16.msra.mxu0 0
      %3589 = vmatprep.mubr.bf16.mxu0 0
      %3590 = vmatmul.mubr.bf16.gmra.mrb[0].mxu0 %v3555
      %v3591 = vpop.f32.mrb[0].mxu0
      %v3592 = vadd.f32 0.0, %v3591
      %v3593 = vpop.f32.mrb[0].mxu0
      %v3594 = vadd.f32 0.0, %v3593
      %v3595 = vpop.f32.mrb[0].mxu0
      %v3596 = vadd.f32 0.0, %v3595
      %v3597 = vpop.f32.mrb[0].mxu0
      %v3598 = vadd.f32 0.0, %v3597
      %3599 = vdwg.mxu0
      %v3600 = vmul.f32 %v3592, %v3592
      %v3601 = vmul.f32 %v3594, %v3594
      %v3602 = vmul.f32 %v3596, %v3596
      %v3603 = vmul.f32 %v3598, %v3598
      %3604 = vmatprep.subr.mxu0 0.0
      %3605 = vmatpush1.msra.mxu0 %v550
      %3606 = vmatprep.subr.mxu0 0.0
      %3607 = vmatpush1.msra.mxu0 %v551
      %3608 = vmatprep.subr.mxu0 0.0
      %3609 = vmatpush1.msra.mxu0 %v552
      %3610 = vmatprep.subr.mxu0 0.0
      %3611 = vmatpush1.msra.mxu0 %v553
      %3612 = vmatprep.subr.mxu0 0.0
      %3613 = vmatpush1.msra.mxu0 %v554
      %3614 = vmatprep.subr.mxu0 0.0
      %3615 = vmatpush1.msra.mxu0 %v555
      %3616 = vmatprep.subr.mxu0 0.0
      %3617 = vmatpush1.msra.mxu0 %v556
      %3618 = vmatprep.subr.mxu0 0.0
      %3619 = vmatpush1.msra.mxu0 %v557
      %3620 = vmatprep.subr.mxu0 0.0
      %3621 = vmatpush1.msra.mxu0 %v558
      %3622 = vmatprep.subr.mxu0 0.0
      %3623 = vmatpush1.msra.mxu0 %v559
      %3624 = vmatprep.subr.mxu0 0.0
      %3625 = vmatpush1.msra.mxu0 %v560
      %3626 = vmatprep.subr.mxu0 0.0
      %3627 = vmatpush1.msra.mxu0 %v561
      %3628 = vmatprep.subr.mxu0 0.0
      %3629 = vmatpush1.msra.mxu0 %v562
      %3630 = vmatprep.subr.mxu0 0.0
      %3631 = vmatpush1.msra.mxu0 %v563
      %3632 = vmatprep.subr.mxu0 0.0
      %3633 = vmatpush1.msra.mxu0 %v564
      %3634 = vmatprep.subr.mxu0 0.0
      %3635 = vmatpush1.msra.mxu0 %v565
      %3636 = vmatprep.subr.mxu0 0.0
      %3637 = vmatpush1.msra.mxu0 %v566
      %3638 = vmatprep.subr.mxu0 0.0
      %3639 = vmatpush1.msra.mxu0 %v567
      %3640 = vmatprep.subr.mxu0 0.0
      %3641 = vmatpush1.msra.mxu0 %v568
      %3642 = vmatprep.subr.mxu0 0.0
      %3643 = vmatpush1.msra.mxu0 %v569
      %3644 = vmatprep.subr.mxu0 0.0
      %3645 = vmatpush1.msra.mxu0 %v570
      %3646 = vmatprep.subr.mxu0 0.0
      %3647 = vmatpush1.msra.mxu0 %v571
      %3648 = vmatprep.subr.mxu0 0.0
      %3649 = vmatpush1.msra.mxu0 %v572
      %3650 = vmatprep.subr.mxu0 0.0
      %3651 = vmatpush1.msra.mxu0 %v573
      %3652 = vmatprep.subr.mxu0 0.0
      %3653 = vmatpush1.msra.mxu0 %v574
      %3654 = vmatprep.subr.mxu0 0.0
      %3655 = vmatpush1.msra.mxu0 %v575
      %3656 = vmatprep.subr.mxu0 0.0
      %3657 = vmatpush1.msra.mxu0 %v576
      %3658 = vmatprep.subr.mxu0 0.0
      %3659 = vmatpush1.msra.mxu0 %v577
      %3660 = vmatprep.subr.mxu0 0.0
      %3661 = vmatpush1.msra.mxu0 %v578
      %3662 = vmatprep.subr.mxu0 0.0
      %3663 = vmatpush1.msra.mxu0 %v579
      %3664 = vmatprep.subr.mxu0 0.0
      %3665 = vmatpush1.msra.mxu0 %v580
      %3666 = vmatprep.subr.mxu0 0.0
      %3667 = vmatpush1.msra.mxu0 %v581
      %3668 = vmatprep.mubr.f32.mxu0 %v3594
      %3669 = vmatmul.mubr.f32.gmra.mrb[0].mxu0 %v3592
      %v3670 = vpop.f32.mrb[0].mxu0
      %v3671 = vadd.f32 0.0, %v3670
      %v3672 = vpop.f32.mrb[0].mxu0
      %3673 = vmatprep.mubr.f32.mxu0 %v3598
      %3674 = vmatmul.mubr.f32.gmra.mrb[0].mxu0 %v3596
      %v3675 = vpop.f32.mrb[0].mxu0
      %v3676 = vadd.f32 0.0, %v3675
      %v3677 = vpop.f32.mrb[0].mxu0
      %3678 = vmatprep.mubr.f32.mxu0 %v3601
      %3679 = vmatmul.mubr.f32.gmra.mrb[0].mxu0 %v3600
      %v3680 = vpop.f32.mrb[0].mxu0
      %v3681 = vadd.f32 0.0, %v3680
      %v3682 = vpop.f32.mrb[0].mxu0
      %3683 = vmatprep.mubr.f32.mxu0 %v3603
      %3684 = vmatmul.mubr.f32.gmra.mrb[0].mxu0 %v3602
      %v3685 = vpop.f32.mrb[0].mxu0
      %v3686 = vadd.f32 0.0, %v3685
      %v3687 = vpop.f32.mrb[0].mxu0
      %3688 = vdwg.mxu0
      %v3689 = vmul.f32 %v3671, %v3671
      %v3690 = vmul.f32 %v3676, %v3676
      %v3691 = vsub.f32 %v3681, %v3689
      %v3692 = vsub.f32 %v3686, %v3690
      %v3693 = vmax.f32 %v3691, 0.0
      %v3694 = vmax.f32 %v3692, 0.0
      %v3695 = vadd.f32 %v3693, 1e-05
      %v3696 = vadd.f32 %v3694, 1e-05
      %v3697 = vrsqrt.pop %v3695
      %v3698 = vrsqrt.pop %v3696
      %v3700 = vsel %vm944, %v3671, 0
      %v3703 = vsel %vm944, %v3676, 0
      %3705 = vmatprep.subr.mxu0 %v583
      %3706 = vmatpush1.msra.mxu0 %v582
      %3707 = vmatprep.subr.mxu0 %v585
      %3708 = vmatpush1.msra.mxu0 %v584
      %3709 = vmatprep.subr.mxu0 0.0
      %3710 = vmatpush1.msra.mxu0 0.0
      %3711 = vmatprep.subr.mxu0 0.0
      %3712 = vmatpush1.msra.mxu0 0.0
      %3713 = vmatprep.subr.mxu0 0.0
      %3714 = vmatpush1.msra.mxu0 0.0
      %3715 = vmatprep.subr.mxu0 0.0
      %3716 = vmatpush1.msra.mxu0 0.0
      %3717 = vmatprep.subr.mxu0 0.0
      %3718 = vmatpush1.msra.mxu0 0.0
      %3719 = vmatprep.subr.mxu0 0.0
      %3720 = vmatpush1.msra.mxu0 0.0
      %3721 = vmatprep.subr.mxu0 0.0
      %3722 = vmatpush1.msra.mxu0 0.0
      %3723 = vmatprep.subr.mxu0 0.0
      %3724 = vmatpush1.msra.mxu0 0.0
      %3725 = vmatprep.subr.mxu0 0.0
      %3726 = vmatpush1.msra.mxu0 0.0
      %3727 = vmatprep.subr.mxu0 0.0
      %3728 = vmatpush1.msra.mxu0 0.0
      %3729 = vmatprep.subr.mxu0 0.0
      %3730 = vmatpush1.msra.mxu0 0.0
      %3731 = vmatprep.subr.mxu0 0.0
      %3732 = vmatpush1.msra.mxu0 0.0
      %3733 = vmatprep.subr.mxu0 0.0
      %3734 = vmatpush1.msra.mxu0 0.0
      %3735 = vmatprep.subr.mxu0 0.0
      %3736 = vmatpush1.msra.mxu0 0.0
      %3737 = vmatprep.subr.mxu0 0.0
      %3738 = vmatpush1.msra.mxu0 0.0
      %3739 = vmatprep.subr.mxu0 0.0
      %3740 = vmatpush1.msra.mxu0 0.0
      %3741 = vmatprep.subr.mxu0 0.0
      %3742 = vmatpush1.msra.mxu0 0.0
      %3743 = vmatprep.subr.mxu0 0.0
      %3744 = vmatpush1.msra.mxu0 0.0
      %3745 = vmatprep.subr.mxu0 0.0
      %3746 = vmatpush1.msra.mxu0 0.0
      %3747 = vmatprep.subr.mxu0 0.0
      %3748 = vmatpush1.msra.mxu0 0.0
      %3749 = vmatprep.subr.mxu0 0.0
      %3750 = vmatpush1.msra.mxu0 0.0
      %3751 = vmatprep.subr.mxu0 0.0
      %3752 = vmatpush1.msra.mxu0 0.0
      %3753 = vmatprep.subr.mxu0 0.0
      %3754 = vmatpush1.msra.mxu0 0.0
      %3755 = vmatprep.subr.mxu0 0.0
      %3756 = vmatpush1.msra.mxu0 0.0
      %3757 = vmatprep.subr.mxu0 0.0
      %3758 = vmatpush1.msra.mxu0 0.0
      %3759 = vmatprep.subr.mxu0 0.0
      %3760 = vmatpush1.msra.mxu0 0.0
      %3761 = vmatprep.subr.mxu0 0.0
      %3762 = vmatpush1.msra.mxu0 0.0
      %3763 = vmatprep.subr.mxu0 0.0
      %3764 = vmatpush1.msra.mxu0 0.0
      %3765 = vmatprep.subr.mxu0 0.0
      %3766 = vmatpush1.msra.mxu0 0.0
      %3767 = vmatprep.subr.mxu0 0.0
      %3768 = vmatpush1.msra.mxu0 0.0
      %3769 = vmatprep.mubr.f32.mxu0 0.0
      %3770 = vmatmul.mubr.f32.gmra.mrb[0].mxu0 %v3700
      %v3771 = vpop.f32.mrb[0].mxu0
      %v3772 = vadd.f32 0.0, %v3771
      %v3773 = vpop.f32.mrb[0].mxu0
      %v3774 = vadd.f32 0.0, %v3773
      %3775 = vmatprep.mubr.f32.mxu0 0.0
      %3776 = vmatmul.mubr.f32.gmra.mrb[0].mxu0 %v3703
      %v3777 = vpop.f32.mrb[0].mxu0
      %v3778 = vadd.f32 0.0, %v3777
      %v3779 = vpop.f32.mrb[0].mxu0
      %v3780 = vadd.f32 0.0, %v3779
      %3781 = vdwg.mxu0
      %v3783 = vsel %vm944, %v3697, 0
      %v3786 = vsel %vm944, %v3698, 0
      %3788 = vmatprep.subr.mxu0 %v583
      %3789 = vmatpush1.msra.mxu0 %v582
      %3790 = vmatprep.subr.mxu0 %v585
      %3791 = vmatpush1.msra.mxu0 %v584
      %3792 = vmatprep.subr.mxu0 0.0
      %3793 = vmatpush1.msra.mxu0 0.0
      %3794 = vmatprep.subr.mxu0 0.0
      %3795 = vmatpush1.msra.mxu0 0.0
      %3796 = vmatprep.subr.mxu0 0.0
      %3797 = vmatpush1.msra.mxu0 0.0
      %3798 = vmatprep.subr.mxu0 0.0
      %3799 = vmatpush1.msra.mxu0 0.0
      %3800 = vmatprep.subr.mxu0 0.0
      %3801 = vmatpush1.msra.mxu0 0.0
      %3802 = vmatprep.subr.mxu0 0.0
      %3803 = vmatpush1.msra.mxu0 0.0
      %3804 = vmatprep.subr.mxu0 0.0
      %3805 = vmatpush1.msra.mxu0 0.0
      %3806 = vmatprep.subr.mxu0 0.0
      %3807 = vmatpush1.msra.mxu0 0.0
      %3808 = vmatprep.subr.mxu0 0.0
      %3809 = vmatpush1.msra.mxu0 0.0
      %3810 = vmatprep.subr.mxu0 0.0
      %3811 = vmatpush1.msra.mxu0 0.0
      %3812 = vmatprep.subr.mxu0 0.0
      %3813 = vmatpush1.msra.mxu0 0.0
      %3814 = vmatprep.subr.mxu0 0.0
      %3815 = vmatpush1.msra.mxu0 0.0
      %3816 = vmatprep.subr.mxu0 0.0
      %3817 = vmatpush1.msra.mxu0 0.0
      %3818 = vmatprep.subr.mxu0 0.0
      %3819 = vmatpush1.msra.mxu0 0.0
      %3820 = vmatprep.subr.mxu0 0.0
      %3821 = vmatpush1.msra.mxu0 0.0
      %3822 = vmatprep.subr.mxu0 0.0
      %3823 = vmatpush1.msra.mxu0 0.0
      %3824 = vmatprep.subr.mxu0 0.0
      %3825 = vmatpush1.msra.mxu0 0.0
      %3826 = vmatprep.subr.mxu0 0.0
      %3827 = vmatpush1.msra.mxu0 0.0
      %3828 = vmatprep.subr.mxu0 0.0
      %3829 = vmatpush1.msra.mxu0 0.0
      %3830 = vmatprep.subr.mxu0 0.0
      %3831 = vmatpush1.msra.mxu0 0.0
      %3832 = vmatprep.subr.mxu0 0.0
      %3833 = vmatpush1.msra.mxu0 0.0
      %3834 = vmatprep.subr.mxu0 0.0
      %3835 = vmatpush1.msra.mxu0 0.0
      %3836 = vmatprep.subr.mxu0 0.0
      %3837 = vmatpush1.msra.mxu0 0.0
      %3838 = vmatprep.subr.mxu0 0.0
      %3839 = vmatpush1.msra.mxu0 0.0
      %3840 = vmatprep.subr.mxu0 0.0
      %3841 = vmatpush1.msra.mxu0 0.0
      %3842 = vmatprep.subr.mxu0 0.0
      %3843 = vmatpush1.msra.mxu0 0.0
      %3844 = vmatprep.subr.mxu0 0.0
      %3845 = vmatpush1.msra.mxu0 0.0
      %3846 = vmatprep.subr.mxu0 0.0
      %3847 = vmatpush1.msra.mxu0 0.0
      %3848 = vmatprep.subr.mxu0 0.0
      %3849 = vmatpush1.msra.mxu0 0.0
      %3850 = vmatprep.subr.mxu0 0.0
      %3851 = vmatpush1.msra.mxu0 0.0
      %3852 = vmatprep.mubr.f32.mxu0 0.0
      %3853 = vmatmul.mubr.f32.gmra.mrb[0].mxu0 %v3783
      %v3854 = vpop.f32.mrb[0].mxu0
      %v3855 = vadd.f32 0.0, %v3854
      %v3856 = vpop.f32.mrb[0].mxu0
      %v3857 = vadd.f32 0.0, %v3856
      %3858 = vmatprep.mubr.f32.mxu0 0.0
      %3859 = vmatmul.mubr.f32.gmra.mrb[0].mxu0 %v3786
      %v3860 = vpop.f32.mrb[0].mxu0
      %v3861 = vadd.f32 0.0, %v3860
      %v3862 = vpop.f32.mrb[0].mxu0
      %v3863 = vadd.f32 0.0, %v3862
      %3864 = vdwg.mxu0
      %v3865 = vsub.f32 %v3592, %v3772
      %v3866 = vsub.f32 %v3594, %v3774
      %v3867 = vsub.f32 %v3596, %v3778
      %v3868 = vsub.f32 %v3598, %v3780
      %v3869 = vmul.f32 %v3865, %v3855
      %v3870 = vmul.f32 %v3866, %v3857
      %v3871 = vmul.f32 %v3867, %v3861
      %v3872 = vmul.f32 %v3868, %v3863
      %v3873 = vlaneseq
      %v3874 = vshrl.u32 %v3873, 7
      %v3875 = vsub.s32 2, %v3874
      %v3876 = vrot.slane %v2481, %v3875
      %v3877 = vlaneseq
      %v3878 = vshrl.u32 %v3877, 7
      %v3879 = vsub.s32 6, %v3878
      %v3880 = vrot.slane %v2481, %v3879
      %v3883 = vlaneseq
      %v3884 = vshrl.u32 %v3883, 7
      %v3885 = vsub.s32 2, %v3884
      %v3886 = vrot.slane %v3876, %v3885
      %v3887 = vlaneseq
      %v3888 = vshrl.u32 %v3887, 7
      %v3889 = vsub.s32 2, %v3888
      %v3890 = vrot.slane %v3880, %v3889
      %v3891 = vmul.f32 %v3869, %v3886
      %v3892 = vmul.f32 %v3870, %v3890
      %v3893 = vmul.f32 %v3871, %v3886
      %v3894 = vmul.f32 %v3872, %v3890
      %v3895 = vlaneseq
      %v3896 = vshrl.u32 %v3895, 7
      %v3897 = vsub.s32 2, %v3896
      %v3898 = vrot.slane %v2483, %v3897
      %v3899 = vlaneseq
      %v3900 = vshrl.u32 %v3899, 7
      %v3901 = vsub.s32 6, %v3900
      %v3902 = vrot.slane %v2483, %v3901
      %v3905 = vlaneseq
      %v3906 = vshrl.u32 %v3905, 7
      %v3907 = vsub.s32 2, %v3906
      %v3908 = vrot.slane %v3898, %v3907
      %v3909 = vlaneseq
      %v3910 = vshrl.u32 %v3909, 7
      %v3911 = vsub.s32 2, %v3910
      %v3912 = vrot.slane %v3902, %v3911
      %v3913 = vadd.f32 %v3891, %v3908
      %v3914 = vadd.f32 %v3892, %v3912
      %v3915 = vadd.f32 %v3893, %v3908
      %v3916 = vadd.f32 %v3894, %v3912
      %v3917 = vpack.c.bf16 %v2478, %v2476
      %v3918 = vpack.c.bf16 %v2479, %v2477
      %v3919 = vpack.c.bf16 %v3013, %v3011
      %v3920 = vpack.c.bf16 %v3014, %v3012
      %v3921 = vpack.c.bf16 %v3915, %v3913
      %v3922 = vpack.c.bf16 %v3916, %v3914
      %s3923 = scalar_lea.vmem %s5, 8
      %v3924 = vld [vmem:[%s3923] sm:$0xf]
      %v3925 = vld [vmem:[%s3923 + $0x4] sm:$0xf]
      %v3928 = vunpack.c.l.b16 %v3924
      %v3929 = vunpack.c.l.b16 %v3925
      %v3930 = vpack.c.b16 %v3929, %v3928
      %v3932 = vsel %vm2227, %v3930, 0
      %3934 = vmatprep.subr.bf16.mxu0 %v3918
      %3935 = vmatpush1.bf16.msra.mxu0 %v3917
      %3936 = vmatprep.subr.bf16.mxu0 %v3920
      %3937 = vmatpush1.bf16.msra.mxu0 %v3919
      %3938 = vmatprep.subr.bf16.mxu0 %v3548
      %3939 = vmatpush1.bf16.msra.mxu0 %v3547
      %3940 = vmatprep.subr.bf16.mxu0 %v3922
      %3941 = vmatpush1.bf16.msra.mxu0 %v3921
      %3942 = vmatprep.subr.bf16.mxu0 0
      %3943 = vmatpush1.bf16.msra.mxu0 0
      %3944 = vmatprep.subr.bf16.mxu0 0
      %3945 = vmatpush1.bf16.msra.mxu0 0
      %3946 = vmatprep.subr.bf16.mxu0 0
      %3947 = vmatpush1.bf16.msra.mxu0 0
      %3948 = vmatprep.subr.bf16.mxu0 0
      %3949 = vmatpush1.bf16.msra.mxu0 0
      %3950 = vmatprep.subr.bf16.mxu0 0
      %3951 = vmatpush1.bf16.msra.mxu0 0
      %3952 = vmatprep.subr.bf16.mxu0 0
      %3953 = vmatpush1.bf16.msra.mxu0 0
      %3954 = vmatprep.subr.bf16.mxu0 0
      %3955 = vmatpush1.bf16.msra.mxu0 0
      %3956 = vmatprep.subr.bf16.mxu0 0
      %3957 = vmatpush1.bf16.msra.mxu0 0
      %3958 = vmatprep.subr.bf16.mxu0 0
      %3959 = vmatpush1.bf16.msra.mxu0 0
      %3960 = vmatprep.subr.bf16.mxu0 0
      %3961 = vmatpush1.bf16.msra.mxu0 0
      %3962 = vmatprep.subr.bf16.mxu0 0
      %3963 = vmatpush1.bf16.msra.mxu0 0
      %3964 = vmatprep.subr.bf16.mxu0 0
      %3965 = vmatpush1.bf16.msra.mxu0 0
      %3966 = vmatprep.mubr.bf16.mxu0 0
      %3967 = vmatmul.mubr.bf16.gmra.mrb[0].mxu0 %v3932
      %v3968 = vpop.f32.mrb[0].mxu0
      %v3969 = vadd.f32 0.0, %v3968
      %v3970 = vpop.f32.mrb[0].mxu0
      %v3971 = vadd.f32 0.0, %v3970
      %v3972 = vpop.f32.mrb[0].mxu0
      %v3973 = vadd.f32 0.0, %v3972
      %v3974 = vpop.f32.mrb[0].mxu0
      %v3975 = vadd.f32 0.0, %v3974
      %3976 = vdwg.mxu0
      %v3977 = vadd.f32 %v3969, %v3971
      %3978 = vadd.xlane.f32.xlu0 %v3977
      %v3979 = vpop.xlane.xlu0 %3978
      %v3980 = vadd.f32 %v3973, %v3975
      %3981 = vadd.xlane.f32.xlu0 %v3980
      %v3982 = vpop.xlane.xlu0 %3981
      %v3983 = vmul.f32 %v3979, %v2280
      %v3984 = vmul.f32 %v3982, %v2280
      %s3985 = scalar_lea.vmem %s6, 1
      %v3986 = vld [vmem:[%s3985] sm:$0x1]
      %v3988 = vsel %vm944, %v3986, 0
      %3990 = vmatprep.subr.mxu0 0.0
      %3991 = vmatpush1.msra.mxu0 %v3983
      %3992 = vmatprep.subr.mxu0 0.0
      %3993 = vmatpush1.msra.mxu0 %v3984
      %3994 = vmatprep.subr.mxu0 0.0
      %3995 = vmatpush1.msra.mxu0 0.0
      %3996 = vmatprep.subr.mxu0 0.0
      %3997 = vmatpush1.msra.mxu0 0.0
      %3998 = vmatprep.subr.mxu0 0.0
      %3999 = vmatpush1.msra.mxu0 0.0
      %4000 = vmatprep.subr.mxu0 0.0
      %4001 = vmatpush1.msra.mxu0 0.0
      %4002 = vmatprep.subr.mxu0 0.0
      %4003 = vmatpush1.msra.mxu0 0.0
      %4004 = vmatprep.subr.mxu0 0.0
      %4005 = vmatpush1.msra.mxu0 0.0
      %4006 = vmatprep.subr.mxu0 0.0
      %4007 = vmatpush1.msra.mxu0 0.0
      %4008 = vmatprep.subr.mxu0 0.0
      %4009 = vmatpush1.msra.mxu0 0.0
      %4010 = vmatprep.subr.mxu0 0.0
      %4011 = vmatpush1.msra.mxu0 0.0
      %4012 = vmatprep.subr.mxu0 0.0
      %4013 = vmatpush1.msra.mxu0 0.0
      %4014 = vmatprep.subr.mxu0 0.0
      %4015 = vmatpush1.msra.mxu0 0.0
      %4016 = vmatprep.subr.mxu0 0.0
      %4017 = vmatpush1.msra.mxu0 0.0
      %4018 = vmatprep.subr.mxu0 0.0
      %4019 = vmatpush1.msra.mxu0 0.0
      %4020 = vmatprep.subr.mxu0 0.0
      %4021 = vmatpush1.msra.mxu0 0.0
      %4022 = vmatprep.subr.mxu0 0.0
      %4023 = vmatpush1.msra.mxu0 0.0
      %4024 = vmatprep.subr.mxu0 0.0
      %4025 = vmatpush1.msra.mxu0 0.0
      %4026 = vmatprep.subr.mxu0 0.0
      %4027 = vmatpush1.msra.mxu0 0.0
      %4028 = vmatprep.subr.mxu0 0.0
      %4029 = vmatpush1.msra.mxu0 0.0
      %4030 = vmatprep.subr.mxu0 0.0
      %4031 = vmatpush1.msra.mxu0 0.0
      %4032 = vmatprep.subr.mxu0 0.0
      %4033 = vmatpush1.msra.mxu0 0.0
      %4034 = vmatprep.subr.mxu0 0.0
      %4035 = vmatpush1.msra.mxu0 0.0
      %4036 = vmatprep.subr.mxu0 0.0
      %4037 = vmatpush1.msra.mxu0 0.0
      %4038 = vmatprep.subr.mxu0 0.0
      %4039 = vmatpush1.msra.mxu0 0.0
      %4040 = vmatprep.subr.mxu0 0.0
      %4041 = vmatpush1.msra.mxu0 0.0
      %4042 = vmatprep.subr.mxu0 0.0
      %4043 = vmatpush1.msra.mxu0 0.0
      %4044 = vmatprep.subr.mxu0 0.0
      %4045 = vmatpush1.msra.mxu0 0.0
      %4046 = vmatprep.subr.mxu0 0.0
      %4047 = vmatpush1.msra.mxu0 0.0
      %4048 = vmatprep.subr.mxu0 0.0
      %4049 = vmatpush1.msra.mxu0 0.0
      %4050 = vmatprep.subr.mxu0 0.0
      %4051 = vmatpush1.msra.mxu0 0.0
      %4052 = vmatprep.subr.mxu0 0.0
      %4053 = vmatpush1.msra.mxu0 0.0
      %4054 = vmatprep.mubr.f32.mxu0 0.0
      %4055 = vmatmul.mubr.f32.gmra.mrb[0].mxu0 %v3988
      %v4056 = vpop.f32.mrb[0].mxu0
      %v4057 = vadd.f32 0.0, %v4056
      %v4058 = vpop.f32.mrb[0].mxu0
      %4059 = vdwg.mxu0
      %v4060 = vmax.f32 %v4057, 0.0
      %s4061 = scalar_lea.vmem %s7, 16
      %v4062 = vld [vmem:[%s4061] sm:$0xff]
      %v4063 = vld [vmem:[%s4061 + $0x8] sm:$0xff]
      %v4065 = vsel %vm2360, %v4062, 0
      %v4068 = vsel %vm2360, %v4063, 0
      %v4071 = vsel %vm2367, %v4060, 0
      %4073 = vmatprep.subr.mxu0 0.0
      %4074 = vmatpush1.msra.mxu0 %v4071
      %4075 = vmatprep.subr.mxu0 0.0
      %4076 = vmatpush1.msra.mxu0 0.0
      %4077 = vmatprep.subr.mxu0 0.0
      %4078 = vmatpush1.msra.mxu0 0.0
      %4079 = vmatprep.subr.mxu0 0.0
      %4080 = vmatpush1.msra.mxu0 0.0
      %4081 = vmatprep.subr.mxu0 0.0
      %4082 = vmatpush1.msra.mxu0 0.0
      %4083 = vmatprep.subr.mxu0 0.0
      %4084 = vmatpush1.msra.mxu0 0.0
      %4085 = vmatprep.subr.mxu0 0.0
      %4086 = vmatpush1.msra.mxu0 0.0
      %4087 = vmatprep.subr.mxu0 0.0
      %4088 = vmatpush1.msra.mxu0 0.0
      %4089 = vmatprep.subr.mxu0 0.0
      %4090 = vmatpush1.msra.mxu0 0.0
      %4091 = vmatprep.subr.mxu0 0.0
      %4092 = vmatpush1.msra.mxu0 0.0
      %4093 = vmatprep.subr.mxu0 0.0
      %4094 = vmatpush1.msra.mxu0 0.0
      %4095 = vmatprep.subr.mxu0 0.0
      %4096 = vmatpush1.msra.mxu0 0.0
      %4097 = vmatprep.subr.mxu0 0.0
      %4098 = vmatpush1.msra.mxu0 0.0
      %4099 = vmatprep.subr.mxu0 0.0
      %4100 = vmatpush1.msra.mxu0 0.0
      %4101 = vmatprep.subr.mxu0 0.0
      %4102 = vmatpush1.msra.mxu0 0.0
      %4103 = vmatprep.subr.mxu0 0.0
      %4104 = vmatpush1.msra.mxu0 0.0
      %4105 = vmatprep.subr.mxu0 0.0
      %4106 = vmatpush1.msra.mxu0 0.0
      %4107 = vmatprep.subr.mxu0 0.0
      %4108 = vmatpush1.msra.mxu0 0.0
      %4109 = vmatprep.subr.mxu0 0.0
      %4110 = vmatpush1.msra.mxu0 0.0
      %4111 = vmatprep.subr.mxu0 0.0
      %4112 = vmatpush1.msra.mxu0 0.0
      %4113 = vmatprep.subr.mxu0 0.0
      %4114 = vmatpush1.msra.mxu0 0.0
      %4115 = vmatprep.subr.mxu0 0.0
      %4116 = vmatpush1.msra.mxu0 0.0
      %4117 = vmatprep.subr.mxu0 0.0
      %4118 = vmatpush1.msra.mxu0 0.0
      %4119 = vmatprep.subr.mxu0 0.0
      %4120 = vmatpush1.msra.mxu0 0.0
      %4121 = vmatprep.subr.mxu0 0.0
      %4122 = vmatpush1.msra.mxu0 0.0
      %4123 = vmatprep.subr.mxu0 0.0
      %4124 = vmatpush1.msra.mxu0 0.0
      %4125 = vmatprep.subr.mxu0 0.0
      %4126 = vmatpush1.msra.mxu0 0.0
      %4127 = vmatprep.subr.mxu0 0.0
      %4128 = vmatpush1.msra.mxu0 0.0
      %4129 = vmatprep.subr.mxu0 0.0
      %4130 = vmatpush1.msra.mxu0 0.0
      %4131 = vmatprep.subr.mxu0 0.0
      %4132 = vmatpush1.msra.mxu0 0.0
      %4133 = vmatprep.subr.mxu0 0.0
      %4134 = vmatpush1.msra.mxu0 0.0
      %4135 = vmatprep.subr.mxu0 0.0
      %4136 = vmatpush1.msra.mxu0 0.0
      %4137 = vmatprep.mubr.f32.mxu0 0.0
      %4138 = vmatmul.mubr.f32.gmra.mrb[0].mxu0 %v4065
      %v4139 = vpop.f32.mrb[0].mxu0
      %v4140 = vadd.f32 0.0, %v4139
      %v4141 = vpop.f32.mrb[0].mxu0
      %4142 = vmatprep.mubr.f32.mxu0 0.0
      %4143 = vmatmul.mubr.f32.gmra.mrb[0].mxu0 %v4068
      %v4144 = vpop.f32.mrb[0].mxu0
      %v4145 = vadd.f32 0.0, %v4144
      %v4146 = vpop.f32.mrb[0].mxu0
      %4147 = vdwg.mxu0
      %v4148 = vxor.u32 %v4140, 2147483648
      %v4149 = vxor.u32 %v4145, 2147483648
      %v4150 = vmul.f32 %v4148, 1.442695
      %v4151 = vpow.pop %v4150
      %v4152 = vmul.f32 %v4149, 1.442695
      %v4153 = vpow.pop %v4152
      %v4154 = vadd.f32 %v4151, 1.0
      %v4155 = vadd.f32 %v4153, 1.0
      %v4156 = vrcp.pop %v4154
      %v4157 = vmul.f32 1.0, %v4156
      %v4158 = vrcp.pop %v4155
      %v4159 = vmul.f32 1.0, %v4158
      %4161 = vset.pattern.permute.xlu0 0
      %4162 = vperm.xlu0 %4161, %v4157
      %v4163 = vpop.permute.xlu0 %4162
      %4166 = vset.pattern.permute.xlu0 0
      %4167 = vperm.xlu0 %4166, %v4159
      %v4168 = vpop.permute.xlu0 %4167
      %v4170 = vmul.f32 %v3969, %v4163
      %v4171 = vmul.f32 %v3971, %v4163
      %v4172 = vmul.f32 %v3973, %v4168
      %v4173 = vmul.f32 %v3975, %v4168
      %v4174 = vadd.f32 %v4170, %v2476
      %v4175 = vadd.f32 %v4171, %v2477
      %v4176 = vadd.f32 %v4172, %v2478
      %v4177 = vadd.f32 %v4173, %v2479
      %v4178 = vmax.f32 %v4174, 0.0
      %v4179 = vmax.f32 %v4175, 0.0
      %v4180 = vmax.f32 %v4176, 0.0
      %v4181 = vmax.f32 %v4177, 0.0
      %v4182 = vld [vmem:[%s10] sm:$0xf]
      %v4183 = vld [vmem:[%s10 + $0x4] sm:$0xf]
      %v4184 = vpack.c.bf16 %v4180, %v4178
      %v4185 = vpack.c.bf16 %v4181, %v4179
      %v4188 = vunpack.c.l.b16 %v4182
      %v4189 = vunpack.c.l.b16 %v4183
      %v4190 = vpack.c.b16 %v4189, %v4188
      %v4192 = vsel %vm944, %v4190, 0
      %4194 = vmatprep.subr.bf16.mxu0 %v4185
      %4195 = vmatpush1.bf16.msra.mxu0 %v4184
      %4196 = vmatprep.subr.bf16.mxu0 0
      %4197 = vmatpush1.bf16.msra.mxu0 0
      %4198 = vmatprep.subr.bf16.mxu0 0
      %4199 = vmatpush1.bf16.msra.mxu0 0
      %4200 = vmatprep.subr.bf16.mxu0 0
      %4201 = vmatpush1.bf16.msra.mxu0 0
      %4202 = vmatprep.subr.bf16.mxu0 0
      %4203 = vmatpush1.bf16.msra.mxu0 0
      %4204 = vmatprep.subr.bf16.mxu0 0
      %4205 = vmatpush1.bf16.msra.mxu0 0
      %4206 = vmatprep.subr.bf16.mxu0 0
      %4207 = vmatpush1.bf16.msra.mxu0 0
      %4208 = vmatprep.subr.bf16.mxu0 0
      %4209 = vmatpush1.bf16.msra.mxu0 0
      %4210 = vmatprep.subr.bf16.mxu0 0
      %4211 = vmatpush1.bf16.msra.mxu0 0
      %4212 = vmatprep.subr.bf16.mxu0 0
      %4213 = vmatpush1.bf16.msra.mxu0 0
      %4214 = vmatprep.subr.bf16.mxu0 0
      %4215 = vmatpush1.bf16.msra.mxu0 0
      %4216 = vmatprep.subr.bf16.mxu0 0
      %4217 = vmatpush1.bf16.msra.mxu0 0
      %4218 = vmatprep.subr.bf16.mxu0 0
      %4219 = vmatpush1.bf16.msra.mxu0 0
      %4220 = vmatprep.subr.bf16.mxu0 0
      %4221 = vmatpush1.bf16.msra.mxu0 0
      %4222 = vmatprep.subr.bf16.mxu0 0
      %4223 = vmatpush1.bf16.msra.mxu0 0
      %4224 = vmatprep.subr.bf16.mxu0 0
      %4225 = vmatpush1.bf16.msra.mxu0 0
      %4226 = vmatprep.mubr.bf16.mxu0 0
      %4227 = vmatmul.mubr.bf16.gmra.mrb[0].mxu0 %v4192
      %v4228 = vpop.f32.mrb[0].mxu0
      %v4229 = vadd.f32 0.0, %v4228
      %v4230 = vpop.f32.mrb[0].mxu0
      %v4231 = vadd.f32 0.0, %v4230
      %v4232 = vpop.f32.mrb[0].mxu0
      %v4233 = vadd.f32 0.0, %v4232
      %v4234 = vpop.f32.mrb[0].mxu0
      %v4235 = vadd.f32 0.0, %v4234
      %4236 = vdwg.mxu0
      %v4237 = vmax.f32 %v4229, 0.0
      %v4238 = vmax.f32 %v4231, 0.0
      %v4239 = vmax.f32 %v4233, 0.0
      %v4240 = vmax.f32 %v4235, 0.0
      %v4241 = vld [vmem:[%s14] sm:$0xff]
      %v4242 = vld [vmem:[%s14 + $0x8] sm:$0xff]
      %v4243 = vld [vmem:[%s14 + $0x10] sm:$0xff]
      %v4244 = vld [vmem:[%s14 + $0x18] sm:$0xff]
      %v4245 = vld [vmem:[%s14 + $0x20] sm:$0xff]
      %v4246 = vld [vmem:[%s14 + $0x28] sm:$0xff]
      %v4247 = vld [vmem:[%s14 + $0x30] sm:$0xff]
      %v4248 = vld [vmem:[%s14 + $0x38] sm:$0xff]
      %v4249 = vld [vmem:[%s14 + $0x40] sm:$0xff]
      %v4250 = vld [vmem:[%s14 + $0x48] sm:$0xff]
      %v4251 = vld [vmem:[%s14 + $0x50] sm:$0xff]
      %v4252 = vld [vmem:[%s14 + $0x58] sm:$0xff]
      %v4253 = vld [vmem:[%s14 + $0x60] sm:$0xff]
      %v4254 = vld [vmem:[%s14 + $0x68] sm:$0xff]
      %v4255 = vld [vmem:[%s14 + $0x70] sm:$0xff]
      %v4256 = vld [vmem:[%s14 + $0x78] sm:$0xff]
      %v4257 = vld [vmem:[%s14 + $0x80] sm:$0xff]
      %v4258 = vld [vmem:[%s14 + $0x88] sm:$0xff]
      %v4259 = vld [vmem:[%s14 + $0x90] sm:$0xff]
      %v4260 = vld [vmem:[%s14 + $0x98] sm:$0xff]
      %v4261 = vld [vmem:[%s14 + $0xa0] sm:$0xff]
      %v4262 = vld [vmem:[%s14 + $0xa8] sm:$0xff]
      %v4263 = vld [vmem:[%s14 + $0xb0] sm:$0xff]
      %v4264 = vld [vmem:[%s14 + $0xb8] sm:$0xff]
      %v4265 = vld [vmem:[%s14 + $0xc0] sm:$0xff]
      %v4266 = vld [vmem:[%s14 + $0xc8] sm:$0xff]
      %v4267 = vld [vmem:[%s14 + $0xd0] sm:$0xff]
      %v4268 = vld [vmem:[%s14 + $0xd8] sm:$0xff]
      %v4269 = vld [vmem:[%s14 + $0xe0] sm:$0xff]
      %v4270 = vld [vmem:[%s14 + $0xe8] sm:$0xff]
      %v4271 = vld [vmem:[%s14 + $0xf0] sm:$0xff]
      %v4272 = vld [vmem:[%s14 + $0xf8] sm:$0xff]
      %v4273 = vld [vmem:[%s14 + $0x100] sm:$0xff]
      %v4274 = vld [vmem:[%s14 + $0x108] sm:$0xff]
      %v4275 = vld [vmem:[%s14 + $0x110] sm:$0xff]
      %v4276 = vld [vmem:[%s14 + $0x118] sm:$0xff]
      %v4277 = vld [vmem:[%s14 + $0x120] sm:$0xff]
      %v4278 = vld [vmem:[%s14 + $0x128] sm:$0xff]
      %v4279 = vld [vmem:[%s14 + $0x130] sm:$0xff]
      %v4280 = vld [vmem:[%s14 + $0x138] sm:$0xff]
      %v4281 = vld [vmem:[%s14 + $0x140] sm:$0xff]
      %v4282 = vld [vmem:[%s14 + $0x148] sm:$0xff]
      %v4283 = vld [vmem:[%s14 + $0x150] sm:$0xff]
      %v4284 = vld [vmem:[%s14 + $0x158] sm:$0xff]
      %v4285 = vld [vmem:[%s14 + $0x160] sm:$0xff]
      %v4286 = vld [vmem:[%s14 + $0x168] sm:$0xff]
      %v4287 = vld [vmem:[%s14 + $0x170] sm:$0xff]
      %v4288 = vld [vmem:[%s14 + $0x178] sm:$0xff]
      %v4289 = vld [vmem:[%s14 + $0x180] sm:$0xff]
      %v4290 = vld [vmem:[%s14 + $0x188] sm:$0xff]
      %v4291 = vld [vmem:[%s14 + $0x190] sm:$0xff]
      %v4292 = vld [vmem:[%s14 + $0x198] sm:$0xff]
      %v4293 = vld [vmem:[%s14 + $0x1a0] sm:$0xff]
      %v4294 = vld [vmem:[%s14 + $0x1a8] sm:$0xff]
      %v4295 = vld [vmem:[%s14 + $0x1b0] sm:$0xff]
      %v4296 = vld [vmem:[%s14 + $0x1b8] sm:$0xff]
      %v4297 = vld [vmem:[%s14 + $0x1c0] sm:$0xff]
      %v4298 = vld [vmem:[%s14 + $0x1c8] sm:$0xff]
      %v4299 = vld [vmem:[%s14 + $0x1d0] sm:$0xff]
      %v4300 = vld [vmem:[%s14 + $0x1d8] sm:$0xff]
      %v4301 = vld [vmem:[%s14 + $0x1e0] sm:$0xff]
      %v4302 = vld [vmem:[%s14 + $0x1e8] sm:$0xff]
      %v4303 = vld [vmem:[%s14 + $0x1f0] sm:$0xff]
      %v4304 = vld [vmem:[%s14 + $0x1f8] sm:$0xff]
      %v4305 = vld [vmem:[%s14 + $0x200] sm:$0xff]
      %v4306 = vld [vmem:[%s14 + $0x208] sm:$0xff]
      %v4307 = vld [vmem:[%s14 + $0x210] sm:$0xff]
      %v4308 = vld [vmem:[%s14 + $0x218] sm:$0xff]
      %v4309 = vld [vmem:[%s14 + $0x220] sm:$0xff]
      %v4310 = vld [vmem:[%s14 + $0x228] sm:$0xff]
      %v4311 = vld [vmem:[%s14 + $0x230] sm:$0xff]
      %v4312 = vld [vmem:[%s14 + $0x238] sm:$0xff]
      %4313 = vrot.lane.b32.xlu0 %v4178, 17
      %v4314 = vpop.permute.xlu0 %4313
      %4315 = vrot.lane.b32.xlu0 %v4180, 17
      %v4316 = vpop.permute.xlu0 %4315
      %4317 = vrot.lane.b32.xlu0 %v4237, 17
      %v4318 = vpop.permute.xlu0 %4317
      %4319 = vrot.lane.b32.xlu0 %v4239, 17
      %v4320 = vpop.permute.xlu0 %4319
      %4321 = vrot.lane.b32.xlu0 %v4179, 17
      %v4322 = vpop.permute.xlu0 %4321
      %4323 = vrot.lane.b32.xlu0 %v4181, 17
      %v4324 = vpop.permute.xlu0 %4323
      %4325 = vrot.lane.b32.xlu0 %v4238, 17
      %v4326 = vpop.permute.xlu0 %4325
      %4327 = vrot.lane.b32.xlu0 %v4240, 17
      %v4328 = vpop.permute.xlu0 %4327
      %v4329 = vsel %vm636, %v4314, %v4322
      %v4330 = vsel %vm636, %v4316, %v4324
      %v4331 = vsel %vm636, %v4318, %v4326
      %v4332 = vsel %vm636, %v4320, %v4328
      %v4333 = vsel %vm636, %v4322, %v4314
      %v4334 = vsel %vm636, %v4324, %v4316
      %v4335 = vsel %vm636, %v4326, %v4318
      %v4336 = vsel %vm636, %v4328, %v4320
      %4337 = vrot.lane.b32.xlu0 %v4178, 16
      %v4338 = vpop.permute.xlu0 %4337
      %4339 = vrot.lane.b32.xlu0 %v4180, 16
      %v4340 = vpop.permute.xlu0 %4339
      %4341 = vrot.lane.b32.xlu0 %v4237, 16
      %v4342 = vpop.permute.xlu0 %4341
      %4343 = vrot.lane.b32.xlu0 %v4239, 16
      %v4344 = vpop.permute.xlu0 %4343
      %4345 = vrot.lane.b32.xlu0 %v4179, 16
      %v4346 = vpop.permute.xlu0 %4345
      %4347 = vrot.lane.b32.xlu0 %v4181, 16
      %v4348 = vpop.permute.xlu0 %4347
      %4349 = vrot.lane.b32.xlu0 %v4238, 16
      %v4350 = vpop.permute.xlu0 %4349
      %4351 = vrot.lane.b32.xlu0 %v4240, 16
      %v4352 = vpop.permute.xlu0 %4351
      %v4353 = vsel %vm643, %v4338, %v4346
      %v4354 = vsel %vm643, %v4340, %v4348
      %v4355 = vsel %vm643, %v4342, %v4350
      %v4356 = vsel %vm643, %v4344, %v4352
      %v4357 = vsel %vm643, %v4346, %v4338
      %v4358 = vsel %vm643, %v4348, %v4340
      %v4359 = vsel %vm643, %v4350, %v4342
      %v4360 = vsel %vm643, %v4352, %v4344
      %4361 = vrot.lane.b32.xlu0 %v4178, 15
      %v4362 = vpop.permute.xlu0 %4361
      %4363 = vrot.lane.b32.xlu0 %v4180, 15
      %v4364 = vpop.permute.xlu0 %4363
      %4365 = vrot.lane.b32.xlu0 %v4237, 15
      %v4366 = vpop.permute.xlu0 %4365
      %4367 = vrot.lane.b32.xlu0 %v4239, 15
      %v4368 = vpop.permute.xlu0 %4367
      %4369 = vrot.lane.b32.xlu0 %v4179, 15
      %v4370 = vpop.permute.xlu0 %4369
      %4371 = vrot.lane.b32.xlu0 %v4181, 15
      %v4372 = vpop.permute.xlu0 %4371
      %4373 = vrot.lane.b32.xlu0 %v4238, 15
      %v4374 = vpop.permute.xlu0 %4373
      %4375 = vrot.lane.b32.xlu0 %v4240, 15
      %v4376 = vpop.permute.xlu0 %4375
      %v4377 = vsel %vm812, %v4362, %v4370
      %v4378 = vsel %vm812, %v4364, %v4372
      %v4379 = vsel %vm812, %v4366, %v4374
      %v4380 = vsel %vm812, %v4368, %v4376
      %v4381 = vsel %vm812, %v4370, %v4362
      %v4382 = vsel %vm812, %v4372, %v4364
      %v4383 = vsel %vm812, %v4374, %v4366
      %v4384 = vsel %vm812, %v4376, %v4368
      %4385 = vrot.lane.b32.xlu0 %v4178, 1
      %v4386 = vpop.permute.xlu0 %4385
      %4387 = vrot.lane.b32.xlu0 %v4180, 1
      %v4388 = vpop.permute.xlu0 %4387
      %4389 = vrot.lane.b32.xlu0 %v4237, 1
      %v4390 = vpop.permute.xlu0 %4389
      %4391 = vrot.lane.b32.xlu0 %v4239, 1
      %v4392 = vpop.permute.xlu0 %4391
      %4393 = vrot.lane.b32.xlu0 %v4179, 1
      %v4394 = vpop.permute.xlu0 %4393
      %4395 = vrot.lane.b32.xlu0 %v4181, 1
      %v4396 = vpop.permute.xlu0 %4395
      %4397 = vrot.lane.b32.xlu0 %v4238, 1
      %v4398 = vpop.permute.xlu0 %4397
      %4399 = vrot.lane.b32.xlu0 %v4240, 1
      %v4400 = vpop.permute.xlu0 %4399
      %v4401 = vsel %vm656, %v4386, %v4394
      %v4402 = vsel %vm656, %v4388, %v4396
      %v4403 = vsel %vm656, %v4390, %v4398
      %v4404 = vsel %vm656, %v4392, %v4400
      %v4405 = vsel %vm656, %v4394, %v4386
      %v4406 = vsel %vm656, %v4396, %v4388
      %v4407 = vsel %vm656, %v4398, %v4390
      %v4408 = vsel %vm656, %v4400, %v4392
      %4409 = vrot.lane.b32.xlu0 %v4178, 127
      %v4410 = vpop.permute.xlu0 %4409
      %4411 = vrot.lane.b32.xlu0 %v4180, 127
      %v4412 = vpop.permute.xlu0 %4411
      %4413 = vrot.lane.b32.xlu0 %v4237, 127
      %v4414 = vpop.permute.xlu0 %4413
      %4415 = vrot.lane.b32.xlu0 %v4239, 127
      %v4416 = vpop.permute.xlu0 %4415
      %4417 = vrot.lane.b32.xlu0 %v4179, 127
      %v4418 = vpop.permute.xlu0 %4417
      %4419 = vrot.lane.b32.xlu0 %v4181, 127
      %v4420 = vpop.permute.xlu0 %4419
      %4421 = vrot.lane.b32.xlu0 %v4238, 127
      %v4422 = vpop.permute.xlu0 %4421
      %4423 = vrot.lane.b32.xlu0 %v4240, 127
      %v4424 = vpop.permute.xlu0 %4423
      %v4425 = vsel %vm837, %v4410, %v4418
      %v4426 = vsel %vm837, %v4412, %v4420
      %v4427 = vsel %vm837, %v4414, %v4422
      %v4428 = vsel %vm837, %v4416, %v4424
      %v4429 = vsel %vm837, %v4418, %v4410
      %v4430 = vsel %vm837, %v4420, %v4412
      %v4431 = vsel %vm837, %v4422, %v4414
      %v4432 = vsel %vm837, %v4424, %v4416
      %4433 = vrot.lane.b32.xlu0 %v4178, 113
      %v4434 = vpop.permute.xlu0 %4433
      %4435 = vrot.lane.b32.xlu0 %v4180, 113
      %v4436 = vpop.permute.xlu0 %4435
      %4437 = vrot.lane.b32.xlu0 %v4237, 113
      %v4438 = vpop.permute.xlu0 %4437
      %4439 = vrot.lane.b32.xlu0 %v4239, 113
      %v4440 = vpop.permute.xlu0 %4439
      %4441 = vrot.lane.b32.xlu0 %v4179, 113
      %v4442 = vpop.permute.xlu0 %4441
      %4443 = vrot.lane.b32.xlu0 %v4181, 113
      %v4444 = vpop.permute.xlu0 %4443
      %4445 = vrot.lane.b32.xlu0 %v4238, 113
      %v4446 = vpop.permute.xlu0 %4445
      %4447 = vrot.lane.b32.xlu0 %v4240, 113
      %v4448 = vpop.permute.xlu0 %4447
      %v4449 = vsel %vm850, %v4434, %v4442
      %v4450 = vsel %vm850, %v4436, %v4444
      %v4451 = vsel %vm850, %v4438, %v4446
      %v4452 = vsel %vm850, %v4440, %v4448
      %v4453 = vsel %vm850, %v4442, %v4434
      %v4454 = vsel %vm850, %v4444, %v4436
      %v4455 = vsel %vm850, %v4446, %v4438
      %v4456 = vsel %vm850, %v4448, %v4440
      %4457 = vrot.lane.b32.xlu0 %v4178, 112
      %v4458 = vpop.permute.xlu0 %4457
      %4459 = vrot.lane.b32.xlu0 %v4180, 112
      %v4460 = vpop.permute.xlu0 %4459
      %4461 = vrot.lane.b32.xlu0 %v4237, 112
      %v4462 = vpop.permute.xlu0 %4461
      %4463 = vrot.lane.b32.xlu0 %v4239, 112
      %v4464 = vpop.permute.xlu0 %4463
      %4465 = vrot.lane.b32.xlu0 %v4179, 112
      %v4466 = vpop.permute.xlu0 %4465
      %4467 = vrot.lane.b32.xlu0 %v4181, 112
      %v4468 = vpop.permute.xlu0 %4467
      %4469 = vrot.lane.b32.xlu0 %v4238, 112
      %v4470 = vpop.permute.xlu0 %4469
      %4471 = vrot.lane.b32.xlu0 %v4240, 112
      %v4472 = vpop.permute.xlu0 %4471
      %v4473 = vsel %vm863, %v4458, %v4466
      %v4474 = vsel %vm863, %v4460, %v4468
      %v4475 = vsel %vm863, %v4462, %v4470
      %v4476 = vsel %vm863, %v4464, %v4472
      %v4477 = vsel %vm863, %v4466, %v4458
      %v4478 = vsel %vm863, %v4468, %v4460
      %v4479 = vsel %vm863, %v4470, %v4462
      %v4480 = vsel %vm863, %v4472, %v4464
      %4481 = vrot.lane.b32.xlu0 %v4178, 111
      %v4482 = vpop.permute.xlu0 %4481
      %4483 = vrot.lane.b32.xlu0 %v4180, 111
      %v4484 = vpop.permute.xlu0 %4483
      %4485 = vrot.lane.b32.xlu0 %v4237, 111
      %v4486 = vpop.permute.xlu0 %4485
      %4487 = vrot.lane.b32.xlu0 %v4239, 111
      %v4488 = vpop.permute.xlu0 %4487
      %4489 = vrot.lane.b32.xlu0 %v4179, 111
      %v4490 = vpop.permute.xlu0 %4489
      %4491 = vrot.lane.b32.xlu0 %v4181, 111
      %v4492 = vpop.permute.xlu0 %4491
      %4493 = vrot.lane.b32.xlu0 %v4238, 111
      %v4494 = vpop.permute.xlu0 %4493
      %4495 = vrot.lane.b32.xlu0 %v4240, 111
      %v4496 = vpop.permute.xlu0 %4495
      %v4497 = vsel %vm876, %v4482, %v4490
      %v4498 = vsel %vm876, %v4484, %v4492
      %v4499 = vsel %vm876, %v4486, %v4494
      %v4500 = vsel %vm876, %v4488, %v4496
      %v4501 = vsel %vm876, %v4490, %v4482
      %v4502 = vsel %vm876, %v4492, %v4484
      %v4503 = vsel %vm876, %v4494, %v4486
      %v4504 = vsel %vm876, %v4496, %v4488
      %v4505 = vmul.f32 %v4333, %v4241
      %v4506 = vmul.f32 %v4329, %v4242
      %v4507 = vmul.f32 %v4334, %v4243
      %v4508 = vmul.f32 %v4330, %v4244
      %v4509 = vmul.f32 %v4335, %v4245
      %v4510 = vmul.f32 %v4331, %v4246
      %v4511 = vmul.f32 %v4336, %v4247
      %v4512 = vmul.f32 %v4332, %v4248
      %v4513 = vmul.f32 %v4357, %v4249
      %v4514 = vmul.f32 %v4353, %v4250
      %v4515 = vmul.f32 %v4358, %v4251
      %v4516 = vmul.f32 %v4354, %v4252
      %v4517 = vmul.f32 %v4359, %v4253
      %v4518 = vmul.f32 %v4355, %v4254
      %v4519 = vmul.f32 %v4360, %v4255
      %v4520 = vmul.f32 %v4356, %v4256
      %v4521 = vmul.f32 %v4381, %v4257
      %v4522 = vmul.f32 %v4377, %v4258
      %v4523 = vmul.f32 %v4382, %v4259
      %v4524 = vmul.f32 %v4378, %v4260
      %v4525 = vmul.f32 %v4383, %v4261
      %v4526 = vmul.f32 %v4379, %v4262
      %v4527 = vmul.f32 %v4384, %v4263
      %v4528 = vmul.f32 %v4380, %v4264
      %v4529 = vmul.f32 %v4405, %v4265
      %v4530 = vmul.f32 %v4401, %v4266
      %v4531 = vmul.f32 %v4406, %v4267
      %v4532 = vmul.f32 %v4402, %v4268
      %v4533 = vmul.f32 %v4407, %v4269
      %v4534 = vmul.f32 %v4403, %v4270
      %v4535 = vmul.f32 %v4408, %v4271
      %v4536 = vmul.f32 %v4404, %v4272
      %v4537 = vmul.f32 %v4178, %v4273
      %v4538 = vmul.f32 %v4179, %v4274
      %v4539 = vmul.f32 %v4180, %v4275
      %v4540 = vmul.f32 %v4181, %v4276
      %v4541 = vmul.f32 %v4237, %v4277
      %v4542 = vmul.f32 %v4238, %v4278
      %v4543 = vmul.f32 %v4239, %v4279
      %v4544 = vmul.f32 %v4240, %v4280
      %v4545 = vmul.f32 %v4425, %v4281
      %v4546 = vmul.f32 %v4429, %v4282
      %v4547 = vmul.f32 %v4426, %v4283
      %v4548 = vmul.f32 %v4430, %v4284
      %v4549 = vmul.f32 %v4427, %v4285
      %v4550 = vmul.f32 %v4431, %v4286
      %v4551 = vmul.f32 %v4428, %v4287
      %v4552 = vmul.f32 %v4432, %v4288
      %v4553 = vmul.f32 %v4449, %v4289
      %v4554 = vmul.f32 %v4453, %v4290
      %v4555 = vmul.f32 %v4450, %v4291
      %v4556 = vmul.f32 %v4454, %v4292
      %v4557 = vmul.f32 %v4451, %v4293
      %v4558 = vmul.f32 %v4455, %v4294
      %v4559 = vmul.f32 %v4452, %v4295
      %v4560 = vmul.f32 %v4456, %v4296
      %v4561 = vmul.f32 %v4473, %v4297
      %v4562 = vmul.f32 %v4477, %v4298
      %v4563 = vmul.f32 %v4474, %v4299
      %v4564 = vmul.f32 %v4478, %v4300
      %v4565 = vmul.f32 %v4475, %v4301
      %v4566 = vmul.f32 %v4479, %v4302
      %v4567 = vmul.f32 %v4476, %v4303
      %v4568 = vmul.f32 %v4480, %v4304
      %v4569 = vmul.f32 %v4497, %v4305
      %v4570 = vmul.f32 %v4501, %v4306
      %v4571 = vmul.f32 %v4498, %v4307
      %v4572 = vmul.f32 %v4502, %v4308
      %v4573 = vmul.f32 %v4499, %v4309
      %v4574 = vmul.f32 %v4503, %v4310
      %v4575 = vmul.f32 %v4500, %v4311
      %v4576 = vmul.f32 %v4504, %v4312
      %v4577 = vpack.c.bf16 %v4507, %v4505
      %v4578 = vpack.c.bf16 %v4508, %v4506
      %v4579 = vpack.c.bf16 %v4511, %v4509
      %v4580 = vpack.c.bf16 %v4512, %v4510
      %v4581 = vpack.c.bf16 %v4515, %v4513
      %v4582 = vpack.c.bf16 %v4516, %v4514
      %v4583 = vpack.c.bf16 %v4519, %v4517
      %v4584 = vpack.c.bf16 %v4520, %v4518
      %v4585 = vpack.c.bf16 %v4523, %v4521
      %v4586 = vpack.c.bf16 %v4524, %v4522
      %v4587 = vpack.c.bf16 %v4527, %v4525
      %v4588 = vpack.c.bf16 %v4528, %v4526
      %v4589 = vpack.c.bf16 %v4531, %v4529
      %v4590 = vpack.c.bf16 %v4532, %v4530
      %v4591 = vpack.c.bf16 %v4535, %v4533
      %v4592 = vpack.c.bf16 %v4536, %v4534
      %v4593 = vpack.c.bf16 %v4539, %v4537
      %v4594 = vpack.c.bf16 %v4540, %v4538
      %v4595 = vpack.c.bf16 %v4543, %v4541
      %v4596 = vpack.c.bf16 %v4544, %v4542
      %v4597 = vpack.c.bf16 %v4547, %v4545
      %v4598 = vpack.c.bf16 %v4548, %v4546
      %v4599 = vpack.c.bf16 %v4551, %v4549
      %v4600 = vpack.c.bf16 %v4552, %v4550
      %v4601 = vpack.c.bf16 %v4555, %v4553
      %v4602 = vpack.c.bf16 %v4556, %v4554
      %v4603 = vpack.c.bf16 %v4559, %v4557
      %v4604 = vpack.c.bf16 %v4560, %v4558
      %v4605 = vpack.c.bf16 %v4563, %v4561
      %v4606 = vpack.c.bf16 %v4564, %v4562
      %v4607 = vpack.c.bf16 %v4567, %v4565
      %v4608 = vpack.c.bf16 %v4568, %v4566
      %v4609 = vpack.c.bf16 %v4571, %v4569
      %v4610 = vpack.c.bf16 %v4572, %v4570
      %v4611 = vpack.c.bf16 %v4575, %v4573
      %v4612 = vpack.c.bf16 %v4576, %v4574
      %v4613 = vld [vmem:[%s11] sm:$0xff]
      %v4614 = vld [vmem:[%s11 + $0x8] sm:$0xf]
      %v4615 = vld [vmem:[%s11 + $0xc] sm:$0xff]
      %v4616 = vld [vmem:[%s11 + $0x14] sm:$0xf]
      %v4617 = vld [vmem:[%s11 + $0x18] sm:$0xff]
      %v4618 = vld [vmem:[%s11 + $0x20] sm:$0xf]
      %v4619 = vld [vmem:[%s11 + $0x24] sm:$0xff]
      %v4620 = vld [vmem:[%s11 + $0x2c] sm:$0xf]
      %v4629 = vunpack.c.l.b16 %v4613
      %v4630 = vunpack.c.h.b16 %v4613
      %v4631 = vunpack.c.l.b16 %v4614
      %v4632 = vunpack.c.l.b16 %v4615
      %v4633 = vunpack.c.h.b16 %v4615
      %v4634 = vunpack.c.l.b16 %v4616
      %v4635 = vunpack.c.l.b16 %v4617
      %v4636 = vunpack.c.h.b16 %v4617
      %v4637 = vunpack.c.l.b16 %v4618
      %v4638 = vunpack.c.l.b16 %v4619
      %v4639 = vunpack.c.h.b16 %v4619
      %v4640 = vunpack.c.l.b16 %v4620
      %v4641 = vpack.c.b16 %v4632, %v4629
      %v4642 = vpack.c.b16 %v4633, %v4630
      %v4643 = vpack.c.b16 %v4634, %v4631
      %v4644 = vpack.c.b16 %v4638, %v4635
      %v4645 = vpack.c.b16 %v4639, %v4636
      %v4646 = vpack.c.b16 %v4640, %v4637
      %vm4651 = vcmask 261120
      %v4653 = vsel %vm4651, %v4643, 0
      %v4656 = vsel %vm4651, %v4646, 0
      %4658 = vmatprep.subr.bf16.mxu0 %v4578
      %4659 = vmatpush1.bf16.msra.mxu0 %v4577
      %4660 = vmatprep.subr.bf16.mxu0 %v4580
      %4661 = vmatpush1.bf16.msra.mxu0 %v4579
      %4662 = vmatprep.subr.bf16.mxu0 %v4582
      %4663 = vmatpush1.bf16.msra.mxu0 %v4581
      %4664 = vmatprep.subr.bf16.mxu0 %v4584
      %4665 = vmatpush1.bf16.msra.mxu0 %v4583
      %4666 = vmatprep.subr.bf16.mxu0 %v4586
      %4667 = vmatpush1.bf16.msra.mxu0 %v4585
      %4668 = vmatprep.subr.bf16.mxu0 %v4588
      %4669 = vmatpush1.bf16.msra.mxu0 %v4587
      %4670 = vmatprep.subr.bf16.mxu0 %v4590
      %4671 = vmatpush1.bf16.msra.mxu0 %v4589
      %4672 = vmatprep.subr.bf16.mxu0 %v4592
      %4673 = vmatpush1.bf16.msra.mxu0 %v4591
      %4674 = vmatprep.subr.bf16.mxu0 %v4594
      %4675 = vmatpush1.bf16.msra.mxu0 %v4593
      %4676 = vmatprep.subr.bf16.mxu0 %v4596
      %4677 = vmatpush1.bf16.msra.mxu0 %v4595
      %4678 = vmatprep.subr.bf16.mxu0 %v4598
      %4679 = vmatpush1.bf16.msra.mxu0 %v4597
      %4680 = vmatprep.subr.bf16.mxu0 %v4600
      %4681 = vmatpush1.bf16.msra.mxu0 %v4599
      %4682 = vmatprep.subr.bf16.mxu0 %v4602
      %4683 = vmatpush1.bf16.msra.mxu0 %v4601
      %4684 = vmatprep.subr.bf16.mxu0 %v4604
      %4685 = vmatpush1.bf16.msra.mxu0 %v4603
      %4686 = vmatprep.subr.bf16.mxu0 %v4606
      %4687 = vmatpush1.bf16.msra.mxu0 %v4605
      %4688 = vmatprep.subr.bf16.mxu0 %v4608
      %4689 = vmatpush1.bf16.msra.mxu0 %v4607
      %4690 = vmatprep.mubr.bf16.mxu0 %v4642
      %4691 = vmatmul.mubr.bf16.gmra.mrb[0].mxu0 %v4641
      %v4692 = vpop.f32.mrb[0].mxu0
      %v4693 = vadd.f32 0.0, %v4692
      %v4694 = vpop.f32.mrb[0].mxu0
      %v4695 = vadd.f32 0.0, %v4694
      %v4696 = vpop.f32.mrb[0].mxu0
      %v4697 = vadd.f32 0.0, %v4696
      %v4698 = vpop.f32.mrb[0].mxu0
      %v4699 = vadd.f32 0.0, %v4698
      %4700 = vmatprep.mubr.bf16.mxu0 %v4645
      %4701 = vmatmul.mubr.bf16.gmra.mrb[0].mxu0 %v4644
      %v4702 = vpop.f32.mrb[0].mxu0
      %v4703 = vadd.f32 0.0, %v4702
      %v4704 = vpop.f32.mrb[0].mxu0
      %v4705 = vadd.f32 0.0, %v4704
      %v4706 = vpop.f32.mrb[0].mxu0
      %v4707 = vadd.f32 0.0, %v4706
      %v4708 = vpop.f32.mrb[0].mxu0
      %v4709 = vadd.f32 0.0, %v4708
      %4710 = vdwg.mxu0
      %4711 = vmatprep.subr.bf16.mxu0 %v4610
      %4712 = vmatpush1.bf16.msra.mxu0 %v4609
      %4713 = vmatprep.subr.bf16.mxu0 %v4612
      %4714 = vmatpush1.bf16.msra.mxu0 %v4611
      %4715 = vmatprep.subr.bf16.mxu0 0
      %4716 = vmatpush1.bf16.msra.mxu0 0
      %4717 = vmatprep.subr.bf16.mxu0 0
      %4718 = vmatpush1.bf16.msra.mxu0 0
      %4719 = vmatprep.subr.bf16.mxu0 0
      %4720 = vmatpush1.bf16.msra.mxu0 0
      %4721 = vmatprep.subr.bf16.mxu0 0
      %4722 = vmatpush1.bf16.msra.mxu0 0
      %4723 = vmatprep.subr.bf16.mxu0 0
      %4724 = vmatpush1.bf16.msra.mxu0 0
      %4725 = vmatprep.subr.bf16.mxu0 0
      %4726 = vmatpush1.bf16.msra.mxu0 0
      %4727 = vmatprep.subr.bf16.mxu0 0
      %4728 = vmatpush1.bf16.msra.mxu0 0
      %4729 = vmatprep.subr.bf16.mxu0 0
      %4730 = vmatpush1.bf16.msra.mxu0 0
      %4731 = vmatprep.subr.bf16.mxu0 0
      %4732 = vmatpush1.bf16.msra.mxu0 0
      %4733 = vmatprep.subr.bf16.mxu0 0
      %4734 = vmatpush1.bf16.msra.mxu0 0
      %4735 = vmatprep.subr.bf16.mxu0 0
      %4736 = vmatpush1.bf16.msra.mxu0 0
      %4737 = vmatprep.subr.bf16.mxu0 0
      %4738 = vmatpush1.bf16.msra.mxu0 0
      %4739 = vmatprep.subr.bf16.mxu0 0
      %4740 = vmatpush1.bf16.msra.mxu0 0
      %4741 = vmatprep.subr.bf16.mxu0 0
      %4742 = vmatpush1.bf16.msra.mxu0 0
      %4743 = vmatprep.mubr.bf16.mxu0 0
      %4744 = vmatmul.mubr.bf16.gmra.mrb[0].mxu0 %v4653
      %v4745 = vpop.f32.mrb[0].mxu0
      %v4746 = vadd.f32 %v4693, %v4745
      %v4747 = vpop.f32.mrb[0].mxu0
      %v4748 = vadd.f32 %v4695, %v4747
      %v4749 = vpop.f32.mrb[0].mxu0
      %v4750 = vadd.f32 %v4697, %v4749
      %v4751 = vpop.f32.mrb[0].mxu0
      %v4752 = vadd.f32 %v4699, %v4751
      %4753 = vmatprep.mubr.bf16.mxu0 0
      %4754 = vmatmul.mubr.bf16.gmra.mrb[0].mxu0 %v4656
      %v4755 = vpop.f32.mrb[0].mxu0
      %v4756 = vadd.f32 %v4703, %v4755
      %v4757 = vpop.f32.mrb[0].mxu0
      %v4758 = vadd.f32 %v4705, %v4757
      %v4759 = vpop.f32.mrb[0].mxu0
      %v4760 = vadd.f32 %v4707, %v4759
      %v4761 = vpop.f32.mrb[0].mxu0
      %v4762 = vadd.f32 %v4709, %v4761
      %4763 = vdwg.mxu0
      %4764 = vst [vmem:[%s548] sm:$0xff] %v4746
      %4765 = vst [vmem:[%s548 + $0x8] sm:$0xff] %v4748
      %4766 = vst [vmem:[%s548 + $0x10] sm:$0xff] %v4750
      %4767 = vst [vmem:[%s548 + $0x18] sm:$0xff] %v4752
      %4768 = vst [vmem:[%s548 + $0x20] sm:$0xff] %v4756
      %4769 = vst [vmem:[%s548 + $0x28] sm:$0xff] %v4758
      %4770 = vst [vmem:[%s548 + $0x30] sm:$0xff] %v4760
      %4771 = vst [vmem:[%s548 + $0x38] sm:$0xff] %v4762
      %p4772 = scmp.lt.s32.totalorder %s28, 1
      %s4773 = scalar_select %p4772, %s28, 1
      %s4774 = smul.addr %s4773, 8
      %s4775 = smul.addr %s4774, 8
      %s4776 = scalar_lea.vmem %s17, %s4775
      // Predicated region
      $region89: #{res_unet_block_outermost.1} parent=87 // pred_check
        %p4777 = pneg %p408
      $region90: #{res_unet_block_outermost.1} parent=87 // pred_check_branch
        %4779 = sbr.rel (%p4777) target = $region92
      $region91: #{res_unet_block_outermost.1} parent=87 // pred_region
        _
      $region92: #{res_unet_block_outermost.1} parent=87 // pred_fallthru
        _
    $region88: #{res_unet_block_outermost.1} parent=5 // pred_fallthru
      _
    %p4780 = scmp.le.s32.totalorder 2, %s23
    // Predicated region
    $region93: #{res_unet_block_outermost.1} parent=5 // pred_check
      %p4781 = pneg %p4780
    $region94: #{res_unet_block_outermost.1} parent=5 // pred_check_branch
      %4783 = sbr.rel (%p4781) target = $region96
    $region95: #{res_unet_block_outermost.1} parent=5 // pred_region
      %s4784 = ssub.s32 %s23, 2
      // Predicated region
      $region97: #{res_unet_block_outermost.1} parent=95 // pred_check
        %p4785 = pneg %p414
      $region98: #{res_unet_block_outermost.1} parent=95 // pred_check_branch
        %4787 = sbr.rel (%p4785) target = $region100
      $region99: #{res_unet_block_outermost.1} parent=95 // pred_region
        %p4788 = scmp.lt.s32.totalorder %s29, 1
        %s4789 = scalar_select %p4788, %s29, 1
        %s4790 = smul.addr %s4789, 8
        %s4791 = smul.addr %s4790, 8
        %s4792 = scalar_lea.vmem %s17, %s4791
      $region100: #{res_unet_block_outermost.1} parent=95 // pred_fallthru
        _
    $region96: #{res_unet_block_outermost.1} parent=5 // pred_fallthru
      _
  $region6: #{res_unet_block_outermost.1} parent=0 // loop_footer
    %s27 = sadd.s32 1, %s23
  $region7: #{res_unet_block_outermost.1} parent=0 // loop_footer_branch
    %22 = sbr.rel target = $region3
  $region8: #{res_unet_block_outermost.1} parent=0 // loop_exit
    _

</llo_original>
